<compile_context>
chip_gen: v6e
topology: v6e:2x2x1
jax: 0.10.0
libtpu: 0.0.40
codegen_flags: <defaults>
</compile_context>

<pallas_src>
import functools

import jax
import jax.numpy as jnp
from jax import lax
from jax.experimental import pallas as pl
from jax.experimental.pallas import tpu as pltpu

EPS = 1e-5  # PyTorch BatchNorm1d default eps


def _pick_tile(dim, pref):
    """Largest legal tile: `pref` if it divides `dim`, else the full dim."""
    return pref if dim % pref == 0 else dim


def _vmem_limit(working_set_bytes):
    """Scoped-VMEM budget: working set + headroom, floored / capped sanely."""
    return int(min(max(int(working_set_bytes) + (16 << 20), 32 << 20), 100 << 20))


# ----------------------------------------------------------------------------
# Linear -> BatchNorm1d(batch stats) -> (ReLU) layer, one full-K dot per
# output-feature tile.  Grid is (N_tiles,) with the stacked 2B-row batch
# resident, or (2, N_tiles) with one view per block (VMEM guard / v7x split).
# ----------------------------------------------------------------------------
def _linear_bn_kernel(*refs, n_views, batch, affine, relu, dual_out):
    i = 0
    x_ref = refs[i]; i += 1
    w_ref = refs[i]; i += 1
    if affine:
        g_ref = refs[i]; i += 1
        b_ref = refs[i]; i += 1
    else:
        g_ref = b_ref = None
    o_ref = refs[i]; i += 1
    o2_ref = refs[i] if dual_out else None

    # Full-K matmul for this N tile (inputs already bf16; astype is a no-op).
    y = jnp.dot(x_ref[...].astype(jnp.bfloat16),
                w_ref[...].astype(jnp.bfloat16),
                preferred_element_type=jnp.float32)

    outs = []
    for v in range(n_views):  # per-view BatchNorm statistics (PyTorch semantics)
        yv = y[v * batch:(v + 1) * batch, :] if n_views > 1 else y
        mean = jnp.mean(yv, axis=0, keepdims=True)
        c = yv - mean                               # mean-subtract BEFORE squaring
        var = jnp.mean(c * c, axis=0, keepdims=True)
        inv = lax.rsqrt(var + EPS)
        if affine:
            out = c * (inv * g_ref[...]) + b_ref[...]
        else:
            out = c * inv
        if relu:
            out = jnp.maximum(out, 0.0)
        outs.append(out)

    res = outs[0] if n_views == 1 else jnp.concatenate(outs, axis=0)
    o_ref[...] = res.astype(o_ref.dtype)
    if dual_out:
        o2_ref[...] = res.astype(o2_ref.dtype)


def linear_bn_relu(x, w, gamma=None, beta=None, *, batch, relu, affine,
                   out_dtype=jnp.bfloat16, dual_out=False, tile_n=512,
                   split_views=None, vmem_cap_bytes=40 << 20):
    """relu?(bn(x @ w)) with per-view BN over rows [0,B) and [B,2B).

    If `dual_out`, returns (f32, bf16) copies of the output (f32 is the value
    returned to the user, bf16 feeds the next memory-bound kernel).
    """
    rows, K = x.shape
    Kw, N = w.shape
    assert Kw == K and rows == 2 * batch
    tn = _pick_tile(N, tile_n)

    x_item = x.dtype.itemsize
    w_item = w.dtype.itemsize
    out_item = (4 + 2) if dual_out else jnp.dtype(out_dtype).itemsize

    def working_set(row_block):
        s = (2 * row_block * K * x_item          # resident x block (2x conservative)
             + 2 * K * tn * w_item               # weight tile, double-buffered
             + row_block * tn * 4                # f32 matmul result temp
             + 2 * row_block * tn * out_item)    # output block(s), double-buffered
        if affine:
            s += 2 * 2 * 8 * tn * 4              # gamma/beta (sublane-padded)
        return s

    # VMEM guard: stacked 2B rows by default; fall back to a per-view split
    # (halves the row block, also gives v7x a second parallel axis) when the
    # stacked working set would be too large.
    if split_views is None:
        split_views = working_set(rows) > vmem_cap_bytes

    if split_views:
        grid = (2, N // tn)
        x_spec = pl.BlockSpec((batch, K), lambda v, n: (v, 0))
        w_spec = pl.BlockSpec((K, tn), lambda v, n: (0, n))
        gb_spec = pl.BlockSpec((1, tn), lambda v, n: (0, n))
        o_spec = pl.BlockSpec((batch, tn), lambda v, n: (v, n))
        dims = ("parallel", "parallel")
        n_views = 1
        ws = working_set(batch)
    else:
        grid = (N // tn,)
        x_spec = pl.BlockSpec((rows, K), lambda n: (0, 0))   # resident, DMA'd once
        w_spec = pl.BlockSpec((K, tn), lambda n: (0, n))
        gb_spec = pl.BlockSpec((1, tn), lambda n: (0, n))
        o_spec = pl.BlockSpec((rows, tn), lambda n: (0, n))
        dims = ("parallel",)
        n_views = 2
        ws = working_set(rows)

    in_specs = [x_spec, w_spec]
    args = [x, w]
    if affine:
        in_specs += [gb_spec, gb_spec]
        args += [gamma, beta]

    if dual_out:
        out_specs = [o_spec, o_spec]
        out_shape = (jax.ShapeDtypeStruct((rows, N), jnp.float32),
                     jax.ShapeDtypeStruct((rows, N), jnp.bfloat16))
    else:
        out_specs = o_spec
        out_shape = jax.ShapeDtypeStruct((rows, N), out_dtype)

    cost = pl.CostEstimate(
        flops=2 * rows * K * N + 8 * rows * N,
        transcendentals=0,
        bytes_accessed=(rows * K * x_item + K * N * w_item
                        + rows * N * out_item + (2 * N * 4 if affine else 0)))

    kernel = functools.partial(_linear_bn_kernel, n_views=n_views, batch=batch,
                               affine=affine, relu=relu, dual_out=dual_out)
    return pl.pallas_call(
        kernel,
        grid=grid,
        in_specs=in_specs,
        out_specs=out_specs,
        out_shape=out_shape,
        compiler_params=pltpu.CompilerParams(
            dimension_semantics=dims,
            vmem_limit_bytes=_vmem_limit(ws)),
        cost_estimate=cost,
    )(*args)


# ----------------------------------------------------------------------------
# Fused 2-layer predictor: Linear -> BN -> ReLU -> Linear(+bias).
# Grid = (2,) over views, marked "parallel" (one view per TensorCore on v7x).
# The (B, pred_dim) intermediate never leaves VMEM.
# ----------------------------------------------------------------------------
def _predictor_kernel(z_ref, w1_ref, g_ref, b_ref, w2_ref, bias2_ref, o_ref):
    h = jnp.dot(z_ref[...].astype(jnp.bfloat16),
                w1_ref[...].astype(jnp.bfloat16),
                preferred_element_type=jnp.float32)
    mean = jnp.mean(h, axis=0, keepdims=True)
    c = h - mean
    var = jnp.mean(c * c, axis=0, keepdims=True)
    inv = lax.rsqrt(var + EPS)
    a = jnp.maximum(c * (inv * g_ref[...]) + b_ref[...], 0.0)
    out = jnp.dot(a.astype(jnp.bfloat16),
                  w2_ref[...].astype(jnp.bfloat16),
                  preferred_element_type=jnp.float32) + bias2_ref[...]
    o_ref[...] = out.astype(o_ref.dtype)


def predictor_fused(z, w1, gamma, beta, w2, bias2, *, batch):
    rows, K = z.shape
    Kw, pred_dim = w1.shape
    pd2, out_dim = w2.shape
    assert Kw == K and pd2 == pred_dim and rows == 2 * batch

    in_specs = [
        pl.BlockSpec((batch, K), lambda v: (v, 0)),           # z: one view per block
        pl.BlockSpec((K, pred_dim), lambda v: (0, 0)),        # w1 (resident)
        pl.BlockSpec((1, pred_dim), lambda v: (0, 0)),        # gamma
        pl.BlockSpec((1, pred_dim), lambda v: (0, 0)),        # beta
        pl.BlockSpec((pred_dim, out_dim), lambda v: (0, 0)),  # w2 (resident)
        pl.BlockSpec((1, out_dim), lambda v: (0, 0)),         # bias2
    ]
    out_spec = pl.BlockSpec((batch, out_dim), lambda v: (v, 0))

    ws = (2 * batch * K * z.dtype.itemsize
          + 2 * K * pred_dim * w1.dtype.itemsize
          + 2 * pred_dim * out_dim * w2.dtype.itemsize
          + 2 * 2 * 8 * pred_dim * 4
          + 2 * 8 * out_dim * 4
          + batch * pred_dim * 4
          + 2 * batch * out_dim * 4)

    cost = pl.CostEstimate(
        flops=2 * rows * K * pred_dim + 2 * rows * pred_dim * out_dim,
        transcendentals=0,
        bytes_accessed=(rows * K * z.dtype.itemsize
                        + K * pred_dim * w1.dtype.itemsize
                        + pred_dim * out_dim * w2.dtype.itemsize
                        + rows * out_dim * 4))

    return pl.pallas_call(
        _predictor_kernel,
        grid=(2,),
        in_specs=in_specs,
        out_specs=out_spec,
        out_shape=jax.ShapeDtypeStruct((rows, out_dim), jnp.float32),
        compiler_params=pltpu.CompilerParams(
            dimension_semantics=("parallel",),
            vmem_limit_bytes=_vmem_limit(ws)),
        cost_estimate=cost,
    )(z, w1, gamma, beta, w2, bias2)


# ----------------------------------------------------------------------------
# SimSiam parameters and forward pass (both views stacked along the batch).
# ----------------------------------------------------------------------------
def init_params(key, prev_dim, dim, pred_dim):
    ks = jax.random.split(key, 13)
    s = 0.05

    def W(k, din, dout):
        # Stored (Din, Dout) = transpose of nn.Linear.weight, in bf16.
        return (jax.random.normal(k, (din, dout), jnp.float32) * s).astype(jnp.bfloat16)

    def g(k, d):
        return 1.0 + 0.1 * jax.random.normal(k, (1, d), jnp.float32)

    def b(k, d):
        return 0.1 * jax.random.normal(k, (1, d), jnp.float32)

    return {
        "h_w1": W(ks[0], prev_dim, prev_dim),
        "h_g1": g(ks[1], prev_dim), "h_b1": b(ks[2], prev_dim),
        "h_w2": W(ks[3], prev_dim, prev_dim),
        "h_g2": g(ks[4], prev_dim), "h_b2": b(ks[5], prev_dim),
        "h_w3": W(ks[6], prev_dim, dim),
        # Linear bias before BN(affine=False): kept for PyTorch fidelity, but it
        # is cancelled by the BN mean subtraction, so the kernel never reads it.
        "h_bias3": 0.1 * jax.random.normal(ks[7], (1, dim), jnp.float32),
        "p_w1": W(ks[8], dim, pred_dim),
        "p_g1": g(ks[9], pred_dim), "p_b1": b(ks[10], pred_dim),
        "p_w2": W(ks[11], pred_dim, dim),
        "p_bias2": 0.1 * jax.random.normal(ks[12], (1, dim), jnp.float32),
    }


def encoder_head(params, x, *, batch, tile_n=512, split_views=None):
    h = linear_bn_relu(x, params["h_w1"], params["h_g1"], params["h_b1"],
                       batch=batch, relu=True, affine=True,
                       out_dtype=jnp.bfloat16, tile_n=tile_n,
                       split_views=split_views)
    h = linear_bn_relu(h, params["h_w2"], params["h_g2"], params["h_b2"],
                       batch=batch, relu=True, affine=True,
                       out_dtype=jnp.bfloat16, tile_n=tile_n,
                       split_views=split_views)
    # Linear(+bias) -> BN(dim, affine=False); bias cancelled by BN mean-sub.
    # Emits f32 z (returned) and a bf16 copy feeding the predictor.
    z_f32, z_bf16 = linear_bn_relu(h, params["h_w3"], batch=batch, relu=False,
                                   affine=False, dual_out=True, tile_n=tile_n,
                                   split_views=split_views)
    return z_f32, z_bf16


def simsiam_forward(params, x1, x2, *, tile_n=512, force_split_views=None):
    B = x1.shape[0]
    # Stack the two views (each weight tile DMA'd once per layer) and cast to
    # bf16 in the wrapper so the first layer streams half the bytes.
    x = jnp.concatenate([x1, x2], axis=0).astype(jnp.bfloat16)
    z_f32, z_bf16 = encoder_head(params, x, batch=B, tile_n=tile_n,
                                 split_views=force_split_views)
    p = predictor_fused(z_bf16, params["p_w1"], params["p_g1"], params["p_b1"],
                        params["p_w2"], params["p_bias2"], batch=B)
    z1, z2 = z_f32[:B], z_f32[B:]
    p1, p2 = p[:B], p[B:]
    # .detach() -> stop_gradient
    return p1, p2, jax.lax.stop_gradient(z1), jax.lax.stop_gradient(z2)


# ----------------------------------------------------------------------------
# Pure-JAX reference (two independent per-view passes = PyTorch semantics).
# ----------------------------------------------------------------------------
def _ref_linear_bn(x, w, gamma=None, beta=None, bias=None, *, bn=True, relu=False):
    y = jnp.dot(x.astype(jnp.bfloat16), w.astype(jnp.bfloat16),
                preferred_element_type=jnp.float32)
    if bias is not None:
        y = y + bias
    if bn:
        mean = jnp.mean(y, axis=0, keepdims=True)
        var = jnp.mean((y - mean) ** 2, axis=0, keepdims=True)
        y = (y - mean) / jnp.sqrt(var + EPS)
        if gamma is not None:
            y = y * gamma + beta
    if relu:
        y = jnp.maximum(y, 0.0)
    return y


def simsiam_forward_ref(params, x1, x2):
    def head(x):
        y = _ref_linear_bn(x, params["h_w1"], params["h_g1"], params["h_b1"],
                           bn=True, relu=True)
        y = _ref_linear_bn(y, params["h_w2"], params["h_g2"], params["h_b2"],
                           bn=True, relu=True)
        y = _ref_linear_bn(y, params["h_w3"], bias=params["h_bias3"],
                           bn=True, relu=False)
        return y

    def pred(z):
        h = _ref_linear_bn(z, params["p_w1"], params["p_g1"], params["p_b1"],
                           bn=True, relu=True)
        return _ref_linear_bn(h, params["p_w2"], bias=params["p_bias2"],
                              bn=False, relu=False)

    z1, z2 = head(x1), head(x2)
    return pred(z1), pred(z2), z1, z2


if __name__ == "__main__":
    # Small shapes consistent with the module (production: prev=2048, dim=2048,
    # pred=512, B~512).  B=16 keeps bf16 row blocks tile-aligned in both the
    # stacked and per-view-split paths; feature dims are multiples of 128.
    B, PREV_DIM, DIM, PRED_DIM = 16, 256, 256, 128
    TILE = 128  # demo tiles; production default is 512

    key = jax.random.PRNGKey(0)
    k_x1, k_x2, k_p = jax.random.split(key, 3)
    x1 = jax.random.normal(k_x1, (B, PREV_DIM), jnp.float32)
    x2 = jax.random.normal(k_x2, (B, PREV_DIM), jnp.float32)
    params = init_params(k_p, PREV_DIM, DIM, PRED_DIM)

    r1, r2, rz1, rz2 = simsiam_forward_ref(params, x1, x2)

    def check(outs, tag):
        p1, p2, z1, z2 = outs
        for name, got, want in (("p1", p1, r1), ("p2", p2, r2),
                                ("z1", z1, rz1), ("z2", z2, rz2)):
            assert got.shape == want.shape and got.dtype == want.dtype, (tag, name)
            assert jnp.allclose(got, want, rtol=2e-2, atol=2e-2), \
                f"mismatch: {tag}/{name}"

    # Default path: stacked 2B-row blocks, N-tile grid.
    fwd = jax.jit(functools.partial(simsiam_forward, tile_n=TILE))
    check(jax.block_until_ready(fwd(params, x1, x2)), "stacked")

    # Forced per-view split path (large-batch / v7x VMEM guard).
    fwd_split = jax.jit(functools.partial(simsiam_forward, tile_n=TILE,
                                          force_split_views=True))
    check(jax.block_until_ready(fwd_split(params, x1, x2)), "split")

    print("KERNEL_OK")
</pallas_src>

<mosaic_0001>
module attributes {stable_mosaic.version = 11 : i64} {
  func.func @_linear_bn_kernel(%arg0: i32, %arg1: memref<32x256xbf16, #tpu.memory_space<vmem>>, %arg2: memref<256x128xbf16, #tpu.memory_space<vmem>>, %arg3: memref<1x128xf32, #tpu.memory_space<vmem>>, %arg4: memref<1x128xf32, #tpu.memory_space<vmem>>, %arg5: memref<32x128xbf16, #tpu.memory_space<vmem>>) attributes {dimension_semantics = [#tpu.dimension_semantics<parallel>], iteration_bounds = array<i64: 2>, scalar_prefetch = 0 : i64, scratch_operands = 0 : i64, tpu.core_type = #tpu.core_type<tc>, window_params = [{pipeline_mode = #tpu.pipeline_mode<synchronous>, transform_indices = @transform_0, window_bounds = array<i64: 32, 256>}, {transform_indices = @transform_1, window_bounds = array<i64: 256, 128>}, {transform_indices = @transform_2, window_bounds = array<i64: 1, 128>}, {transform_indices = @transform_3, window_bounds = array<i64: 1, 128>}, {transform_indices = @transform_4, window_bounds = array<i64: 32, 128>}]} {
    %c0 = arith.constant 0 : index
    %c0_0 = arith.constant 0 : index
    %0 = vector.load %arg1[%c0, %c0_0] : memref<32x256xbf16, #tpu.memory_space<vmem>>, vector<32x256xbf16>
    %c0_1 = arith.constant 0 : index
    %c0_2 = arith.constant 0 : index
    %1 = vector.load %arg2[%c0_1, %c0_2] : memref<256x128xbf16, #tpu.memory_space<vmem>>, vector<256x128xbf16>
    %cst = arith.constant dense<0.000000e+00> : vector<32x128xf32>
    %2 = tpu.matmul %0, %1, %cst {dimension_numbers = #tpu.dot_dimension_numbers<[1], [0], [0], [1], [0, 0, 1, 1], [], []>} : vector<32x256xbf16>, vector<256x128xbf16>, vector<32x128xf32> -> vector<32x128xf32>
    %3 = vector.extract_strided_slice %2 {offsets = [0, 0], sizes = [16, 128], strides = [1, 1]} : vector<32x128xf32> to vector<16x128xf32>
    %cst_3 = arith.constant dense<0.000000e+00> : vector<128xf32>
    %4 = vector.multi_reduction <add>, %3, %cst_3 [0] : vector<16x128xf32> to vector<128xf32>
    %5 = vector.shape_cast %4 : vector<128xf32> to vector<1x128xf32>
    %cst_4 = arith.constant 1.600000e+01 : f32
    %6 = vector.broadcast %cst_4 : f32 to vector<1x128xf32>
    %7 = arith.divf %5, %6 : vector<1x128xf32>
    %8 = vector.broadcast %7 : vector<1x128xf32> to vector<16x128xf32>
    %9 = arith.subf %3, %8 : vector<16x128xf32>
    %10 = arith.mulf %9, %9 : vector<16x128xf32>
    %cst_5 = arith.constant dense<0.000000e+00> : vector<128xf32>
    %11 = vector.multi_reduction <add>, %10, %cst_5 [0] : vector<16x128xf32> to vector<128xf32>
    %12 = vector.shape_cast %11 : vector<128xf32> to vector<1x128xf32>
    %cst_6 = arith.constant 1.600000e+01 : f32
    %13 = vector.broadcast %cst_6 : f32 to vector<1x128xf32>
    %14 = arith.divf %12, %13 : vector<1x128xf32>
    %cst_7 = arith.constant 9.99999974E-6 : f32
    %15 = vector.broadcast %cst_7 : f32 to vector<1x128xf32>
    %16 = arith.addf %14, %15 : vector<1x128xf32>
    %17 = math.rsqrt %16 : vector<1x128xf32>
    %c0_8 = arith.constant 0 : index
    %c0_9 = arith.constant 0 : index
    %18 = vector.load %arg3[%c0_8, %c0_9] : memref<1x128xf32, #tpu.memory_space<vmem>>, vector<1x128xf32>
    %19 = arith.mulf %17, %18 : vector<1x128xf32>
    %20 = vector.broadcast %19 : vector<1x128xf32> to vector<16x128xf32>
    %21 = arith.mulf %9, %20 : vector<16x128xf32>
    %c0_10 = arith.constant 0 : index
    %c0_11 = arith.constant 0 : index
    %22 = vector.load %arg4[%c0_10, %c0_11] : memref<1x128xf32, #tpu.memory_space<vmem>>, vector<1x128xf32>
    %23 = vector.broadcast %22 : vector<1x128xf32> to vector<16x128xf32>
    %24 = arith.addf %21, %23 : vector<16x128xf32>
    %cst_12 = arith.constant 0.000000e+00 : f32
    %25 = vector.broadcast %cst_12 : f32 to vector<16x128xf32>
    %26 = arith.maximumf %24, %25 : vector<16x128xf32>
    %27 = vector.extract_strided_slice %2 {offsets = [16, 0], sizes = [16, 128], strides = [1, 1]} : vector<32x128xf32> to vector<16x128xf32>
    %cst_13 = arith.constant dense<0.000000e+00> : vector<128xf32>
    %28 = vector.multi_reduction <add>, %27, %cst_13 [0] : vector<16x128xf32> to vector<128xf32>
    %29 = vector.shape_cast %28 : vector<128xf32> to vector<1x128xf32>
    %cst_14 = arith.constant 1.600000e+01 : f32
    %30 = vector.broadcast %cst_14 : f32 to vector<1x128xf32>
    %31 = arith.divf %29, %30 : vector<1x128xf32>
    %32 = vector.broadcast %31 : vector<1x128xf32> to vector<16x128xf32>
    %33 = arith.subf %27, %32 : vector<16x128xf32>
    %34 = arith.mulf %33, %33 : vector<16x128xf32>
    %cst_15 = arith.constant dense<0.000000e+00> : vector<128xf32>
    %35 = vector.multi_reduction <add>, %34, %cst_15 [0] : vector<16x128xf32> to vector<128xf32>
    %36 = vector.shape_cast %35 : vector<128xf32> to vector<1x128xf32>
    %cst_16 = arith.constant 1.600000e+01 : f32
    %37 = vector.broadcast %cst_16 : f32 to vector<1x128xf32>
    %38 = arith.divf %36, %37 : vector<1x128xf32>
    %cst_17 = arith.constant 9.99999974E-6 : f32
    %39 = vector.broadcast %cst_17 : f32 to vector<1x128xf32>
    %40 = arith.addf %38, %39 : vector<1x128xf32>
    %41 = math.rsqrt %40 : vector<1x128xf32>
    %c0_18 = arith.constant 0 : index
    %c0_19 = arith.constant 0 : index
    %42 = vector.load %arg3[%c0_18, %c0_19] : memref<1x128xf32, #tpu.memory_space<vmem>>, vector<1x128xf32>
    %43 = arith.mulf %41, %42 : vector<1x128xf32>
    %44 = vector.broadcast %43 : vector<1x128xf32> to vector<16x128xf32>
    %45 = arith.mulf %33, %44 : vector<16x128xf32>
    %c0_20 = arith.constant 0 : index
    %c0_21 = arith.constant 0 : index
    %46 = vector.load %arg4[%c0_20, %c0_21] : memref<1x128xf32, #tpu.memory_space<vmem>>, vector<1x128xf32>
    %47 = vector.broadcast %46 : vector<1x128xf32> to vector<16x128xf32>
    %48 = arith.addf %45, %47 : vector<16x128xf32>
    %cst_22 = arith.constant 0.000000e+00 : f32
    %49 = vector.broadcast %cst_22 : f32 to vector<16x128xf32>
    %50 = arith.maximumf %48, %49 : vector<16x128xf32>
    %51 = tpu.concatenate %26, %50 in 0 : vector<16x128xf32>, vector<16x128xf32> -> vector<32x128xf32>
    %52 = arith.truncf %51 : vector<32x128xf32> to vector<32x128xbf16>
    %c0_23 = arith.constant 0 : index
    %c0_24 = arith.constant 0 : index
    %53 = vector.load %arg5[%c0_23, %c0_24] : memref<32x128xbf16, #tpu.memory_space<vmem>>, vector<32x128xbf16>
    tpu.vector_store %arg5[%c0_23, %c0_24], %52 {strides = array<i32>} : memref<32x128xbf16, #tpu.memory_space<vmem>>, vector<32x128xbf16>,
    return
  }
  func.func @transform_0(%arg0: i32) -> (i32, i32) {
    %c0_i32 = arith.constant 0 : i32
    %c0_i32_0 = arith.constant 0 : i32
    %c0_i32_1 = arith.constant 0 : i32
    return %c0_i32, %c0_i32_0 : i32, i32
  }
  func.func @transform_1(%arg0: i32) -> (i32, i32) {
    %c0_i32 = arith.constant 0 : i32
    %c0_i32_0 = arith.constant 0 : i32
    return %c0_i32, %arg0 : i32, i32
  }
  func.func @transform_2(%arg0: i32) -> (i32, i32) {
    %c0_i32 = arith.constant 0 : i32
    %c0_i32_0 = arith.constant 0 : i32
    return %c0_i32, %arg0 : i32, i32
  }
  func.func @transform_3(%arg0: i32) -> (i32, i32) {
    %c0_i32 = arith.constant 0 : i32
    %c0_i32_0 = arith.constant 0 : i32
    return %c0_i32, %arg0 : i32, i32
  }
  func.func @transform_4(%arg0: i32) -> (i32, i32) {
    %c0_i32 = arith.constant 0 : i32
    %c0_i32_0 = arith.constant 0 : i32
    return %c0_i32, %arg0 : i32, i32
  }
}

module attributes {stable_mosaic.version = 11 : i64} {
  func.func @_predictor_kernel(%arg0: i32, %arg1: memref<16x256xbf16, #tpu.memory_space<vmem>>, %arg2: memref<256x128xbf16, #tpu.memory_space<vmem>>, %arg3: memref<1x128xf32, #tpu.memory_space<vmem>>, %arg4: memref<1x128xf32, #tpu.memory_space<vmem>>, %arg5: memref<128x256xbf16, #tpu.memory_space<vmem>>, %arg6: memref<1x256xf32, #tpu.memory_space<vmem>>, %arg7: memref<16x256xf32, #tpu.memory_space<vmem>>) attributes {dimension_semantics = [#tpu.dimension_semantics<parallel>], iteration_bounds = array<i64: 2>, scalar_prefetch = 0 : i64, scratch_operands = 0 : i64, tpu.core_type = #tpu.core_type<tc>, window_params = [{transform_indices = @transform_0, window_bounds = array<i64: 16, 256>}, {pipeline_mode = #tpu.pipeline_mode<synchronous>, transform_indices = @transform_1, window_bounds = array<i64: 256, 128>}, {pipeline_mode = #tpu.pipeline_mode<synchronous>, transform_indices = @transform_2, window_bounds = array<i64: 1, 128>}, {pipeline_mode = #tpu.pipeline_mode<synchronous>, transform_indices = @transform_3, window_bounds = array<i64: 1, 128>}, {pipeline_mode = #tpu.pipeline_mode<synchronous>, transform_indices = @transform_4, window_bounds = array<i64: 128, 256>}, {pipeline_mode = #tpu.pipeline_mode<synchronous>, transform_indices = @transform_5, window_bounds = array<i64: 1, 256>}, {transform_indices = @transform_6, window_bounds = array<i64: 16, 256>}]} {
    %c0 = arith.constant 0 : index
    %c0_0 = arith.constant 0 : index
    %0 = vector.load %arg1[%c0, %c0_0] : memref<16x256xbf16, #tpu.memory_space<vmem>>, vector<16x256xbf16>
    %c0_1 = arith.constant 0 : index
    %c0_2 = arith.constant 0 : index
    %1 = vector.load %arg2[%c0_1, %c0_2] : memref<256x128xbf16, #tpu.memory_space<vmem>>, vector<256x128xbf16>
    %cst = arith.constant dense<0.000000e+00> : vector<16x128xf32>
    %2 = tpu.matmul %0, %1, %cst {dimension_numbers = #tpu.dot_dimension_numbers<[1], [0], [0], [1], [0, 0, 1, 1], [], []>} : vector<16x256xbf16>, vector<256x128xbf16>, vector<16x128xf32> -> vector<16x128xf32>
    %cst_3 = arith.constant dense<0.000000e+00> : vector<128xf32>
    %3 = vector.multi_reduction <add>, %2, %cst_3 [0] : vector<16x128xf32> to vector<128xf32>
    %4 = vector.shape_cast %3 : vector<128xf32> to vector<1x128xf32>
    %cst_4 = arith.constant 1.600000e+01 : f32
    %5 = vector.broadcast %cst_4 : f32 to vector<1x128xf32>
    %6 = arith.divf %4, %5 : vector<1x128xf32>
    %7 = vector.broadcast %6 : vector<1x128xf32> to vector<16x128xf32>
    %8 = arith.subf %2, %7 : vector<16x128xf32>
    %9 = arith.mulf %8, %8 : vector<16x128xf32>
    %cst_5 = arith.constant dense<0.000000e+00> : vector<128xf32>
    %10 = vector.multi_reduction <add>, %9, %cst_5 [0] : vector<16x128xf32> to vector<128xf32>
    %11 = vector.shape_cast %10 : vector<128xf32> to vector<1x128xf32>
    %cst_6 = arith.constant 1.600000e+01 : f32
    %12 = vector.broadcast %cst_6 : f32 to vector<1x128xf32>
    %13 = arith.divf %11, %12 : vector<1x128xf32>
    %cst_7 = arith.constant 9.99999974E-6 : f32
    %14 = vector.broadcast %cst_7 : f32 to vector<1x128xf32>
    %15 = arith.addf %13, %14 : vector<1x128xf32>
    %16 = math.rsqrt %15 : vector<1x128xf32>
    %c0_8 = arith.constant 0 : index
    %c0_9 = arith.constant 0 : index
    %17 = vector.load %arg3[%c0_8, %c0_9] : memref<1x128xf32, #tpu.memory_space<vmem>>, vector<1x128xf32>
    %18 = arith.mulf %16, %17 : vector<1x128xf32>
    %19 = vector.broadcast %18 : vector<1x128xf32> to vector<16x128xf32>
    %20 = arith.mulf %8, %19 : vector<16x128xf32>
    %c0_10 = arith.constant 0 : index
    %c0_11 = arith.constant 0 : index
    %21 = vector.load %arg4[%c0_10, %c0_11] : memref<1x128xf32, #tpu.memory_space<vmem>>, vector<1x128xf32>
    %22 = vector.broadcast %21 : vector<1x128xf32> to vector<16x128xf32>
    %23 = arith.addf %20, %22 : vector<16x128xf32>
    %cst_12 = arith.constant 0.000000e+00 : f32
    %24 = vector.broadcast %cst_12 : f32 to vector<16x128xf32>
    %25 = arith.maximumf %23, %24 : vector<16x128xf32>
    %26 = arith.truncf %25 : vector<16x128xf32> to vector<16x128xbf16>
    %c0_13 = arith.constant 0 : index
    %c0_14 = arith.constant 0 : index
    %27 = vector.load %arg5[%c0_13, %c0_14] : memref<128x256xbf16, #tpu.memory_space<vmem>>, vector<128x256xbf16>
    %cst_15 = arith.constant dense<0.000000e+00> : vector<16x256xf32>
    %28 = tpu.matmul %26, %27, %cst_15 {dimension_numbers = #tpu.dot_dimension_numbers<[1], [0], [0], [1], [0, 0, 1, 1], [], []>} : vector<16x128xbf16>, vector<128x256xbf16>, vector<16x256xf32> -> vector<16x256xf32>
    %c0_16 = arith.constant 0 : index
    %c0_17 = arith.constant 0 : index
    %29 = vector.load %arg6[%c0_16, %c0_17] : memref<1x256xf32, #tpu.memory_space<vmem>>, vector<1x256xf32>
    %30 = vector.broadcast %29 : vector<1x256xf32> to vector<16x256xf32>
    %31 = arith.addf %28, %30 : vector<16x256xf32>
    %c0_18 = arith.constant 0 : index
    %c0_19 = arith.constant 0 : index
    %32 = vector.load %arg7[%c0_18, %c0_19] : memref<16x256xf32, #tpu.memory_space<vmem>>, vector<16x256xf32>
    tpu.vector_store %arg7[%c0_18, %c0_19], %31 {strides = array<i32>} : memref<16x256xf32, #tpu.memory_space<vmem>>, vector<16x256xf32>,
    return
  }
  func.func @transform_0(%arg0: i32) -> (i32, i32) {
    %c0_i32 = arith.constant 0 : i32
    %c0_i32_0 = arith.constant 0 : i32
    return %arg0, %c0_i32 : i32, i32
  }
  func.func @transform_1(%arg0: i32) -> (i32, i32) {
    %c0_i32 = arith.constant 0 : i32
    %c0_i32_0 = arith.constant 0 : i32
    %c0_i32_1 = arith.constant 0 : i32
    return %c0_i32, %c0_i32_0 : i32, i32
  }
  func.func @transform_2(%arg0: i32) -> (i32, i32) {
    %c0_i32 = arith.constant 0 : i32
    %c0_i32_0 = arith.constant 0 : i32
    %c0_i32_1 = arith.constant 0 : i32
    return %c0_i32, %c0_i32_0 : i32, i32
  }
  func.func @transform_3(%arg0: i32) -> (i32, i32) {
    %c0_i32 = arith.constant 0 : i32
    %c0_i32_0 = arith.constant 0 : i32
    %c0_i32_1 = arith.constant 0 : i32
    return %c0_i32, %c0_i32_0 : i32, i32
  }
  func.func @transform_4(%arg0: i32) -> (i32, i32) {
    %c0_i32 = arith.constant 0 : i32
    %c0_i32_0 = arith.constant 0 : i32
    %c0_i32_1 = arith.constant 0 : i32
    return %c0_i32, %c0_i32_0 : i32, i32
  }
  func.func @transform_5(%arg0: i32) -> (i32, i32) {
    %c0_i32 = arith.constant 0 : i32
    %c0_i32_0 = arith.constant 0 : i32
    %c0_i32_1 = arith.constant 0 : i32
    return %c0_i32, %c0_i32_0 : i32, i32
  }
  func.func @transform_6(%arg0: i32) -> (i32, i32) {
    %c0_i32 = arith.constant 0 : i32
    %c0_i32_0 = arith.constant 0 : i32
    return %arg0, %c0_i32 : i32, i32
  }
}

module attributes {stable_mosaic.version = 11 : i64} {
  func.func @_linear_bn_kernel(%arg0: i32, %arg1: memref<32x256xbf16, #tpu.memory_space<vmem>>, %arg2: memref<256x128xbf16, #tpu.memory_space<vmem>>, %arg3: memref<32x128xf32, #tpu.memory_space<vmem>>, %arg4: memref<32x128xbf16, #tpu.memory_space<vmem>>) attributes {dimension_semantics = [#tpu.dimension_semantics<parallel>], iteration_bounds = array<i64: 2>, scalar_prefetch = 0 : i64, scratch_operands = 0 : i64, tpu.core_type = #tpu.core_type<tc>, window_params = [{pipeline_mode = #tpu.pipeline_mode<synchronous>, transform_indices = @transform_0, window_bounds = array<i64: 32, 256>}, {transform_indices = @transform_1, window_bounds = array<i64: 256, 128>}, {transform_indices = @transform_2, window_bounds = array<i64: 32, 128>}, {transform_indices = @transform_3, window_bounds = array<i64: 32, 128>}]} {
    %c0 = arith.constant 0 : index
    %c0_0 = arith.constant 0 : index
    %0 = vector.load %arg1[%c0, %c0_0] : memref<32x256xbf16, #tpu.memory_space<vmem>>, vector<32x256xbf16>
    %c0_1 = arith.constant 0 : index
    %c0_2 = arith.constant 0 : index
    %1 = vector.load %arg2[%c0_1, %c0_2] : memref<256x128xbf16, #tpu.memory_space<vmem>>, vector<256x128xbf16>
    %cst = arith.constant dense<0.000000e+00> : vector<32x128xf32>
    %2 = tpu.matmul %0, %1, %cst {dimension_numbers = #tpu.dot_dimension_numbers<[1], [0], [0], [1], [0, 0, 1, 1], [], []>} : vector<32x256xbf16>, vector<256x128xbf16>, vector<32x128xf32> -> vector<32x128xf32>
    %3 = vector.extract_strided_slice %2 {offsets = [0, 0], sizes = [16, 128], strides = [1, 1]} : vector<32x128xf32> to vector<16x128xf32>
    %cst_3 = arith.constant dense<0.000000e+00> : vector<128xf32>
    %4 = vector.multi_reduction <add>, %3, %cst_3 [0] : vector<16x128xf32> to vector<128xf32>
    %5 = vector.shape_cast %4 : vector<128xf32> to vector<1x128xf32>
    %cst_4 = arith.constant 1.600000e+01 : f32
    %6 = vector.broadcast %cst_4 : f32 to vector<1x128xf32>
    %7 = arith.divf %5, %6 : vector<1x128xf32>
    %8 = vector.broadcast %7 : vector<1x128xf32> to vector<16x128xf32>
    %9 = arith.subf %3, %8 : vector<16x128xf32>
    %10 = arith.mulf %9, %9 : vector<16x128xf32>
    %cst_5 = arith.constant dense<0.000000e+00> : vector<128xf32>
    %11 = vector.multi_reduction <add>, %10, %cst_5 [0] : vector<16x128xf32> to vector<128xf32>
    %12 = vector.shape_cast %11 : vector<128xf32> to vector<1x128xf32>
    %cst_6 = arith.constant 1.600000e+01 : f32
    %13 = vector.broadcast %cst_6 : f32 to vector<1x128xf32>
    %14 = arith.divf %12, %13 : vector<1x128xf32>
    %cst_7 = arith.constant 9.99999974E-6 : f32
    %15 = vector.broadcast %cst_7 : f32 to vector<1x128xf32>
    %16 = arith.addf %14, %15 : vector<1x128xf32>
    %17 = math.rsqrt %16 : vector<1x128xf32>
    %18 = vector.broadcast %17 : vector<1x128xf32> to vector<16x128xf32>
    %19 = arith.mulf %9, %18 : vector<16x128xf32>
    %20 = vector.extract_strided_slice %2 {offsets = [16, 0], sizes = [16, 128], strides = [1, 1]} : vector<32x128xf32> to vector<16x128xf32>
    %cst_8 = arith.constant dense<0.000000e+00> : vector<128xf32>
    %21 = vector.multi_reduction <add>, %20, %cst_8 [0] : vector<16x128xf32> to vector<128xf32>
    %22 = vector.shape_cast %21 : vector<128xf32> to vector<1x128xf32>
    %cst_9 = arith.constant 1.600000e+01 : f32
    %23 = vector.broadcast %cst_9 : f32 to vector<1x128xf32>
    %24 = arith.divf %22, %23 : vector<1x128xf32>
    %25 = vector.broadcast %24 : vector<1x128xf32> to vector<16x128xf32>
    %26 = arith.subf %20, %25 : vector<16x128xf32>
    %27 = arith.mulf %26, %26 : vector<16x128xf32>
    %cst_10 = arith.constant dense<0.000000e+00> : vector<128xf32>
    %28 = vector.multi_reduction <add>, %27, %cst_10 [0] : vector<16x128xf32> to vector<128xf32>
    %29 = vector.shape_cast %28 : vector<128xf32> to vector<1x128xf32>
    %cst_11 = arith.constant 1.600000e+01 : f32
    %30 = vector.broadcast %cst_11 : f32 to vector<1x128xf32>
    %31 = arith.divf %29, %30 : vector<1x128xf32>
    %cst_12 = arith.constant 9.99999974E-6 : f32
    %32 = vector.broadcast %cst_12 : f32 to vector<1x128xf32>
    %33 = arith.addf %31, %32 : vector<1x128xf32>
    %34 = math.rsqrt %33 : vector<1x128xf32>
    %35 = vector.broadcast %34 : vector<1x128xf32> to vector<16x128xf32>
    %36 = arith.mulf %26, %35 : vector<16x128xf32>
    %37 = tpu.concatenate %19, %36 in 0 : vector<16x128xf32>, vector<16x128xf32> -> vector<32x128xf32>
    %c0_13 = arith.constant 0 : index
    %c0_14 = arith.constant 0 : index
    %38 = vector.load %arg3[%c0_13, %c0_14] : memref<32x128xf32, #tpu.memory_space<vmem>>, vector<32x128xf32>
    tpu.vector_store %arg3[%c0_13, %c0_14], %37 {strides = array<i32>} : memref<32x128xf32, #tpu.memory_space<vmem>>, vector<32x128xf32>,
    %39 = arith.truncf %37 : vector<32x128xf32> to vector<32x128xbf16>
    %c0_15 = arith.constant 0 : index
    %c0_16 = arith.constant 0 : index
    %40 = vector.load %arg4[%c0_15, %c0_16] : memref<32x128xbf16, #tpu.memory_space<vmem>>, vector<32x128xbf16>
    tpu.vector_store %arg4[%c0_15, %c0_16], %39 {strides = array<i32>} : memref<32x128xbf16, #tpu.memory_space<vmem>>, vector<32x128xbf16>,
    return
  }
  func.func @transform_0(%arg0: i32) -> (i32, i32) {
    %c0_i32 = arith.constant 0 : i32
    %c0_i32_0 = arith.constant 0 : i32
    %c0_i32_1 = arith.constant 0 : i32
    return %c0_i32, %c0_i32_0 : i32, i32
  }
  func.func @transform_1(%arg0: i32) -> (i32, i32) {
    %c0_i32 = arith.constant 0 : i32
    %c0_i32_0 = arith.constant 0 : i32
    return %c0_i32, %arg0 : i32, i32
  }
  func.func @transform_2(%arg0: i32) -> (i32, i32) {
    %c0_i32 = arith.constant 0 : i32
    %c0_i32_0 = arith.constant 0 : i32
    return %c0_i32, %arg0 : i32, i32
  }
  func.func @transform_3(%arg0: i32) -> (i32, i32) {
    %c0_i32 = arith.constant 0 : i32
    %c0_i32_0 = arith.constant 0 : i32
    return %c0_i32, %arg0 : i32, i32
  }
}

module attributes {stable_mosaic.version = 11 : i64} {
  func.func @_linear_bn_kernel(%arg0: i32, %arg1: memref<32x256xbf16, #tpu.memory_space<vmem>>, %arg2: memref<256x128xbf16, #tpu.memory_space<vmem>>, %arg3: memref<1x128xf32, #tpu.memory_space<vmem>>, %arg4: memref<1x128xf32, #tpu.memory_space<vmem>>, %arg5: memref<32x128xbf16, #tpu.memory_space<vmem>>) attributes {dimension_semantics = [#tpu.dimension_semantics<parallel>], iteration_bounds = array<i64: 2>, scalar_prefetch = 0 : i64, scratch_operands = 0 : i64, tpu.core_type = #tpu.core_type<tc>, window_params = [{pipeline_mode = #tpu.pipeline_mode<synchronous>, transform_indices = @transform_0, window_bounds = array<i64: 32, 256>}, {transform_indices = @transform_1, window_bounds = array<i64: 256, 128>}, {transform_indices = @transform_2, window_bounds = array<i64: 1, 128>}, {transform_indices = @transform_3, window_bounds = array<i64: 1, 128>}, {transform_indices = @transform_4, window_bounds = array<i64: 32, 128>}]} {
    %c0 = arith.constant 0 : index
    %c0_0 = arith.constant 0 : index
    %0 = vector.load %arg1[%c0, %c0_0] : memref<32x256xbf16, #tpu.memory_space<vmem>>, vector<32x256xbf16>
    %c0_1 = arith.constant 0 : index
    %c0_2 = arith.constant 0 : index
    %1 = vector.load %arg2[%c0_1, %c0_2] : memref<256x128xbf16, #tpu.memory_space<vmem>>, vector<256x128xbf16>
    %cst = arith.constant dense<0.000000e+00> : vector<32x128xf32>
    %2 = tpu.matmul %0, %1, %cst {dimension_numbers = #tpu.dot_dimension_numbers<[1], [0], [0], [1], [0, 0, 1, 1], [], []>} : vector<32x256xbf16>, vector<256x128xbf16>, vector<32x128xf32> -> vector<32x128xf32>
    %3 = vector.extract_strided_slice %2 {offsets = [0, 0], sizes = [16, 128], strides = [1, 1]} : vector<32x128xf32> to vector<16x128xf32>
    %cst_3 = arith.constant dense<0.000000e+00> : vector<128xf32>
    %4 = vector.multi_reduction <add>, %3, %cst_3 [0] : vector<16x128xf32> to vector<128xf32>
    %5 = vector.shape_cast %4 : vector<128xf32> to vector<1x128xf32>
    %cst_4 = arith.constant 1.600000e+01 : f32
    %6 = vector.broadcast %cst_4 : f32 to vector<1x128xf32>
    %7 = arith.divf %5, %6 : vector<1x128xf32>
    %8 = vector.broadcast %7 : vector<1x128xf32> to vector<16x128xf32>
    %9 = arith.subf %3, %8 : vector<16x128xf32>
    %10 = arith.mulf %9, %9 : vector<16x128xf32>
    %cst_5 = arith.constant dense<0.000000e+00> : vector<128xf32>
    %11 = vector.multi_reduction <add>, %10, %cst_5 [0] : vector<16x128xf32> to vector<128xf32>
    %12 = vector.shape_cast %11 : vector<128xf32> to vector<1x128xf32>
    %cst_6 = arith.constant 1.600000e+01 : f32
    %13 = vector.broadcast %cst_6 : f32 to vector<1x128xf32>
    %14 = arith.divf %12, %13 : vector<1x128xf32>
    %cst_7 = arith.constant 9.99999974E-6 : f32
    %15 = vector.broadcast %cst_7 : f32 to vector<1x128xf32>
    %16 = arith.addf %14, %15 : vector<1x128xf32>
    %17 = math.rsqrt %16 : vector<1x128xf32>
    %c0_8 = arith.constant 0 : index
    %c0_9 = arith.constant 0 : index
    %18 = vector.load %arg3[%c0_8, %c0_9] : memref<1x128xf32, #tpu.memory_space<vmem>>, vector<1x128xf32>
    %19 = arith.mulf %17, %18 : vector<1x128xf32>
    %20 = vector.broadcast %19 : vector<1x128xf32> to vector<16x128xf32>
    %21 = arith.mulf %9, %20 : vector<16x128xf32>
    %c0_10 = arith.constant 0 : index
    %c0_11 = arith.constant 0 : index
    %22 = vector.load %arg4[%c0_10, %c0_11] : memref<1x128xf32, #tpu.memory_space<vmem>>, vector<1x128xf32>
    %23 = vector.broadcast %22 : vector<1x128xf32> to vector<16x128xf32>
    %24 = arith.addf %21, %23 : vector<16x128xf32>
    %cst_12 = arith.constant 0.000000e+00 : f32
    %25 = vector.broadcast %cst_12 : f32 to vector<16x128xf32>
    %26 = arith.maximumf %24, %25 : vector<16x128xf32>
    %27 = vector.extract_strided_slice %2 {offsets = [16, 0], sizes = [16, 128], strides = [1, 1]} : vector<32x128xf32> to vector<16x128xf32>
    %cst_13 = arith.constant dense<0.000000e+00> : vector<128xf32>
    %28 = vector.multi_reduction <add>, %27, %cst_13 [0] : vector<16x128xf32> to vector<128xf32>
    %29 = vector.shape_cast %28 : vector<128xf32> to vector<1x128xf32>
    %cst_14 = arith.constant 1.600000e+01 : f32
    %30 = vector.broadcast %cst_14 : f32 to vector<1x128xf32>
    %31 = arith.divf %29, %30 : vector<1x128xf32>
    %32 = vector.broadcast %31 : vector<1x128xf32> to vector<16x128xf32>
    %33 = arith.subf %27, %32 : vector<16x128xf32>
    %34 = arith.mulf %33, %33 : vector<16x128xf32>
    %cst_15 = arith.constant dense<0.000000e+00> : vector<128xf32>
    %35 = vector.multi_reduction <add>, %34, %cst_15 [0] : vector<16x128xf32> to vector<128xf32>
    %36 = vector.shape_cast %35 : vector<128xf32> to vector<1x128xf32>
    %cst_16 = arith.constant 1.600000e+01 : f32
    %37 = vector.broadcast %cst_16 : f32 to vector<1x128xf32>
    %38 = arith.divf %36, %37 : vector<1x128xf32>
    %cst_17 = arith.constant 9.99999974E-6 : f32
    %39 = vector.broadcast %cst_17 : f32 to vector<1x128xf32>
    %40 = arith.addf %38, %39 : vector<1x128xf32>
    %41 = math.rsqrt %40 : vector<1x128xf32>
    %c0_18 = arith.constant 0 : index
    %c0_19 = arith.constant 0 : index
    %42 = vector.load %arg3[%c0_18, %c0_19] : memref<1x128xf32, #tpu.memory_space<vmem>>, vector<1x128xf32>
    %43 = arith.mulf %41, %42 : vector<1x128xf32>
    %44 = vector.broadcast %43 : vector<1x128xf32> to vector<16x128xf32>
    %45 = arith.mulf %33, %44 : vector<16x128xf32>
    %c0_20 = arith.constant 0 : index
    %c0_21 = arith.constant 0 : index
    %46 = vector.load %arg4[%c0_20, %c0_21] : memref<1x128xf32, #tpu.memory_space<vmem>>, vector<1x128xf32>
    %47 = vector.broadcast %46 : vector<1x128xf32> to vector<16x128xf32>
    %48 = arith.addf %45, %47 : vector<16x128xf32>
    %cst_22 = arith.constant 0.000000e+00 : f32
    %49 = vector.broadcast %cst_22 : f32 to vector<16x128xf32>
    %50 = arith.maximumf %48, %49 : vector<16x128xf32>
    %51 = tpu.concatenate %26, %50 in 0 : vector<16x128xf32>, vector<16x128xf32> -> vector<32x128xf32>
    %52 = arith.truncf %51 : vector<32x128xf32> to vector<32x128xbf16>
    %c0_23 = arith.constant 0 : index
    %c0_24 = arith.constant 0 : index
    %53 = vector.load %arg5[%c0_23, %c0_24] : memref<32x128xbf16, #tpu.memory_space<vmem>>, vector<32x128xbf16>
    tpu.vector_store %arg5[%c0_23, %c0_24], %52 {strides = array<i32>} : memref<32x128xbf16, #tpu.memory_space<vmem>>, vector<32x128xbf16>,
    return
  }
  func.func @transform_0(%arg0: i32) -> (i32, i32) {
    %c0_i32 = arith.constant 0 : i32
    %c0_i32_0 = arith.constant 0 : i32
    %c0_i32_1 = arith.constant 0 : i32
    return %c0_i32, %c0_i32_0 : i32, i32
  }
  func.func @transform_1(%arg0: i32) -> (i32, i32) {
    %c0_i32 = arith.constant 0 : i32
    %c0_i32_0 = arith.constant 0 : i32
    return %c0_i32, %arg0 : i32, i32
  }
  func.func @transform_2(%arg0: i32) -> (i32, i32) {
    %c0_i32 = arith.constant 0 : i32
    %c0_i32_0 = arith.constant 0 : i32
    return %c0_i32, %arg0 : i32, i32
  }
  func.func @transform_3(%arg0: i32) -> (i32, i32) {
    %c0_i32 = arith.constant 0 : i32
    %c0_i32_0 = arith.constant 0 : i32
    return %c0_i32, %arg0 : i32, i32
  }
  func.func @transform_4(%arg0: i32) -> (i32, i32) {
    %c0_i32 = arith.constant 0 : i32
    %c0_i32_0 = arith.constant 0 : i32
    return %c0_i32, %arg0 : i32, i32
  }
}

</mosaic_0001>

<llo_original>
// kernel: simsiam_forward.7
$region0: #{simsiam_forward.7}
  #allocation0 [shape = 'u32[]', space=smem, size = 0x4, offset = 0x4, fixed_abs, tag = 'smem constant byte address 0x4 - core index']
  #allocation1 [shape = 'u32[144,128]{1,0:T(1,128)}', space=vmem, size = 0x12000, scoped, tag = 'internal scratch']
  %s0 = inlined_call_operand.vmem [shape: bf16[32,256], index: 0, kind: input, shape index: {}]
  %s1 = inlined_call_operand.vmem [shape: bf16[256,128], index: 1, kind: input, shape index: {}]
  %s2 = inlined_call_operand.vmem [shape: f32[1,128], index: 2, kind: input, shape index: {}]
  %s3 = inlined_call_operand.vmem [shape: f32[1,128], index: 3, kind: input, shape index: {}]
  %s4 = inlined_call_operand.vmem [shape: bf16[128,256], index: 4, kind: input, shape index: {}]
  %s5 = inlined_call_operand.vmem [shape: f32[1,256], index: 5, kind: input, shape index: {}]
  %s6 = inlined_call_operand.vmem [shape: f32[32,256], index: 6, kind: output, shape index: {}]
  %s7 = sld [smem:[#allocation0]]
  $region57: #{simsiam_forward.7} parent=0
    _
  %s9 = ssub.s32 1, %s7
  %s10 = scalar_select 0, %s9, %s7
  loop: start=0, step=1, limit=4
  $region2: #{simsiam_forward.7} parent=0 // loop_pre_header
    _
  $region3: #{simsiam_forward.7} parent=0 // loop_header
    %s12 = sphi 0, %s16
    %p13 = scmp.ge.s32.totalorder %s12, 4
    %s22 = sphi 0, %s24
    %s25 = sphi 0, %s22
    %s26 = sphi 0, %s25
    %s42 = sphi 0, %s26
    %s46 = sphi 0, %s46
    %s48 = sphi 0, %s46
    %s49 = sphi 0, %s48
    %s63 = sphi 0, %s49
    %s67 = sphi 0, %s67
    %s69 = sphi 0, %s67
    %s70 = sphi 0, %s69
    %s84 = sphi 0, %s70
    %s88 = sphi 0, %s88
    %s90 = sphi 0, %s88
    %s91 = sphi 0, %s90
    %s105 = sphi 0, %s91
    %s109 = sphi 0, %s109
    %s111 = sphi 0, %s109
    %s112 = sphi 0, %s111
    %s126 = sphi 0, %s112
    %s130 = sphi 0, %s130
    %s132 = sphi 0, %s130
    %s133 = sphi 0, %s132
    %s147 = sphi 0, %s133
    %s153 = sphi 0, %s155
    %s156 = sphi 0, %s153
    %s157 = sphi 0, %s156
    %s173 = sphi 0, %s157
  $region4: #{simsiam_forward.7} parent=0 // loop_header_branch
    %15 = sbr.rel (%p13) target = $region8
  $region5: #{simsiam_forward.7} parent=0 // loop_body
    %s17 = ssub.s32 %s12, 1
    %s18 = ssub.s32 %s12, 2
    %s19 = sadd.s32 %s12, 1
    %s20 = ssub.s32 %s12, %s19
    %p21 = scmp.eq.s32.totalorder %s20, 0
    %s23 = sadd.s32 %s22, 1
    %s24 = scalar_select %p21, %s22, %s23
    %p27 = pneg %p21
    %p28 = scmp.eq.s32.totalorder %s12, 1
    %p29 = por %p27, %p28
    %p30 = scmp.ne.s32.totalorder %s22, %s25
    %p31 = scmp.eq.s32.totalorder %s12, 0
    %p32 = por %p30, %p31
    %p33 = scmp.ne.s32.totalorder %s22, %s25
    %p34 = scmp.eq.s32.totalorder %s17, 1
    %p35 = por %p33, %p34
    %p36 = scmp.ne.s32.totalorder %s25, %s26
    %p37 = scmp.eq.s32.totalorder %s17, 0
    %p38 = por %p36, %p37
    %p39 = scmp.ne.s32.totalorder %s25, %s26
    %p40 = scmp.eq.s32.totalorder %s18, 1
    %p41 = por %p39, %p40
    %p43 = scmp.ne.s32.totalorder %s26, %s42
    %p44 = scmp.eq.s32.totalorder %s18, 0
    %p45 = por %p43, %p44
    %s47 = sadd.s32 %s46, 1
    %p50 = scmp.eq.s32.totalorder %s12, 1
    %p51 = scmp.ne.s32.totalorder %s46, %s48
    %p52 = scmp.eq.s32.totalorder %s12, 0
    %p53 = por %p51, %p52
    %p54 = scmp.ne.s32.totalorder %s46, %s48
    %p55 = scmp.eq.s32.totalorder %s17, 1
    %p56 = por %p54, %p55
    %p57 = scmp.ne.s32.totalorder %s48, %s49
    %p58 = scmp.eq.s32.totalorder %s17, 0
    %p59 = por %p57, %p58
    %p60 = scmp.ne.s32.totalorder %s48, %s49
    %p61 = scmp.eq.s32.totalorder %s18, 1
    %p62 = por %p60, %p61
    %p64 = scmp.ne.s32.totalorder %s49, %s63
    %p65 = scmp.eq.s32.totalorder %s18, 0
    %p66 = por %p64, %p65
    %s68 = sadd.s32 %s67, 1
    %p71 = scmp.eq.s32.totalorder %s12, 1
    %p72 = scmp.ne.s32.totalorder %s67, %s69
    %p73 = scmp.eq.s32.totalorder %s12, 0
    %p74 = por %p72, %p73
    %p75 = scmp.ne.s32.totalorder %s67, %s69
    %p76 = scmp.eq.s32.totalorder %s17, 1
    %p77 = por %p75, %p76
    %p78 = scmp.ne.s32.totalorder %s69, %s70
    %p79 = scmp.eq.s32.totalorder %s17, 0
    %p80 = por %p78, %p79
    %p81 = scmp.ne.s32.totalorder %s69, %s70
    %p82 = scmp.eq.s32.totalorder %s18, 1
    %p83 = por %p81, %p82
    %p85 = scmp.ne.s32.totalorder %s70, %s84
    %p86 = scmp.eq.s32.totalorder %s18, 0
    %p87 = por %p85, %p86
    %s89 = sadd.s32 %s88, 1
    %p92 = scmp.eq.s32.totalorder %s12, 1
    %p93 = scmp.ne.s32.totalorder %s88, %s90
    %p94 = scmp.eq.s32.totalorder %s12, 0
    %p95 = por %p93, %p94
    %p96 = scmp.ne.s32.totalorder %s88, %s90
    %p97 = scmp.eq.s32.totalorder %s17, 1
    %p98 = por %p96, %p97
    %p99 = scmp.ne.s32.totalorder %s90, %s91
    %p100 = scmp.eq.s32.totalorder %s17, 0
    %p101 = por %p99, %p100
    %p102 = scmp.ne.s32.totalorder %s90, %s91
    %p103 = scmp.eq.s32.totalorder %s18, 1
    %p104 = por %p102, %p103
    %p106 = scmp.ne.s32.totalorder %s91, %s105
    %p107 = scmp.eq.s32.totalorder %s18, 0
    %p108 = por %p106, %p107
    %s110 = sadd.s32 %s109, 1
    %p113 = scmp.eq.s32.totalorder %s12, 1
    %p114 = scmp.ne.s32.totalorder %s109, %s111
    %p115 = scmp.eq.s32.totalorder %s12, 0
    %p116 = por %p114, %p115
    %p117 = scmp.ne.s32.totalorder %s109, %s111
    %p118 = scmp.eq.s32.totalorder %s17, 1
    %p119 = por %p117, %p118
    %p120 = scmp.ne.s32.totalorder %s111, %s112
    %p121 = scmp.eq.s32.totalorder %s17, 0
    %p122 = por %p120, %p121
    %p123 = scmp.ne.s32.totalorder %s111, %s112
    %p124 = scmp.eq.s32.totalorder %s18, 1
    %p125 = por %p123, %p124
    %p127 = scmp.ne.s32.totalorder %s112, %s126
    %p128 = scmp.eq.s32.totalorder %s18, 0
    %p129 = por %p127, %p128
    %s131 = sadd.s32 %s130, 1
    %p134 = scmp.eq.s32.totalorder %s12, 1
    %p135 = scmp.ne.s32.totalorder %s130, %s132
    %p136 = scmp.eq.s32.totalorder %s12, 0
    %p137 = por %p135, %p136
    %p138 = scmp.ne.s32.totalorder %s130, %s132
    %p139 = scmp.eq.s32.totalorder %s17, 1
    %p140 = por %p138, %p139
    %p141 = scmp.ne.s32.totalorder %s132, %s133
    %p142 = scmp.eq.s32.totalorder %s17, 0
    %p143 = por %p141, %p142
    %p144 = scmp.ne.s32.totalorder %s132, %s133
    %p145 = scmp.eq.s32.totalorder %s18, 1
    %p146 = por %p144, %p145
    %p148 = scmp.ne.s32.totalorder %s133, %s147
    %p149 = scmp.eq.s32.totalorder %s18, 0
    %p150 = por %p148, %p149
    %s151 = ssub.s32 %s12, %s19
    %p152 = scmp.eq.s32.totalorder %s151, 0
    %s154 = sadd.s32 %s153, 1
    %s155 = scalar_select %p152, %s153, %s154
    %p158 = pneg %p152
    %p159 = scmp.eq.s32.totalorder %s12, 1
    %p160 = por %p158, %p159
    %p161 = scmp.ne.s32.totalorder %s153, %s156
    %p162 = scmp.eq.s32.totalorder %s12, 0
    %p163 = por %p161, %p162
    %p164 = scmp.ne.s32.totalorder %s153, %s156
    %p165 = scmp.eq.s32.totalorder %s17, 1
    %p166 = por %p164, %p165
    %p167 = scmp.ne.s32.totalorder %s156, %s157
    %p168 = scmp.eq.s32.totalorder %s17, 0
    %p169 = por %p167, %p168
    %p170 = scmp.ne.s32.totalorder %s156, %s157
    %p171 = scmp.eq.s32.totalorder %s18, 1
    %p172 = por %p170, %p171
    %p174 = scmp.ne.s32.totalorder %s157, %s173
    %p175 = scmp.eq.s32.totalorder %s18, 0
    %p176 = por %p174, %p175
    %p177 = scmp.le.s32.totalorder 1, %s12
    %p178 = scmp.lt.s32.totalorder %s12, 3
    %p179 = pnand %p177, %p178
    %p180 = pneg %p179
    // Predicated region
    $region9: #{simsiam_forward.7} parent=5 // pred_check
      _
    $region10: #{simsiam_forward.7} parent=5 // pred_check_branch
      %182 = sbr.rel (%p179) target = $region12
    $region11: #{simsiam_forward.7} parent=5 // pred_region
      %s183 = ssub.s32 %s12, 1
      // Predicated region
      $region13: #{simsiam_forward.7} parent=11 // pred_check
        %p184 = pneg %p59
      $region14: #{simsiam_forward.7} parent=11 // pred_check_branch
        %186 = sbr.rel (%p184) target = $region16
      $region15: #{simsiam_forward.7} parent=11 // pred_region
        _
      $region16: #{simsiam_forward.7} parent=11 // pred_fallthru
        _
      // Predicated region
      $region17: #{simsiam_forward.7} parent=11 // pred_check
        %p187 = pneg %p80
      $region18: #{simsiam_forward.7} parent=11 // pred_check_branch
        %189 = sbr.rel (%p187) target = $region20
      $region19: #{simsiam_forward.7} parent=11 // pred_region
        _
      $region20: #{simsiam_forward.7} parent=11 // pred_fallthru
        _
      // Predicated region
      $region21: #{simsiam_forward.7} parent=11 // pred_check
        %p190 = pneg %p101
      $region22: #{simsiam_forward.7} parent=11 // pred_check_branch
        %192 = sbr.rel (%p190) target = $region24
      $region23: #{simsiam_forward.7} parent=11 // pred_region
        _
      $region24: #{simsiam_forward.7} parent=11 // pred_fallthru
        _
      // Predicated region
      $region25: #{simsiam_forward.7} parent=11 // pred_check
        %p193 = pneg %p122
      $region26: #{simsiam_forward.7} parent=11 // pred_check_branch
        %195 = sbr.rel (%p193) target = $region28
      $region27: #{simsiam_forward.7} parent=11 // pred_region
        _
      $region28: #{simsiam_forward.7} parent=11 // pred_fallthru
        _
      // Predicated region
      $region29: #{simsiam_forward.7} parent=11 // pred_check
        %p196 = pneg %p143
      $region30: #{simsiam_forward.7} parent=11 // pred_check_branch
        %198 = sbr.rel (%p196) target = $region32
      $region31: #{simsiam_forward.7} parent=11 // pred_region
        _
      $region32: #{simsiam_forward.7} parent=11 // pred_fallthru
        _
    $region12: #{simsiam_forward.7} parent=5 // pred_fallthru
      _
    %p199 = scmp.lt.s32.totalorder %s12, 2
    // Predicated region
    $region33: #{simsiam_forward.7} parent=5 // pred_check
      %p200 = pneg %p199
    $region34: #{simsiam_forward.7} parent=5 // pred_check_branch
      %202 = sbr.rel (%p200) target = $region36
    $region35: #{simsiam_forward.7} parent=5 // pred_region
      // Predicated region
      $region37: #{simsiam_forward.7} parent=35 // pred_check
        %p203 = pneg %p32
      $region38: #{simsiam_forward.7} parent=35 // pred_check_branch
        %205 = sbr.rel (%p203) target = $region40
      $region39: #{simsiam_forward.7} parent=35 // pred_region
        %s206 = smul.u32 2, %s12
        %p207 = scmp.lt.s32.totalorder %s206, 3
        %s208 = scalar_select %p207, %s206, 3
        %s209 = smul.addr %s208, 2
        %s210 = smul.addr %s209, 4
        %s211 = scalar_lea.vmem %s0, %s210
        %s212 = smul.u32 2, %s12
      $region40: #{simsiam_forward.7} parent=35 // pred_fallthru
        _
    $region36: #{simsiam_forward.7} parent=5 // pred_fallthru
      _
    %p213 = scmp.le.s32.totalorder 1, %s12
    %p214 = scmp.lt.s32.totalorder %s12, 3
    %p215 = pnand %p213, %p214
    %p216 = pneg %p215
    // Predicated region
    $region41: #{simsiam_forward.7} parent=5 // pred_check
      _
    $region42: #{simsiam_forward.7} parent=5 // pred_check_branch
      %218 = sbr.rel (%p215) target = $region44
    $region43: #{simsiam_forward.7} parent=5 // pred_region
      %s219 = ssub.s32 %s12, 1
      %s220 = smul.u32 2, %s17
      %p221 = scmp.lt.s32.totalorder %s220, 3
      %s222 = scalar_select %p221, %s220, 3
      %s223 = smul.addr %s222, 2
      %s224 = smul.addr %s223, 4
      %s225 = scalar_lea.vmem %s0, %s224
      %p226 = pneg %p38
      %p227 = pneg %p35
      %p228 = pneg %p59
      %p229 = pneg %p56
      %p230 = pneg %p80
      %p231 = pneg %p77
      %p232 = pneg %p101
      %p233 = pneg %p98
      %p234 = pneg %p122
      %p235 = pneg %p119
      %p236 = pneg %p143
      %p237 = pneg %p140
      %p238 = pneg %p169
      %p239 = pneg %p166
      %s240 = smul.u32 2, %s17
      %p241 = scmp.lt.s32.totalorder %s240, 3
      %s242 = scalar_select %p241, %s240, 3
      %s243 = smul.addr %s242, 2
      %s244 = smul.addr %s243, 8
      %s245 = scalar_lea.vmem %s6, %s244
      %s246 = smul.u32 2, %s17
      %p247 = scmp.lt.s32.totalorder %s246, 3
      %s248 = scalar_select %p247, %s246, 3
      %s249 = smul.addr %s248, 2
      %s250 = smul.addr %s249, 4
      %s251 = scalar_lea.vmem %s0, %s250
      %s252 = smul.u32 2, %s17
      %s253 = smul.u32 2, %s17
      %p254 = scmp.lt.s32.totalorder %s253, 3
      %s255 = scalar_select %p254, %s253, 3
      %s256 = smul.addr %s255, 2
      %s257 = smul.addr %s256, 8
      %s258 = scalar_lea.vmem %s6, %s257
      %s259 = smul.u32 2, %s17
      %v261 = vld [vmem:[%s251] sm:$0xff]
      %v262 = vld [vmem:[%s251 + $0x8] sm:$0xff]
      %v263 = vld [vmem:[%s1] sm:$0xf]
      %v264 = vld [vmem:[%s1 + $0x4] sm:$0xf]
      %v265 = vld [vmem:[%s1 + $0x8] sm:$0xf]
      %v266 = vld [vmem:[%s1 + $0xc] sm:$0xf]
      %v267 = vld [vmem:[%s1 + $0x10] sm:$0xf]
      %v268 = vld [vmem:[%s1 + $0x14] sm:$0xf]
      %v269 = vld [vmem:[%s1 + $0x18] sm:$0xf]
      %v270 = vld [vmem:[%s1 + $0x1c] sm:$0xf]
      %v271 = vld [vmem:[%s1 + $0x20] sm:$0xf]
      %v272 = vld [vmem:[%s1 + $0x24] sm:$0xf]
      %v273 = vld [vmem:[%s1 + $0x28] sm:$0xf]
      %v274 = vld [vmem:[%s1 + $0x2c] sm:$0xf]
      %v275 = vld [vmem:[%s1 + $0x30] sm:$0xf]
      %v276 = vld [vmem:[%s1 + $0x34] sm:$0xf]
      %v277 = vld [vmem:[%s1 + $0x38] sm:$0xf]
      %v278 = vld [vmem:[%s1 + $0x3c] sm:$0xf]
      %v279 = vld [vmem:[%s1 + $0x40] sm:$0xf]
      %v280 = vld [vmem:[%s1 + $0x44] sm:$0xf]
      %v281 = vld [vmem:[%s1 + $0x48] sm:$0xf]
      %v282 = vld [vmem:[%s1 + $0x4c] sm:$0xf]
      %v283 = vld [vmem:[%s1 + $0x50] sm:$0xf]
      %v284 = vld [vmem:[%s1 + $0x54] sm:$0xf]
      %v285 = vld [vmem:[%s1 + $0x58] sm:$0xf]
      %v286 = vld [vmem:[%s1 + $0x5c] sm:$0xf]
      %v287 = vld [vmem:[%s1 + $0x60] sm:$0xf]
      %v288 = vld [vmem:[%s1 + $0x64] sm:$0xf]
      %v289 = vld [vmem:[%s1 + $0x68] sm:$0xf]
      %v290 = vld [vmem:[%s1 + $0x6c] sm:$0xf]
      %v291 = vld [vmem:[%s1 + $0x70] sm:$0xf]
      %v292 = vld [vmem:[%s1 + $0x74] sm:$0xf]
      %v293 = vld [vmem:[%s1 + $0x78] sm:$0xf]
      %v294 = vld [vmem:[%s1 + $0x7c] sm:$0xf]
      %v297 = vunpack.c.l.b16 %v261
      %v298 = vunpack.c.h.b16 %v261
      %v299 = vunpack.c.l.b16 %v262
      %v300 = vunpack.c.h.b16 %v262
      %v301 = vpack.c.b16 %v299, %v297
      %v302 = vpack.c.b16 %v300, %v298
      %v337 = vunpack.c.l.b16 %v263
      %v338 = vunpack.c.l.b16 %v264
      %v339 = vunpack.c.l.b16 %v265
      %v340 = vunpack.c.l.b16 %v266
      %v341 = vunpack.c.l.b16 %v267
      %v342 = vunpack.c.l.b16 %v268
      %v343 = vunpack.c.l.b16 %v269
      %v344 = vunpack.c.l.b16 %v270
      %v345 = vunpack.c.l.b16 %v271
      %v346 = vunpack.c.l.b16 %v272
      %v347 = vunpack.c.l.b16 %v273
      %v348 = vunpack.c.l.b16 %v274
      %v349 = vunpack.c.l.b16 %v275
      %v350 = vunpack.c.l.b16 %v276
      %v351 = vunpack.c.l.b16 %v277
      %v352 = vunpack.c.l.b16 %v278
      %v353 = vunpack.c.l.b16 %v279
      %v354 = vunpack.c.l.b16 %v280
      %v355 = vunpack.c.l.b16 %v281
      %v356 = vunpack.c.l.b16 %v282
      %v357 = vunpack.c.l.b16 %v283
      %v358 = vunpack.c.l.b16 %v284
      %v359 = vunpack.c.l.b16 %v285
      %v360 = vunpack.c.l.b16 %v286
      %v361 = vunpack.c.l.b16 %v287
      %v362 = vunpack.c.l.b16 %v288
      %v363 = vunpack.c.l.b16 %v289
      %v364 = vunpack.c.l.b16 %v290
      %v365 = vunpack.c.l.b16 %v291
      %v366 = vunpack.c.l.b16 %v292
      %v367 = vunpack.c.l.b16 %v293
      %v368 = vunpack.c.l.b16 %v294
      %v369 = vpack.c.b16 %v338, %v337
      %v370 = vpack.c.b16 %v340, %v339
      %v371 = vpack.c.b16 %v342, %v341
      %v372 = vpack.c.b16 %v344, %v343
      %v373 = vpack.c.b16 %v346, %v345
      %v374 = vpack.c.b16 %v348, %v347
      %v375 = vpack.c.b16 %v350, %v349
      %v376 = vpack.c.b16 %v352, %v351
      %v377 = vpack.c.b16 %v354, %v353
      %v378 = vpack.c.b16 %v356, %v355
      %v379 = vpack.c.b16 %v358, %v357
      %v380 = vpack.c.b16 %v360, %v359
      %v381 = vpack.c.b16 %v362, %v361
      %v382 = vpack.c.b16 %v364, %v363
      %v383 = vpack.c.b16 %v366, %v365
      %v384 = vpack.c.b16 %v368, %v367
      %401 = vmatprep.subr.bf16.mxu0 0
      %402 = vmatpush1.bf16.msra.mxu0 %v376
      %403 = vmatprep.subr.bf16.mxu0 0
      %404 = vmatpush1.bf16.msra.mxu0 %v375
      %405 = vmatprep.subr.bf16.mxu0 0
      %406 = vmatpush1.bf16.msra.mxu0 %v374
      %407 = vmatprep.subr.bf16.mxu0 0
      %408 = vmatpush1.bf16.msra.mxu0 %v373
      %409 = vmatprep.subr.bf16.mxu0 0
      %410 = vmatpush1.bf16.msra.mxu0 %v372
      %411 = vmatprep.subr.bf16.mxu0 0
      %412 = vmatpush1.bf16.msra.mxu0 %v371
      %413 = vmatprep.subr.bf16.mxu0 0
      %414 = vmatpush1.bf16.msra.mxu0 %v370
      %415 = vmatprep.subr.bf16.mxu0 0
      %416 = vmatpush1.bf16.msra.mxu0 %v369
      %417 = vmatprep.subr.bf16.mxu0 0
      %418 = vmatpush2.bf16.msra.mxu0 %v384
      %419 = vmatprep.subr.bf16.mxu0 0
      %420 = vmatpush2.bf16.msra.mxu0 %v383
      %421 = vmatprep.subr.bf16.mxu0 0
      %422 = vmatpush2.bf16.msra.mxu0 %v382
      %423 = vmatprep.subr.bf16.mxu0 0
      %424 = vmatpush2.bf16.msra.mxu0 %v381
      %425 = vmatprep.subr.bf16.mxu0 0
      %426 = vmatpush2.bf16.msra.mxu0 %v380
      %427 = vmatprep.subr.bf16.mxu0 0
      %428 = vmatpush2.bf16.msra.mxu0 %v379
      %429 = vmatprep.subr.bf16.mxu0 0
      %430 = vmatpush2.bf16.msra.mxu0 %v378
      %431 = vmatprep.subr.bf16.mxu0 0
      %432 = vmatpush2.bf16.msra.mxu0 %v377
      %433 = vmatprep.mubr.bf16.mxu0 %v302
      %434 = vmatmul.mubr.bf16.gmra.mxu0 %v301
      %v435 = vpop.f32.mrf.mxu0
      %v436 = vadd.f32 0.0, %v435
      %v437 = vpop.f32.mrf.mxu0
      %v438 = vpop.f32.mrf.mxu0
      %v439 = vadd.f32 0.0, %v438
      %v440 = vpop.f32.mrf.mxu0
      %441 = vdwg.mxu0
      %v442 = vadd.f32 %v436, %v439
      %v443 = vrot.slane %v442, 4
      %v444 = vadd.f32 %v442, %v443
      %v445 = vrot.slane %v444, 2
      %v446 = vadd.f32 %v444, %v445
      %v447 = vrot.slane %v446, 1
      %v448 = vadd.f32 %v446, %v447
      %v449 = vrcp.pop 16.0
      %v450 = vmul.f32 %v448, %v449
      %v451 = vsub.f32 %v436, %v450
      %v452 = vsub.f32 %v439, %v450
      %v453 = vmul.f32 %v451, %v451
      %v454 = vmul.f32 %v452, %v452
      %v455 = vadd.f32 %v453, %v454
      %v456 = vrot.slane %v455, 4
      %v457 = vadd.f32 %v455, %v456
      %v458 = vrot.slane %v457, 2
      %v459 = vadd.f32 %v457, %v458
      %v460 = vrot.slane %v459, 1
      %v461 = vadd.f32 %v459, %v460
      %v462 = vmul.f32 %v461, %v449
      %v463 = vadd.f32 %v462, 1e-05
      %v464 = vrsqrt.pop %v463
      %v465 = vld [vmem:[%s2] sm:$0x1]
      %v466 = vmul.f32 %v464, %v465
      %v467 = vlaneseq
      %v468 = vshrl.u32 %v467, 7
      %v469 = vsub.s32 0, %v468
      %v470 = vrot.slane %v466, %v469
      %v471 = vmul.f32 %v451, %v470
      %v472 = vmul.f32 %v452, %v470
      %v473 = vld [vmem:[%s3] sm:$0x1]
      %v475 = vlaneseq
      %v476 = vshrl.u32 %v475, 7
      %v477 = vsub.s32 0, %v476
      %v478 = vrot.slane %v473, %v477
      %v480 = vadd.f32 %v471, %v478
      %v481 = vadd.f32 %v472, %v478
      %v482 = vmax.f32 %v480, 0.0
      %v483 = vmax.f32 %v481, 0.0
      %v484 = vpack.c.bf16 %v483, %v482
      %v485 = vld [vmem:[%s4] sm:$0xff]
      %v486 = vld [vmem:[%s4 + $0x8] sm:$0xff]
      %v487 = vld [vmem:[%s4 + $0x10] sm:$0xff]
      %v488 = vld [vmem:[%s4 + $0x18] sm:$0xff]
      %v489 = vld [vmem:[%s4 + $0x20] sm:$0xff]
      %v490 = vld [vmem:[%s4 + $0x28] sm:$0xff]
      %v491 = vld [vmem:[%s4 + $0x30] sm:$0xff]
      %v492 = vld [vmem:[%s4 + $0x38] sm:$0xff]
      %v493 = vld [vmem:[%s4 + $0x40] sm:$0xff]
      %v494 = vld [vmem:[%s4 + $0x48] sm:$0xff]
      %v495 = vld [vmem:[%s4 + $0x50] sm:$0xff]
      %v496 = vld [vmem:[%s4 + $0x58] sm:$0xff]
      %v497 = vld [vmem:[%s4 + $0x60] sm:$0xff]
      %v498 = vld [vmem:[%s4 + $0x68] sm:$0xff]
      %v499 = vld [vmem:[%s4 + $0x70] sm:$0xff]
      %v500 = vld [vmem:[%s4 + $0x78] sm:$0xff]
      %v501 = vld [vmem:[%s5] sm:$0x3]
      %v503 = vlaneseq
      %v504 = vshrl.u32 %v503, 7
      %v505 = vsub.s32 0, %v504
      %v506 = vrot.slane %v501, %v505
      %v507 = vlaneseq
      %v508 = vshrl.u32 %v507, 7
      %v509 = vsub.s32 1, %v508
      %v510 = vrot.slane %v501, %v509
      %v529 = vunpack.c.l.b16 %v485
      %v530 = vunpack.c.h.b16 %v485
      %v531 = vunpack.c.l.b16 %v486
      %v532 = vunpack.c.h.b16 %v486
      %v533 = vunpack.c.l.b16 %v487
      %v534 = vunpack.c.h.b16 %v487
      %v535 = vunpack.c.l.b16 %v488
      %v536 = vunpack.c.h.b16 %v488
      %v537 = vunpack.c.l.b16 %v489
      %v538 = vunpack.c.h.b16 %v489
      %v539 = vunpack.c.l.b16 %v490
      %v540 = vunpack.c.h.b16 %v490
      %v541 = vunpack.c.l.b16 %v491
      %v542 = vunpack.c.h.b16 %v491
      %v543 = vunpack.c.l.b16 %v492
      %v544 = vunpack.c.h.b16 %v492
      %v545 = vunpack.c.l.b16 %v493
      %v546 = vunpack.c.h.b16 %v493
      %v547 = vunpack.c.l.b16 %v494
      %v548 = vunpack.c.h.b16 %v494
      %v549 = vunpack.c.l.b16 %v495
      %v550 = vunpack.c.h.b16 %v495
      %v551 = vunpack.c.l.b16 %v496
      %v552 = vunpack.c.h.b16 %v496
      %v553 = vunpack.c.l.b16 %v497
      %v554 = vunpack.c.h.b16 %v497
      %v555 = vunpack.c.l.b16 %v498
      %v556 = vunpack.c.h.b16 %v498
      %v557 = vunpack.c.l.b16 %v499
      %v558 = vunpack.c.h.b16 %v499
      %v559 = vunpack.c.l.b16 %v500
      %v560 = vunpack.c.h.b16 %v500
      %v561 = vpack.c.b16 %v531, %v529
      %v562 = vpack.c.b16 %v532, %v530
      %v563 = vpack.c.b16 %v535, %v533
      %v564 = vpack.c.b16 %v536, %v534
      %v565 = vpack.c.b16 %v539, %v537
      %v566 = vpack.c.b16 %v540, %v538
      %v567 = vpack.c.b16 %v543, %v541
      %v568 = vpack.c.b16 %v544, %v542
      %v569 = vpack.c.b16 %v547, %v545
      %v570 = vpack.c.b16 %v548, %v546
      %v571 = vpack.c.b16 %v551, %v549
      %v572 = vpack.c.b16 %v552, %v550
      %v573 = vpack.c.b16 %v555, %v553
      %v574 = vpack.c.b16 %v556, %v554
      %v575 = vpack.c.b16 %v559, %v557
      %v576 = vpack.c.b16 %v560, %v558
      %593 = vmatprep.subr.bf16.mxu0 %v576
      %594 = vmatpush1.bf16.msra.mxu0 %v575
      %595 = vmatprep.subr.bf16.mxu0 %v574
      %596 = vmatpush1.bf16.msra.mxu0 %v573
      %597 = vmatprep.subr.bf16.mxu0 %v572
      %598 = vmatpush1.bf16.msra.mxu0 %v571
      %599 = vmatprep.subr.bf16.mxu0 %v570
      %600 = vmatpush1.bf16.msra.mxu0 %v569
      %601 = vmatprep.subr.bf16.mxu0 %v568
      %602 = vmatpush1.bf16.msra.mxu0 %v567
      %603 = vmatprep.subr.bf16.mxu0 %v566
      %604 = vmatpush1.bf16.msra.mxu0 %v565
      %605 = vmatprep.subr.bf16.mxu0 %v564
      %606 = vmatpush1.bf16.msra.mxu0 %v563
      %607 = vmatprep.subr.bf16.mxu0 %v562
      %608 = vmatpush1.bf16.msra.mxu0 %v561
      %609 = vmatprep.subr.bf16.mxu0 0
      %610 = vmatpush2.bf16.msra.mxu0 0
      %611 = vmatprep.subr.bf16.mxu0 0
      %612 = vmatpush2.bf16.msra.mxu0 0
      %613 = vmatprep.subr.bf16.mxu0 0
      %614 = vmatpush2.bf16.msra.mxu0 0
      %615 = vmatprep.subr.bf16.mxu0 0
      %616 = vmatpush2.bf16.msra.mxu0 0
      %617 = vmatprep.subr.bf16.mxu0 0
      %618 = vmatpush2.bf16.msra.mxu0 0
      %619 = vmatprep.subr.bf16.mxu0 0
      %620 = vmatpush2.bf16.msra.mxu0 0
      %621 = vmatprep.subr.bf16.mxu0 0
      %622 = vmatpush2.bf16.msra.mxu0 0
      %623 = vmatprep.subr.bf16.mxu0 0
      %624 = vmatpush2.bf16.msra.mxu0 0
      %625 = vmatprep.mubr.bf16.mxu0 0
      %626 = vmatmul.mubr.bf16.gmra.mxu0 %v484
      %v627 = vpop.f32.mrf.mxu0
      %v628 = vadd.f32 %v506, %v627
      %v629 = vpop.f32.mrf.mxu0
      %v630 = vadd.f32 %v510, %v629
      %v631 = vpop.f32.mrf.mxu0
      %v632 = vadd.f32 %v506, %v631
      %v633 = vpop.f32.mrf.mxu0
      %v634 = vadd.f32 %v510, %v633
      %635 = vdwg.mxu0
      %636 = vst [vmem:[%s258] sm:$0xff] %v628
      %637 = vst [vmem:[%s258 + $0x8] sm:$0xff] %v630
      %638 = vst [vmem:[%s258 + $0x10] sm:$0xff] %v632
      %639 = vst [vmem:[%s258 + $0x18] sm:$0xff] %v634
      %s640 = smul.u32 2, %s17
      %p641 = scmp.lt.s32.totalorder %s640, 3
      %s642 = scalar_select %p641, %s640, 3
      %s643 = smul.addr %s642, 2
      %s644 = smul.addr %s643, 8
      %s645 = scalar_lea.vmem %s6, %s644
      // Predicated region
      $region45: #{simsiam_forward.7} parent=43 // pred_check
        %p646 = pneg %p166
      $region46: #{simsiam_forward.7} parent=43 // pred_check_branch
        %648 = sbr.rel (%p646) target = $region48
      $region47: #{simsiam_forward.7} parent=43 // pred_region
        %s649 = smul.u32 2, %s17
      $region48: #{simsiam_forward.7} parent=43 // pred_fallthru
        _
    $region44: #{simsiam_forward.7} parent=5 // pred_fallthru
      _
    %p650 = scmp.le.s32.totalorder 2, %s12
    // Predicated region
    $region49: #{simsiam_forward.7} parent=5 // pred_check
      %p651 = pneg %p650
    $region50: #{simsiam_forward.7} parent=5 // pred_check_branch
      %653 = sbr.rel (%p651) target = $region52
    $region51: #{simsiam_forward.7} parent=5 // pred_region
      %s654 = ssub.s32 %s12, 2
      // Predicated region
      $region53: #{simsiam_forward.7} parent=51 // pred_check
        %p655 = pneg %p172
      $region54: #{simsiam_forward.7} parent=51 // pred_check_branch
        %657 = sbr.rel (%p655) target = $region56
      $region55: #{simsiam_forward.7} parent=51 // pred_region
        %s658 = smul.u32 2, %s18
        %p659 = scmp.lt.s32.totalorder %s658, 3
        %s660 = scalar_select %p659, %s658, 3
        %s661 = smul.addr %s660, 2
        %s662 = smul.addr %s661, 8
        %s663 = scalar_lea.vmem %s6, %s662
      $region56: #{simsiam_forward.7} parent=51 // pred_fallthru
        _
    $region52: #{simsiam_forward.7} parent=5 // pred_fallthru
      _
  $region6: #{simsiam_forward.7} parent=0 // loop_footer
    %s16 = sadd.s32 1, %s12
  $region7: #{simsiam_forward.7} parent=0 // loop_footer_branch
    %11 = sbr.rel target = $region3
  $region8: #{simsiam_forward.7} parent=0 // loop_exit
    _

// kernel: simsiam_forward.6
$region0: #{simsiam_forward.6}
  #allocation0 [shape = 'u32[]', space=smem, size = 0x4, offset = 0x4, fixed_abs, tag = 'smem constant byte address 0x4 - core index']
  #allocation1 [shape = 'u32[144,128]{1,0:T(1,128)}', space=vmem, size = 0x12000, scoped, tag = 'internal scratch']
  %s0 = inlined_call_operand.vmem [shape: bf16[32,256], index: 0, kind: input, shape index: {}]
  %s1 = inlined_call_operand.vmem [shape: bf16[256,256], index: 1, kind: input, shape index: {}]
  %s2 = inlined_call_operand.vmem [shape: f32[32,256], index: 2, kind: output, shape index: {0}]
  %s3 = inlined_call_operand.vmem [shape: bf16[32,256], index: 3, kind: output, shape index: {1}]
  %4 = xla_tuple %s2, %s3
  %s5 = sld [smem:[#allocation0]]
  $region161: #{simsiam_forward.6} parent=0
    _
  %s7 = ssub.s32 1, %s5
  %s8 = scalar_select 0, %s7, %s5
  $region1: #{simsiam_forward.6} parent=0
    #allocation2 [shape = 'u8[131072]{0}', space=vmem, size = 0x20000, scoped, tag = 'input window, operand 1']
    #allocation3 [shape = 'u8[32768]{0}', space=vmem, size = 0x8000, scoped, tag = 'output window, operand 0']
    #allocation4 [shape = 'u8[16384]{0}', space=vmem, size = 0x4000, scoped, tag = 'output window, operand 1']
    loop: start=0, step=1, limit=4
    $region2: #{simsiam_forward.6} parent=1 // loop_pre_header
      _
    $region3: #{simsiam_forward.6} parent=1 // loop_header
      %s10 = sphi 0, %s14
      %p11 = scmp.ge.s32.totalorder %s10, 4
      %s18 = sphi 0, %s18
      %s20 = sphi 0, %s18
      %s21 = sphi 0, %s20
      %s35 = sphi 0, %s21
      %s41 = sphi 0, %s43
      %s44 = sphi 0, %s41
      %s45 = sphi 0, %s44
      %s61 = sphi 0, %s45
      %s67 = sphi 0, %s69
      %s70 = sphi 0, %s67
      %s71 = sphi 0, %s70
      %s87 = sphi 0, %s71
      %s93 = sphi 0, %s95
      %s96 = sphi 0, %s93
      %s97 = sphi 0, %s96
      %s113 = sphi 0, %s97
    $region4: #{simsiam_forward.6} parent=1 // loop_header_branch
      %13 = sbr.rel (%p11) target = $region8
    $region5: #{simsiam_forward.6} parent=1 // loop_body
      %s15 = ssub.s32 %s10, 1
      %s16 = ssub.s32 %s10, 2
      %s17 = sadd.s32 %s10, 1
      %s19 = sadd.s32 %s18, 1
      %p22 = scmp.eq.s32.totalorder %s10, 1
      %p23 = scmp.ne.s32.totalorder %s18, %s20
      %p24 = scmp.eq.s32.totalorder %s10, 0
      %p25 = por %p23, %p24
      %p26 = scmp.ne.s32.totalorder %s18, %s20
      %p27 = scmp.eq.s32.totalorder %s15, 1
      %p28 = por %p26, %p27
      %p29 = scmp.ne.s32.totalorder %s20, %s21
      %p30 = scmp.eq.s32.totalorder %s15, 0
      %p31 = por %p29, %p30
      %p32 = scmp.ne.s32.totalorder %s20, %s21
      %p33 = scmp.eq.s32.totalorder %s16, 1
      %p34 = por %p32, %p33
      %p36 = scmp.ne.s32.totalorder %s21, %s35
      %p37 = scmp.eq.s32.totalorder %s16, 0
      %p38 = por %p36, %p37
      %s39 = ssub.s32 %s10, %s17
      %p40 = scmp.eq.s32.totalorder %s39, 0
      %s42 = sadd.s32 %s41, 1
      %s43 = scalar_select %p40, %s41, %s42
      %p46 = pneg %p40
      %p47 = scmp.eq.s32.totalorder %s10, 1
      %p48 = por %p46, %p47
      %p49 = scmp.ne.s32.totalorder %s41, %s44
      %p50 = scmp.eq.s32.totalorder %s10, 0
      %p51 = por %p49, %p50
      %p52 = scmp.ne.s32.totalorder %s41, %s44
      %p53 = scmp.eq.s32.totalorder %s15, 1
      %p54 = por %p52, %p53
      %p55 = scmp.ne.s32.totalorder %s44, %s45
      %p56 = scmp.eq.s32.totalorder %s15, 0
      %p57 = por %p55, %p56
      %p58 = scmp.ne.s32.totalorder %s44, %s45
      %p59 = scmp.eq.s32.totalorder %s16, 1
      %p60 = por %p58, %p59
      %p62 = scmp.ne.s32.totalorder %s45, %s61
      %p63 = scmp.eq.s32.totalorder %s16, 0
      %p64 = por %p62, %p63
      %s65 = ssub.s32 %s10, %s17
      %p66 = scmp.eq.s32.totalorder %s65, 0
      %s68 = sadd.s32 %s67, 1
      %s69 = scalar_select %p66, %s67, %s68
      %p72 = pneg %p66
      %p73 = scmp.eq.s32.totalorder %s10, 1
      %p74 = por %p72, %p73
      %p75 = scmp.ne.s32.totalorder %s67, %s70
      %p76 = scmp.eq.s32.totalorder %s10, 0
      %p77 = por %p75, %p76
      %p78 = scmp.ne.s32.totalorder %s67, %s70
      %p79 = scmp.eq.s32.totalorder %s15, 1
      %p80 = por %p78, %p79
      %p81 = scmp.ne.s32.totalorder %s70, %s71
      %p82 = scmp.eq.s32.totalorder %s15, 0
      %p83 = por %p81, %p82
      %p84 = scmp.ne.s32.totalorder %s70, %s71
      %p85 = scmp.eq.s32.totalorder %s16, 1
      %p86 = por %p84, %p85
      %p88 = scmp.ne.s32.totalorder %s71, %s87
      %p89 = scmp.eq.s32.totalorder %s16, 0
      %p90 = por %p88, %p89
      %s91 = ssub.s32 %s10, %s17
      %p92 = scmp.eq.s32.totalorder %s91, 0
      %s94 = sadd.s32 %s93, 1
      %s95 = scalar_select %p92, %s93, %s94
      %p98 = pneg %p92
      %p99 = scmp.eq.s32.totalorder %s10, 1
      %p100 = por %p98, %p99
      %p101 = scmp.ne.s32.totalorder %s93, %s96
      %p102 = scmp.eq.s32.totalorder %s10, 0
      %p103 = por %p101, %p102
      %p104 = scmp.ne.s32.totalorder %s93, %s96
      %p105 = scmp.eq.s32.totalorder %s15, 1
      %p106 = por %p104, %p105
      %p107 = scmp.ne.s32.totalorder %s96, %s97
      %p108 = scmp.eq.s32.totalorder %s15, 0
      %p109 = por %p107, %p108
      %p110 = scmp.ne.s32.totalorder %s96, %s97
      %p111 = scmp.eq.s32.totalorder %s16, 1
      %p112 = por %p110, %p111
      %p114 = scmp.ne.s32.totalorder %s97, %s113
      %p115 = scmp.eq.s32.totalorder %s16, 0
      %p116 = por %p114, %p115
      %p117 = scmp.le.s32.totalorder 1, %s10
      %p118 = scmp.lt.s32.totalorder %s10, 3
      %p119 = pnand %p117, %p118
      %p120 = pneg %p119
      // Predicated region
      $region9: #{simsiam_forward.6} parent=5 // pred_check
        _
      $region10: #{simsiam_forward.6} parent=5 // pred_check_branch
        %122 = sbr.rel (%p119) target = $region12
      $region11: #{simsiam_forward.6} parent=5 // pred_region
        %s123 = ssub.s32 %s10, 1
        // Predicated region
        $region13: #{simsiam_forward.6} parent=11 // pred_check
          %p124 = pneg %p31
        $region14: #{simsiam_forward.6} parent=11 // pred_check_branch
          %126 = sbr.rel (%p124) target = $region16
        $region15: #{simsiam_forward.6} parent=11 // pred_region
          _
        $region16: #{simsiam_forward.6} parent=11 // pred_fallthru
          _
      $region12: #{simsiam_forward.6} parent=5 // pred_fallthru
        _
      %p127 = scmp.lt.s32.totalorder %s10, 2
      // Predicated region
      $region17: #{simsiam_forward.6} parent=5 // pred_check
        %p128 = pneg %p127
      $region18: #{simsiam_forward.6} parent=5 // pred_check_branch
        %130 = sbr.rel (%p128) target = $region20
      $region19: #{simsiam_forward.6} parent=5 // pred_region
        // Predicated region
        $region21: #{simsiam_forward.6} parent=19 // pred_check
          %p131 = pneg %p51
        $region22: #{simsiam_forward.6} parent=19 // pred_check_branch
          %133 = sbr.rel (%p131) target = $region24
        $region23: #{simsiam_forward.6} parent=19 // pred_region
          %s134 = sand.u32 %s41, 1
          %s135 = sand.u32 %s41, 1
          %s136 = smul.addr %s135, 128
          %s137 = scalar_lea.vmem [#allocation2], %s136
          %s138 = smul.addr %s10, 4
          %s139 = scalar_lea.vmem %s1, %s138
          // Predicated region
          $region25: #{simsiam_forward.6} parent=23 // pred_check
            _
          $region26: #{simsiam_forward.6} parent=23 // pred_check_branch
            %141 = sbr.rel (0) target = $region28
          $region27: #{simsiam_forward.6} parent=23 // pred_region
            // Predicated region
            $region29: #{simsiam_forward.6} parent=27 // pred_check
              _
            $region30: #{simsiam_forward.6} parent=27 // pred_check_branch
              %143 = sbr.rel target = $region32
            $region31: #{simsiam_forward.6} parent=27 // pred_region
              // Predicated region
              $region44: #{simsiam_forward.6} parent=31 // pred_check
                _
              $region45: #{simsiam_forward.6} parent=31 // pred_check_branch
                %221 = sbr.rel (0) target = $region47
              $region46: #{simsiam_forward.6} parent=31 // pred_region
                loop: start=0, step=1, limit=1
                $region48: #{simsiam_forward.6} parent=46 // loop_pre_header
                  _
                $region49: #{simsiam_forward.6} parent=46 // loop_header
                  %s223 = sphi 0, %s227
                  %p224 = scmp.ge.s32.totalorder %s223, 1
                  %s228 = sphi %s139, %s139
                  %s229 = sphi %s137, %s137
                $region50: #{simsiam_forward.6} parent=46 // loop_header_branch
                  %226 = sbr.rel (%p224) target = $region54
                $region51: #{simsiam_forward.6} parent=46 // loop_body
                  _
                $region52: #{simsiam_forward.6} parent=46 // loop_footer
                  %s227 = sadd.s32 1, %s223
                $region53: #{simsiam_forward.6} parent=46 // loop_footer_branch
                  %222 = sbr.rel target = $region49
                $region54: #{simsiam_forward.6} parent=46 // loop_exit
                  _
                %s231 = ssub.s32 16, 1
                loop: start=0, step=1, limit=1
                $region55: #{simsiam_forward.6} parent=46 // loop_pre_header
                  _
                $region56: #{simsiam_forward.6} parent=46 // loop_header
                  %s233 = sphi 0, %s237
                  %p234 = scmp.ge.s32.totalorder %s233, 1
                  %s238 = sphi %s139, %s139
                  %s239 = sphi %s137, %s137
                $region57: #{simsiam_forward.6} parent=46 // loop_header_branch
                  %236 = sbr.rel (%p234) target = $region61
                $region58: #{simsiam_forward.6} parent=46 // loop_body
                  %v240 = vld [vmem:[%s238] sm:%s231]
                  %241 = vst [vmem:[%s239] sm:%s231] %v240
                  %v242 = vld [vmem:[%s238 + $0x8] sm:%s231]
                  %243 = vst [vmem:[%s239 + $0x4] sm:%s231] %v242
                  %v244 = vld [vmem:[%s238 + $0x10] sm:%s231]
                  %245 = vst [vmem:[%s239 + $0x8] sm:%s231] %v244
                  %v246 = vld [vmem:[%s238 + $0x18] sm:%s231]
                  %247 = vst [vmem:[%s239 + $0xc] sm:%s231] %v246
                  %v248 = vld [vmem:[%s238 + $0x20] sm:%s231]
                  %249 = vst [vmem:[%s239 + $0x10] sm:%s231] %v248
                  %v250 = vld [vmem:[%s238 + $0x28] sm:%s231]
                  %251 = vst [vmem:[%s239 + $0x14] sm:%s231] %v250
                  %v252 = vld [vmem:[%s238 + $0x30] sm:%s231]
                  %253 = vst [vmem:[%s239 + $0x18] sm:%s231] %v252
                  %v254 = vld [vmem:[%s238 + $0x38] sm:%s231]
                  %255 = vst [vmem:[%s239 + $0x1c] sm:%s231] %v254
                  %v256 = vld [vmem:[%s238 + $0x40] sm:%s231]
                  %257 = vst [vmem:[%s239 + $0x20] sm:%s231] %v256
                  %v258 = vld [vmem:[%s238 + $0x48] sm:%s231]
                  %259 = vst [vmem:[%s239 + $0x24] sm:%s231] %v258
                  %v260 = vld [vmem:[%s238 + $0x50] sm:%s231]
                  %261 = vst [vmem:[%s239 + $0x28] sm:%s231] %v260
                  %v262 = vld [vmem:[%s238 + $0x58] sm:%s231]
                  %263 = vst [vmem:[%s239 + $0x2c] sm:%s231] %v262
                  %v264 = vld [vmem:[%s238 + $0x60] sm:%s231]
                  %265 = vst [vmem:[%s239 + $0x30] sm:%s231] %v264
                  %v266 = vld [vmem:[%s238 + $0x68] sm:%s231]
                  %267 = vst [vmem:[%s239 + $0x34] sm:%s231] %v266
                  %v268 = vld [vmem:[%s238 + $0x70] sm:%s231]
                  %269 = vst [vmem:[%s239 + $0x38] sm:%s231] %v268
                  %v270 = vld [vmem:[%s238 + $0x78] sm:%s231]
                  %271 = vst [vmem:[%s239 + $0x3c] sm:%s231] %v270
                  %v272 = vld [vmem:[%s238 + $0x80] sm:%s231]
                  %273 = vst [vmem:[%s239 + $0x40] sm:%s231] %v272
                  %v274 = vld [vmem:[%s238 + $0x88] sm:%s231]
                  %275 = vst [vmem:[%s239 + $0x44] sm:%s231] %v274
                  %v276 = vld [vmem:[%s238 + $0x90] sm:%s231]
                  %277 = vst [vmem:[%s239 + $0x48] sm:%s231] %v276
                  %v278 = vld [vmem:[%s238 + $0x98] sm:%s231]
                  %279 = vst [vmem:[%s239 + $0x4c] sm:%s231] %v278
                  %v280 = vld [vmem:[%s238 + $0xa0] sm:%s231]
                  %281 = vst [vmem:[%s239 + $0x50] sm:%s231] %v280
                  %v282 = vld [vmem:[%s238 + $0xa8] sm:%s231]
                  %283 = vst [vmem:[%s239 + $0x54] sm:%s231] %v282
                  %v284 = vld [vmem:[%s238 + $0xb0] sm:%s231]
                  %285 = vst [vmem:[%s239 + $0x58] sm:%s231] %v284
                  %v286 = vld [vmem:[%s238 + $0xb8] sm:%s231]
                  %287 = vst [vmem:[%s239 + $0x5c] sm:%s231] %v286
                  %v288 = vld [vmem:[%s238 + $0xc0] sm:%s231]
                  %289 = vst [vmem:[%s239 + $0x60] sm:%s231] %v288
                  %v290 = vld [vmem:[%s238 + $0xc8] sm:%s231]
                  %291 = vst [vmem:[%s239 + $0x64] sm:%s231] %v290
                  %v292 = vld [vmem:[%s238 + $0xd0] sm:%s231]
                  %293 = vst [vmem:[%s239 + $0x68] sm:%s231] %v292
                  %v294 = vld [vmem:[%s238 + $0xd8] sm:%s231]
                  %295 = vst [vmem:[%s239 + $0x6c] sm:%s231] %v294
                  %v296 = vld [vmem:[%s238 + $0xe0] sm:%s231]
                  %297 = vst [vmem:[%s239 + $0x70] sm:%s231] %v296
                  %v298 = vld [vmem:[%s238 + $0xe8] sm:%s231]
                  %299 = vst [vmem:[%s239 + $0x74] sm:%s231] %v298
                  %v300 = vld [vmem:[%s238 + $0xf0] sm:%s231]
                  %301 = vst [vmem:[%s239 + $0x78] sm:%s231] %v300
                  %v302 = vld [vmem:[%s238 + $0xf8] sm:%s231]
                  %303 = vst [vmem:[%s239 + $0x7c] sm:%s231] %v302
                $region59: #{simsiam_forward.6} parent=46 // loop_footer
                  %s237 = sadd.s32 1, %s233
                $region60: #{simsiam_forward.6} parent=46 // loop_footer_branch
                  %232 = sbr.rel target = $region56
                $region61: #{simsiam_forward.6} parent=46 // loop_exit
                  _
              $region47: #{simsiam_forward.6} parent=31 // pred_fallthru
                _
            $region32: #{simsiam_forward.6} parent=27 // pred_fallthru
              _
            // Predicated region
            $region33: #{simsiam_forward.6} parent=27 // pred_check
              _
            $region34: #{simsiam_forward.6} parent=27 // pred_check_branch
              %145 = sbr.rel (0) target = $region36
            $region35: #{simsiam_forward.6} parent=27 // pred_region
              %s147 = ssub.s32 16, 1
              loop: start=0, step=1, limit=1
              $region37: #{simsiam_forward.6} parent=35 // loop_pre_header
                _
              $region38: #{simsiam_forward.6} parent=35 // loop_header
                %s149 = sphi 0, %s153
                %p150 = scmp.ge.s32.totalorder %s149, 1
                %s154 = sphi %s139, %s139
                %s155 = sphi %s137, %s137
              $region39: #{simsiam_forward.6} parent=35 // loop_header_branch
                %152 = sbr.rel (%p150) target = $region43
              $region40: #{simsiam_forward.6} parent=35 // loop_body
                %v156 = vld [vmem:[%s154] sm:%s147]
                %157 = vst [vmem:[%s155] sm:%s147] %v156
                %v158 = vld [vmem:[%s154 + $0x8] sm:%s147]
                %159 = vst [vmem:[%s155 + $0x4] sm:%s147] %v158
                %v160 = vld [vmem:[%s154 + $0x10] sm:%s147]
                %161 = vst [vmem:[%s155 + $0x8] sm:%s147] %v160
                %v162 = vld [vmem:[%s154 + $0x18] sm:%s147]
                %163 = vst [vmem:[%s155 + $0xc] sm:%s147] %v162
                %v164 = vld [vmem:[%s154 + $0x20] sm:%s147]
                %165 = vst [vmem:[%s155 + $0x10] sm:%s147] %v164
                %v166 = vld [vmem:[%s154 + $0x28] sm:%s147]
                %167 = vst [vmem:[%s155 + $0x14] sm:%s147] %v166
                %v168 = vld [vmem:[%s154 + $0x30] sm:%s147]
                %169 = vst [vmem:[%s155 + $0x18] sm:%s147] %v168
                %v170 = vld [vmem:[%s154 + $0x38] sm:%s147]
                %171 = vst [vmem:[%s155 + $0x1c] sm:%s147] %v170
                %v172 = vld [vmem:[%s154 + $0x40] sm:%s147]
                %173 = vst [vmem:[%s155 + $0x20] sm:%s147] %v172
                %v174 = vld [vmem:[%s154 + $0x48] sm:%s147]
                %175 = vst [vmem:[%s155 + $0x24] sm:%s147] %v174
                %v176 = vld [vmem:[%s154 + $0x50] sm:%s147]
                %177 = vst [vmem:[%s155 + $0x28] sm:%s147] %v176
                %v178 = vld [vmem:[%s154 + $0x58] sm:%s147]
                %179 = vst [vmem:[%s155 + $0x2c] sm:%s147] %v178
                %v180 = vld [vmem:[%s154 + $0x60] sm:%s147]
                %181 = vst [vmem:[%s155 + $0x30] sm:%s147] %v180
                %v182 = vld [vmem:[%s154 + $0x68] sm:%s147]
                %183 = vst [vmem:[%s155 + $0x34] sm:%s147] %v182
                %v184 = vld [vmem:[%s154 + $0x70] sm:%s147]
                %185 = vst [vmem:[%s155 + $0x38] sm:%s147] %v184
                %v186 = vld [vmem:[%s154 + $0x78] sm:%s147]
                %187 = vst [vmem:[%s155 + $0x3c] sm:%s147] %v186
                %v188 = vld [vmem:[%s154 + $0x80] sm:%s147]
                %189 = vst [vmem:[%s155 + $0x40] sm:%s147] %v188
                %v190 = vld [vmem:[%s154 + $0x88] sm:%s147]
                %191 = vst [vmem:[%s155 + $0x44] sm:%s147] %v190
                %v192 = vld [vmem:[%s154 + $0x90] sm:%s147]
                %193 = vst [vmem:[%s155 + $0x48] sm:%s147] %v192
                %v194 = vld [vmem:[%s154 + $0x98] sm:%s147]
                %195 = vst [vmem:[%s155 + $0x4c] sm:%s147] %v194
                %v196 = vld [vmem:[%s154 + $0xa0] sm:%s147]
                %197 = vst [vmem:[%s155 + $0x50] sm:%s147] %v196
                %v198 = vld [vmem:[%s154 + $0xa8] sm:%s147]
                %199 = vst [vmem:[%s155 + $0x54] sm:%s147] %v198
                %v200 = vld [vmem:[%s154 + $0xb0] sm:%s147]
                %201 = vst [vmem:[%s155 + $0x58] sm:%s147] %v200
                %v202 = vld [vmem:[%s154 + $0xb8] sm:%s147]
                %203 = vst [vmem:[%s155 + $0x5c] sm:%s147] %v202
                %v204 = vld [vmem:[%s154 + $0xc0] sm:%s147]
                %205 = vst [vmem:[%s155 + $0x60] sm:%s147] %v204
                %v206 = vld [vmem:[%s154 + $0xc8] sm:%s147]
                %207 = vst [vmem:[%s155 + $0x64] sm:%s147] %v206
                %v208 = vld [vmem:[%s154 + $0xd0] sm:%s147]
                %209 = vst [vmem:[%s155 + $0x68] sm:%s147] %v208
                %v210 = vld [vmem:[%s154 + $0xd8] sm:%s147]
                %211 = vst [vmem:[%s155 + $0x6c] sm:%s147] %v210
                %v212 = vld [vmem:[%s154 + $0xe0] sm:%s147]
                %213 = vst [vmem:[%s155 + $0x70] sm:%s147] %v212
                %v214 = vld [vmem:[%s154 + $0xe8] sm:%s147]
                %215 = vst [vmem:[%s155 + $0x74] sm:%s147] %v214
                %v216 = vld [vmem:[%s154 + $0xf0] sm:%s147]
                %217 = vst [vmem:[%s155 + $0x78] sm:%s147] %v216
                %v218 = vld [vmem:[%s154 + $0xf8] sm:%s147]
                %219 = vst [vmem:[%s155 + $0x7c] sm:%s147] %v218
              $region41: #{simsiam_forward.6} parent=35 // loop_footer
                %s153 = sadd.s32 1, %s149
              $region42: #{simsiam_forward.6} parent=35 // loop_footer_branch
                %148 = sbr.rel target = $region38
              $region43: #{simsiam_forward.6} parent=35 // loop_exit
                _
            $region36: #{simsiam_forward.6} parent=27 // pred_fallthru
              _
          $region28: #{simsiam_forward.6} parent=23 // pred_fallthru
            _
          %304 = vnop
        $region24: #{simsiam_forward.6} parent=19 // pred_fallthru
          _
      $region20: #{simsiam_forward.6} parent=5 // pred_fallthru
        _
      %p305 = scmp.le.s32.totalorder 1, %s10
      %p306 = scmp.lt.s32.totalorder %s10, 3
      %p307 = pnand %p305, %p306
      %p308 = pneg %p307
      // Predicated region
      $region62: #{simsiam_forward.6} parent=5 // pred_check
        _
      $region63: #{simsiam_forward.6} parent=5 // pred_check_branch
        %310 = sbr.rel (%p307) target = $region65
      $region64: #{simsiam_forward.6} parent=5 // pred_region
        %s311 = ssub.s32 %s10, 1
        %s312 = sand.u32 %s44, 1
        %s313 = sand.u32 %s44, 1
        %s314 = smul.addr %s313, 128
        %s315 = scalar_lea.vmem [#allocation2], %s314
        // Predicated region
        $region66: #{simsiam_forward.6} parent=64 // pred_check
          %p316 = pneg %p57
        $region67: #{simsiam_forward.6} parent=64 // pred_check_branch
          %318 = sbr.rel (%p316) target = $region69
        $region68: #{simsiam_forward.6} parent=64 // pred_region
          _
        $region69: #{simsiam_forward.6} parent=64 // pred_fallthru
          _
        %p319 = pneg %p31
        %p320 = pneg %p28
        %s321 = sand.u32 %s44, 1
        %s322 = sand.u32 %s44, 1
        %s323 = smul.addr %s322, 128
        %s324 = scalar_lea.vmem [#allocation2], %s323
        %p325 = pneg %p57
        %p326 = pneg %p54
        %p327 = pneg %p83
        %p328 = pneg %p80
        %s329 = sand.u32 %s70, 1
        %s330 = sand.u32 %s70, 1
        %s331 = smul.addr %s330, 32
        %s332 = scalar_lea.vmem [#allocation3], %s331
        %p333 = pneg %p109
        %p334 = pneg %p106
        %s335 = sand.u32 %s96, 1
        %s336 = sand.u32 %s96, 1
        %s337 = smul.addr %s336, 16
        %s338 = scalar_lea.vmem [#allocation4], %s337
        %v340 = vld [vmem:[%s0] sm:$0xff]
        %v341 = vld [vmem:[%s0 + $0x8] sm:$0xff]
        %v342 = vld [vmem:[%s0 + $0x10] sm:$0xff]
        %v343 = vld [vmem:[%s0 + $0x18] sm:$0xff]
        %v344 = vld [vmem:[%s315] sm:$0xf]
        %v345 = vld [vmem:[%s315 + $0x4] sm:$0xf]
        %v346 = vld [vmem:[%s315 + $0x8] sm:$0xf]
        %v347 = vld [vmem:[%s315 + $0xc] sm:$0xf]
        %v348 = vld [vmem:[%s315 + $0x10] sm:$0xf]
        %v349 = vld [vmem:[%s315 + $0x14] sm:$0xf]
        %v350 = vld [vmem:[%s315 + $0x18] sm:$0xf]
        %v351 = vld [vmem:[%s315 + $0x1c] sm:$0xf]
        %v352 = vld [vmem:[%s315 + $0x20] sm:$0xf]
        %v353 = vld [vmem:[%s315 + $0x24] sm:$0xf]
        %v354 = vld [vmem:[%s315 + $0x28] sm:$0xf]
        %v355 = vld [vmem:[%s315 + $0x2c] sm:$0xf]
        %v356 = vld [vmem:[%s315 + $0x30] sm:$0xf]
        %v357 = vld [vmem:[%s315 + $0x34] sm:$0xf]
        %v358 = vld [vmem:[%s315 + $0x38] sm:$0xf]
        %v359 = vld [vmem:[%s315 + $0x3c] sm:$0xf]
        %v360 = vld [vmem:[%s315 + $0x40] sm:$0xf]
        %v361 = vld [vmem:[%s315 + $0x44] sm:$0xf]
        %v362 = vld [vmem:[%s315 + $0x48] sm:$0xf]
        %v363 = vld [vmem:[%s315 + $0x4c] sm:$0xf]
        %v364 = vld [vmem:[%s315 + $0x50] sm:$0xf]
        %v365 = vld [vmem:[%s315 + $0x54] sm:$0xf]
        %v366 = vld [vmem:[%s315 + $0x58] sm:$0xf]
        %v367 = vld [vmem:[%s315 + $0x5c] sm:$0xf]
        %v368 = vld [vmem:[%s315 + $0x60] sm:$0xf]
        %v369 = vld [vmem:[%s315 + $0x64] sm:$0xf]
        %v370 = vld [vmem:[%s315 + $0x68] sm:$0xf]
        %v371 = vld [vmem:[%s315 + $0x6c] sm:$0xf]
        %v372 = vld [vmem:[%s315 + $0x70] sm:$0xf]
        %v373 = vld [vmem:[%s315 + $0x74] sm:$0xf]
        %v374 = vld [vmem:[%s315 + $0x78] sm:$0xf]
        %v375 = vld [vmem:[%s315 + $0x7c] sm:$0xf]
        %v380 = vunpack.c.l.b16 %v340
        %v381 = vunpack.c.h.b16 %v340
        %v382 = vunpack.c.l.b16 %v341
        %v383 = vunpack.c.h.b16 %v341
        %v384 = vunpack.c.l.b16 %v342
        %v385 = vunpack.c.h.b16 %v342
        %v386 = vunpack.c.l.b16 %v343
        %v387 = vunpack.c.h.b16 %v343
        %v388 = vpack.c.b16 %v382, %v380
        %v389 = vpack.c.b16 %v383, %v381
        %v390 = vpack.c.b16 %v386, %v384
        %v391 = vpack.c.b16 %v387, %v385
        %v428 = vunpack.c.l.b16 %v344
        %v429 = vunpack.c.l.b16 %v345
        %v430 = vunpack.c.l.b16 %v346
        %v431 = vunpack.c.l.b16 %v347
        %v432 = vunpack.c.l.b16 %v348
        %v433 = vunpack.c.l.b16 %v349
        %v434 = vunpack.c.l.b16 %v350
        %v435 = vunpack.c.l.b16 %v351
        %v436 = vunpack.c.l.b16 %v352
        %v437 = vunpack.c.l.b16 %v353
        %v438 = vunpack.c.l.b16 %v354
        %v439 = vunpack.c.l.b16 %v355
        %v440 = vunpack.c.l.b16 %v356
        %v441 = vunpack.c.l.b16 %v357
        %v442 = vunpack.c.l.b16 %v358
        %v443 = vunpack.c.l.b16 %v359
        %v444 = vunpack.c.l.b16 %v360
        %v445 = vunpack.c.l.b16 %v361
        %v446 = vunpack.c.l.b16 %v362
        %v447 = vunpack.c.l.b16 %v363
        %v448 = vunpack.c.l.b16 %v364
        %v449 = vunpack.c.l.b16 %v365
        %v450 = vunpack.c.l.b16 %v366
        %v451 = vunpack.c.l.b16 %v367
        %v452 = vunpack.c.l.b16 %v368
        %v453 = vunpack.c.l.b16 %v369
        %v454 = vunpack.c.l.b16 %v370
        %v455 = vunpack.c.l.b16 %v371
        %v456 = vunpack.c.l.b16 %v372
        %v457 = vunpack.c.l.b16 %v373
        %v458 = vunpack.c.l.b16 %v374
        %v459 = vunpack.c.l.b16 %v375
        %v460 = vpack.c.b16 %v429, %v428
        %v461 = vpack.c.b16 %v431, %v430
        %v462 = vpack.c.b16 %v433, %v432
        %v463 = vpack.c.b16 %v435, %v434
        %v464 = vpack.c.b16 %v437, %v436
        %v465 = vpack.c.b16 %v439, %v438
        %v466 = vpack.c.b16 %v441, %v440
        %v467 = vpack.c.b16 %v443, %v442
        %v468 = vpack.c.b16 %v445, %v444
        %v469 = vpack.c.b16 %v447, %v446
        %v470 = vpack.c.b16 %v449, %v448
        %v471 = vpack.c.b16 %v451, %v450
        %v472 = vpack.c.b16 %v453, %v452
        %v473 = vpack.c.b16 %v455, %v454
        %v474 = vpack.c.b16 %v457, %v456
        %v475 = vpack.c.b16 %v459, %v458
        %492 = vmatprep.subr.bf16.mxu0 0
        %493 = vmatpush1.bf16.msra.mxu0 %v467
        %494 = vmatprep.subr.bf16.mxu0 0
        %495 = vmatpush1.bf16.msra.mxu0 %v466
        %496 = vmatprep.subr.bf16.mxu0 0
        %497 = vmatpush1.bf16.msra.mxu0 %v465
        %498 = vmatprep.subr.bf16.mxu0 0
        %499 = vmatpush1.bf16.msra.mxu0 %v464
        %500 = vmatprep.subr.bf16.mxu0 0
        %501 = vmatpush1.bf16.msra.mxu0 %v463
        %502 = vmatprep.subr.bf16.mxu0 0
        %503 = vmatpush1.bf16.msra.mxu0 %v462
        %504 = vmatprep.subr.bf16.mxu0 0
        %505 = vmatpush1.bf16.msra.mxu0 %v461
        %506 = vmatprep.subr.bf16.mxu0 0
        %507 = vmatpush1.bf16.msra.mxu0 %v460
        %508 = vmatprep.subr.bf16.mxu0 0
        %509 = vmatpush2.bf16.msra.mxu0 %v475
        %510 = vmatprep.subr.bf16.mxu0 0
        %511 = vmatpush2.bf16.msra.mxu0 %v474
        %512 = vmatprep.subr.bf16.mxu0 0
        %513 = vmatpush2.bf16.msra.mxu0 %v473
        %514 = vmatprep.subr.bf16.mxu0 0
        %515 = vmatpush2.bf16.msra.mxu0 %v472
        %516 = vmatprep.subr.bf16.mxu0 0
        %517 = vmatpush2.bf16.msra.mxu0 %v471
        %518 = vmatprep.subr.bf16.mxu0 0
        %519 = vmatpush2.bf16.msra.mxu0 %v470
        %520 = vmatprep.subr.bf16.mxu0 0
        %521 = vmatpush2.bf16.msra.mxu0 %v469
        %522 = vmatprep.subr.bf16.mxu0 0
        %523 = vmatpush2.bf16.msra.mxu0 %v468
        %524 = vmatprep.mubr.bf16.mxu0 %v389
        %525 = vmatmul.mubr.bf16.gmra.mxu0 %v388
        %v526 = vpop.f32.mrf.mxu0
        %v527 = vadd.f32 0.0, %v526
        %v528 = vpop.f32.mrf.mxu0
        %v529 = vpop.f32.mrf.mxu0
        %v530 = vadd.f32 0.0, %v529
        %v531 = vpop.f32.mrf.mxu0
        %532 = vmatprep.mubr.bf16.mxu0 %v391
        %533 = vmatmul.mubr.bf16.gmra.mxu0 %v390
        %v534 = vpop.f32.mrf.mxu0
        %v535 = vadd.f32 0.0, %v534
        %v536 = vpop.f32.mrf.mxu0
        %v537 = vpop.f32.mrf.mxu0
        %v538 = vadd.f32 0.0, %v537
        %v539 = vpop.f32.mrf.mxu0
        %540 = vdwg.mxu0
        %v541 = vadd.f32 %v527, %v530
        %v542 = vrot.slane %v541, 4
        %v543 = vadd.f32 %v541, %v542
        %v544 = vrot.slane %v543, 2
        %v545 = vadd.f32 %v543, %v544
        %v546 = vrot.slane %v545, 1
        %v547 = vadd.f32 %v545, %v546
        %v548 = vrcp.pop 16.0
        %v549 = vmul.f32 %v547, %v548
        %v550 = vsub.f32 %v527, %v549
        %v551 = vsub.f32 %v530, %v549
        %v552 = vmul.f32 %v550, %v550
        %v553 = vmul.f32 %v551, %v551
        %v554 = vadd.f32 %v552, %v553
        %v555 = vrot.slane %v554, 4
        %v556 = vadd.f32 %v554, %v555
        %v557 = vrot.slane %v556, 2
        %v558 = vadd.f32 %v556, %v557
        %v559 = vrot.slane %v558, 1
        %v560 = vadd.f32 %v558, %v559
        %v561 = vmul.f32 %v560, %v548
        %v562 = vadd.f32 %v561, 1e-05
        %v563 = vrsqrt.pop %v562
        %v564 = vmul.f32 %v550, %v563
        %v565 = vmul.f32 %v551, %v563
        %v566 = vadd.f32 %v535, %v538
        %v567 = vrot.slane %v566, 4
        %v568 = vadd.f32 %v566, %v567
        %v569 = vrot.slane %v568, 2
        %v570 = vadd.f32 %v568, %v569
        %v571 = vrot.slane %v570, 1
        %v572 = vadd.f32 %v570, %v571
        %v573 = vmul.f32 %v572, %v548
        %v574 = vsub.f32 %v535, %v573
        %v575 = vsub.f32 %v538, %v573
        %v576 = vmul.f32 %v574, %v574
        %v577 = vmul.f32 %v575, %v575
        %v578 = vadd.f32 %v576, %v577
        %v579 = vrot.slane %v578, 4
        %v580 = vadd.f32 %v578, %v579
        %v581 = vrot.slane %v580, 2
        %v582 = vadd.f32 %v580, %v581
        %v583 = vrot.slane %v582, 1
        %v584 = vadd.f32 %v582, %v583
        %v585 = vmul.f32 %v584, %v548
        %v586 = vadd.f32 %v585, 1e-05
        %v587 = vrsqrt.pop %v586
        %v588 = vmul.f32 %v574, %v587
        %v589 = vmul.f32 %v575, %v587
        %590 = vst [vmem:[%s332] sm:$0xff] %v564
        %591 = vst [vmem:[%s332 + $0x8] sm:$0xff] %v565
        %592 = vst [vmem:[%s332 + $0x10] sm:$0xff] %v588
        %593 = vst [vmem:[%s332 + $0x18] sm:$0xff] %v589
        %v594 = vpack.c.bf16 %v565, %v564
        %v595 = vpack.c.bf16 %v589, %v588
        %v598 = vunpack.c.l.b16 %v594
        %v599 = vunpack.c.h.b16 %v594
        %v600 = vunpack.c.l.b16 %v595
        %v601 = vunpack.c.h.b16 %v595
        %v602 = vpack.c.b16 %v598, %v598
        %v603 = vpack.c.b16 %v599, %v599
        %v604 = vpack.c.b16 %v600, %v600
        %v605 = vpack.c.b16 %v601, %v601
        %610 = vst [vmem:[%s338] sm:$0xf] %v602
        %611 = vst [vmem:[%s338 + $0x4] sm:$0xf] %v603
        %612 = vst [vmem:[%s338 + $0x8] sm:$0xf] %v604
        %613 = vst [vmem:[%s338 + $0xc] sm:$0xf] %v605
        %s614 = sand.u32 %s70, 1
        %s615 = sand.u32 %s70, 1
        %s616 = smul.addr %s615, 32
        %s617 = scalar_lea.vmem [#allocation3], %s616
        %s618 = sand.u32 %s96, 1
        %s619 = sand.u32 %s96, 1
        %s620 = smul.addr %s619, 16
        %s621 = scalar_lea.vmem [#allocation4], %s620
        // Predicated region
        $region70: #{simsiam_forward.6} parent=64 // pred_check
          %p622 = pneg %p80
        $region71: #{simsiam_forward.6} parent=64 // pred_check_branch
          %624 = sbr.rel (%p622) target = $region73
        $region72: #{simsiam_forward.6} parent=64 // pred_region
          %s625 = smul.addr %s15, 8
          %s626 = scalar_lea.vmem %s2, %s625
          // Predicated region
          $region74: #{simsiam_forward.6} parent=72 // pred_check
            _
          $region75: #{simsiam_forward.6} parent=72 // pred_check_branch
            %628 = sbr.rel (0) target = $region77
          $region76: #{simsiam_forward.6} parent=72 // pred_region
            // Predicated region
            $region78: #{simsiam_forward.6} parent=76 // pred_check
              _
            $region79: #{simsiam_forward.6} parent=76 // pred_check_branch
              %630 = sbr.rel (0) target = $region81
            $region80: #{simsiam_forward.6} parent=76 // pred_region
              // Predicated region
              $region93: #{simsiam_forward.6} parent=80 // pred_check
                _
              $region94: #{simsiam_forward.6} parent=80 // pred_check_branch
                %652 = sbr.rel (0) target = $region96
              $region95: #{simsiam_forward.6} parent=80 // pred_region
                loop: start=0, step=1, limit=1
                $region97: #{simsiam_forward.6} parent=95 // loop_pre_header
                  _
                $region98: #{simsiam_forward.6} parent=95 // loop_header
                  %s654 = sphi 0, %s658
                  %p655 = scmp.ge.s32.totalorder %s654, 1
                  %s659 = sphi %s617, %s617
                  %s660 = sphi %s626, %s626
                $region99: #{simsiam_forward.6} parent=95 // loop_header_branch
                  %657 = sbr.rel (%p655) target = $region103
                $region100: #{simsiam_forward.6} parent=95 // loop_body
                  %v661 = vld [vmem:[%s659] sm:$0xff]
                  %662 = vst [vmem:[%s660] sm:$0xff] %v661
                  %v663 = vld [vmem:[%s659 + $0x8] sm:$0xff]
                  %664 = vst [vmem:[%s660 + $0x10] sm:$0xff] %v663
                  %v665 = vld [vmem:[%s659 + $0x10] sm:$0xff]
                  %666 = vst [vmem:[%s660 + $0x20] sm:$0xff] %v665
                  %v667 = vld [vmem:[%s659 + $0x18] sm:$0xff]
                  %668 = vst [vmem:[%s660 + $0x30] sm:$0xff] %v667
                $region101: #{simsiam_forward.6} parent=95 // loop_footer
                  %s658 = sadd.s32 1, %s654
                $region102: #{simsiam_forward.6} parent=95 // loop_footer_branch
                  %653 = sbr.rel target = $region98
                $region103: #{simsiam_forward.6} parent=95 // loop_exit
                  _
              $region96: #{simsiam_forward.6} parent=80 // pred_fallthru
                _
              // Predicated region
              $region104: #{simsiam_forward.6} parent=80 // pred_check
                _
              $region105: #{simsiam_forward.6} parent=80 // pred_check_branch
                %670 = sbr.rel target = $region107
              $region106: #{simsiam_forward.6} parent=80 // pred_region
                _
              $region107: #{simsiam_forward.6} parent=80 // pred_fallthru
                _
            $region81: #{simsiam_forward.6} parent=76 // pred_fallthru
              _
            // Predicated region
            $region82: #{simsiam_forward.6} parent=76 // pred_check
              _
            $region83: #{simsiam_forward.6} parent=76 // pred_check_branch
              %632 = sbr.rel target = $region85
            $region84: #{simsiam_forward.6} parent=76 // pred_region
              %s634 = ssub.s32 256, 1
              loop: start=0, step=1, limit=1
              $region86: #{simsiam_forward.6} parent=84 // loop_pre_header
                _
              $region87: #{simsiam_forward.6} parent=84 // loop_header
                %s636 = sphi 0, %s640
                %p637 = scmp.ge.s32.totalorder %s636, 1
                %s641 = sphi %s617, %s617
                %s642 = sphi %s626, %s626
              $region88: #{simsiam_forward.6} parent=84 // loop_header_branch
                %639 = sbr.rel (%p637) target = $region92
              $region89: #{simsiam_forward.6} parent=84 // loop_body
                %v643 = vld [vmem:[%s641] sm:%s634]
                %644 = vst [vmem:[%s642] sm:%s634] %v643
                %v645 = vld [vmem:[%s641 + $0x8] sm:%s634]
                %646 = vst [vmem:[%s642 + $0x10] sm:%s634] %v645
                %v647 = vld [vmem:[%s641 + $0x10] sm:%s634]
                %648 = vst [vmem:[%s642 + $0x20] sm:%s634] %v647
                %v649 = vld [vmem:[%s641 + $0x18] sm:%s634]
                %650 = vst [vmem:[%s642 + $0x30] sm:%s634] %v649
              $region90: #{simsiam_forward.6} parent=84 // loop_footer
                %s640 = sadd.s32 1, %s636
              $region91: #{simsiam_forward.6} parent=84 // loop_footer_branch
                %635 = sbr.rel target = $region87
              $region92: #{simsiam_forward.6} parent=84 // loop_exit
                _
            $region85: #{simsiam_forward.6} parent=76 // pred_fallthru
              _
          $region77: #{simsiam_forward.6} parent=72 // pred_fallthru
            _
          %671 = vnop
        $region73: #{simsiam_forward.6} parent=64 // pred_fallthru
          _
        // Predicated region
        $region108: #{simsiam_forward.6} parent=64 // pred_check
          %p672 = pneg %p106
        $region109: #{simsiam_forward.6} parent=64 // pred_check_branch
          %674 = sbr.rel (%p672) target = $region111
        $region110: #{simsiam_forward.6} parent=64 // pred_region
          %s675 = smul.addr %s15, 4
          %s676 = scalar_lea.vmem %s3, %s675
          // Predicated region
          $region112: #{simsiam_forward.6} parent=110 // pred_check
            _
          $region113: #{simsiam_forward.6} parent=110 // pred_check_branch
            %678 = sbr.rel (0) target = $region115
          $region114: #{simsiam_forward.6} parent=110 // pred_region
            // Predicated region
            $region116: #{simsiam_forward.6} parent=114 // pred_check
              _
            $region117: #{simsiam_forward.6} parent=114 // pred_check_branch
              %680 = sbr.rel target = $region119
            $region118: #{simsiam_forward.6} parent=114 // pred_region
              // Predicated region
              $region131: #{simsiam_forward.6} parent=118 // pred_check
                _
              $region132: #{simsiam_forward.6} parent=118 // pred_check_branch
                %702 = sbr.rel (0) target = $region134
              $region133: #{simsiam_forward.6} parent=118 // pred_region
                loop: start=0, step=1, limit=1
                $region135: #{simsiam_forward.6} parent=133 // loop_pre_header
                  _
                $region136: #{simsiam_forward.6} parent=133 // loop_header
                  %s704 = sphi 0, %s708
                  %p705 = scmp.ge.s32.totalorder %s704, 1
                  %s709 = sphi %s621, %s621
                  %s710 = sphi %s676, %s676
                $region137: #{simsiam_forward.6} parent=133 // loop_header_branch
                  %707 = sbr.rel (%p705) target = $region141
                $region138: #{simsiam_forward.6} parent=133 // loop_body
                  _
                $region139: #{simsiam_forward.6} parent=133 // loop_footer
                  %s708 = sadd.s32 1, %s704
                $region140: #{simsiam_forward.6} parent=133 // loop_footer_branch
                  %703 = sbr.rel target = $region136
                $region141: #{simsiam_forward.6} parent=133 // loop_exit
                  _
                %s712 = ssub.s32 16, 1
                loop: start=0, step=1, limit=1
                $region142: #{simsiam_forward.6} parent=133 // loop_pre_header
                  _
                $region143: #{simsiam_forward.6} parent=133 // loop_header
                  %s714 = sphi 0, %s718
                  %p715 = scmp.ge.s32.totalorder %s714, 1
                  %s719 = sphi %s621, %s621
                  %s720 = sphi %s676, %s676
                $region144: #{simsiam_forward.6} parent=133 // loop_header_branch
                  %717 = sbr.rel (%p715) target = $region148
                $region145: #{simsiam_forward.6} parent=133 // loop_body
                  %v721 = vld [vmem:[%s719] sm:%s712]
                  %722 = vst [vmem:[%s720] sm:%s712] %v721
                  %v723 = vld [vmem:[%s719 + $0x4] sm:%s712]
                  %724 = vst [vmem:[%s720 + $0x8] sm:%s712] %v723
                  %v725 = vld [vmem:[%s719 + $0x8] sm:%s712]
                  %726 = vst [vmem:[%s720 + $0x10] sm:%s712] %v725
                  %v727 = vld [vmem:[%s719 + $0xc] sm:%s712]
                  %728 = vst [vmem:[%s720 + $0x18] sm:%s712] %v727
                $region146: #{simsiam_forward.6} parent=133 // loop_footer
                  %s718 = sadd.s32 1, %s714
                $region147: #{simsiam_forward.6} parent=133 // loop_footer_branch
                  %713 = sbr.rel target = $region143
                $region148: #{simsiam_forward.6} parent=133 // loop_exit
                  _
              $region134: #{simsiam_forward.6} parent=118 // pred_fallthru
                _
            $region119: #{simsiam_forward.6} parent=114 // pred_fallthru
              _
            // Predicated region
            $region120: #{simsiam_forward.6} parent=114 // pred_check
              _
            $region121: #{simsiam_forward.6} parent=114 // pred_check_branch
              %682 = sbr.rel (0) target = $region123
            $region122: #{simsiam_forward.6} parent=114 // pred_region
              %s684 = ssub.s32 16, 1
              loop: start=0, step=1, limit=1
              $region124: #{simsiam_forward.6} parent=122 // loop_pre_header
                _
              $region125: #{simsiam_forward.6} parent=122 // loop_header
                %s686 = sphi 0, %s690
                %p687 = scmp.ge.s32.totalorder %s686, 1
                %s691 = sphi %s621, %s621
                %s692 = sphi %s676, %s676
              $region126: #{simsiam_forward.6} parent=122 // loop_header_branch
                %689 = sbr.rel (%p687) target = $region130
              $region127: #{simsiam_forward.6} parent=122 // loop_body
                %v693 = vld [vmem:[%s691] sm:%s684]
                %694 = vst [vmem:[%s692] sm:%s684] %v693
                %v695 = vld [vmem:[%s691 + $0x4] sm:%s684]
                %696 = vst [vmem:[%s692 + $0x8] sm:%s684] %v695
                %v697 = vld [vmem:[%s691 + $0x8] sm:%s684]
                %698 = vst [vmem:[%s692 + $0x10] sm:%s684] %v697
                %v699 = vld [vmem:[%s691 + $0xc] sm:%s684]
                %700 = vst [vmem:[%s692 + $0x18] sm:%s684] %v699
              $region128: #{simsiam_forward.6} parent=122 // loop_footer
                %s690 = sadd.s32 1, %s686
              $region129: #{simsiam_forward.6} parent=122 // loop_footer_branch
                %685 = sbr.rel target = $region125
              $region130: #{simsiam_forward.6} parent=122 // loop_exit
                _
            $region123: #{simsiam_forward.6} parent=114 // pred_fallthru
              _
          $region115: #{simsiam_forward.6} parent=110 // pred_fallthru
            _
          %729 = vnop
        $region111: #{simsiam_forward.6} parent=64 // pred_fallthru
          _
      $region65: #{simsiam_forward.6} parent=5 // pred_fallthru
        _
      %p730 = scmp.le.s32.totalorder 2, %s10
      // Predicated region
      $region149: #{simsiam_forward.6} parent=5 // pred_check
        %p731 = pneg %p730
      $region150: #{simsiam_forward.6} parent=5 // pred_check_branch
        %733 = sbr.rel (%p731) target = $region152
      $region151: #{simsiam_forward.6} parent=5 // pred_region
        %s734 = ssub.s32 %s10, 2
        // Predicated region
        $region153: #{simsiam_forward.6} parent=151 // pred_check
          %p735 = pneg %p86
        $region154: #{simsiam_forward.6} parent=151 // pred_check_branch
          %737 = sbr.rel (%p735) target = $region156
        $region155: #{simsiam_forward.6} parent=151 // pred_region
          %s738 = sand.u32 %s71, 1
          %s739 = sand.u32 %s71, 1
          %s740 = smul.addr %s739, 32
          %s741 = scalar_lea.vmem [#allocation3], %s740
        $region156: #{simsiam_forward.6} parent=151 // pred_fallthru
          _
        // Predicated region
        $region157: #{simsiam_forward.6} parent=151 // pred_check
          %p742 = pneg %p112
        $region158: #{simsiam_forward.6} parent=151 // pred_check_branch
          %744 = sbr.rel (%p742) target = $region160
        $region159: #{simsiam_forward.6} parent=151 // pred_region
          %s745 = sand.u32 %s97, 1
          %s746 = sand.u32 %s97, 1
          %s747 = smul.addr %s746, 16
          %s748 = scalar_lea.vmem [#allocation4], %s747
        $region160: #{simsiam_forward.6} parent=151 // pred_fallthru
          _
      $region152: #{simsiam_forward.6} parent=5 // pred_fallthru
        _
    $region6: #{simsiam_forward.6} parent=1 // loop_footer
      %s14 = sadd.s32 1, %s10
    $region7: #{simsiam_forward.6} parent=1 // loop_footer_branch
      %9 = sbr.rel target = $region3
    $region8: #{simsiam_forward.6} parent=1 // loop_exit
      _

// kernel: simsiam_forward.4
$region0: #{simsiam_forward.4}
  #allocation0 [shape = 'u32[]', space=smem, size = 0x4, offset = 0x4, fixed_abs, tag = 'smem constant byte address 0x4 - core index']
  #allocation1 [shape = 'u32[144,128]{1,0:T(1,128)}', space=vmem, size = 0x12000, scoped, tag = 'internal scratch']
  %s0 = inlined_call_operand.vmem [shape: bf16[32,256], index: 0, kind: input, shape index: {}]
  %s1 = inlined_call_operand.hbm [shape: bf16[256,256], index: 1, kind: input, shape index: {}]
  %s2 = inlined_call_operand.hbm [shape: f32[1,256], index: 2, kind: input, shape index: {}]
  %s3 = inlined_call_operand.hbm [shape: f32[1,256], index: 3, kind: input, shape index: {}]
  %s4 = inlined_call_operand.vmem [shape: bf16[32,256], index: 4, kind: output, shape index: {}]
  %s5 = sld [smem:[#allocation0]]
  $region98: #{simsiam_forward.4} parent=0
    _
  %s7 = ssub.s32 1, %s5
  %s8 = scalar_select 0, %s7, %s5
  $region1: #{simsiam_forward.4} parent=0
    #allocation2 [shape = 'u8[131072]{0}', space=vmem, size = 0x20000, scoped, tag = 'input window, operand 1']
    #allocation3 [shape = 's32[2]{0}', space=sflag, size = 0x8, scoped, tag = 'scoped memory for simsiam_forward.4']
    #allocation4 [shape = 'u8[1024]{0}', space=vmem, size = 0x400, scoped, tag = 'input window, operand 2']
    #allocation5 [shape = 's32[2]{0}', space=sflag, size = 0x8, scoped, tag = 'scoped memory for simsiam_forward.4']
    #allocation6 [shape = 'u8[1024]{0}', space=vmem, size = 0x400, scoped, tag = 'input window, operand 3']
    #allocation7 [shape = 'u8[16384]{0}', space=vmem, size = 0x4000, scoped, tag = 'output window, operand 0']
    %9 = vsyncpa [#allocation3], 0
    %s10 = scalar_lea.sflag [#allocation3], 1
    %11 = vsyncpa %s10, 0
    %12 = vsyncpa [#allocation5], 0
    %s13 = scalar_lea.sflag [#allocation5], 1
    %14 = vsyncpa %s13, 0
    loop: start=0, step=1, limit=4
    $region2: #{simsiam_forward.4} parent=1 // loop_pre_header
      _
    $region3: #{simsiam_forward.4} parent=1 // loop_header
      %s16 = sphi 0, %s20
      %p17 = scmp.ge.s32.totalorder %s16, 4
      %s24 = sphi 0, %s24
      %s26 = sphi 0, %s24
      %s27 = sphi 0, %s26
      %s41 = sphi 0, %s27
      %s47 = sphi 0, %s49
      %s50 = sphi 0, %s47
      %s51 = sphi 0, %s50
      %s67 = sphi 0, %s51
      %s73 = sphi 0, %s75
      %s76 = sphi 0, %s73
      %s77 = sphi 0, %s76
      %s93 = sphi 0, %s77
      %s99 = sphi 0, %s101
      %s102 = sphi 0, %s99
      %s103 = sphi 0, %s102
      %s119 = sphi 0, %s103
      %s125 = sphi 0, %s127
      %s128 = sphi 0, %s125
      %s129 = sphi 0, %s128
      %s145 = sphi 0, %s129
    $region4: #{simsiam_forward.4} parent=1 // loop_header_branch
      %19 = sbr.rel (%p17) target = $region8
    $region5: #{simsiam_forward.4} parent=1 // loop_body
      %s21 = ssub.s32 %s16, 1
      %s22 = ssub.s32 %s16, 2
      %s23 = sadd.s32 %s16, 1
      %s25 = sadd.s32 %s24, 1
      %p28 = scmp.eq.s32.totalorder %s16, 1
      %p29 = scmp.ne.s32.totalorder %s24, %s26
      %p30 = scmp.eq.s32.totalorder %s16, 0
      %p31 = por %p29, %p30
      %p32 = scmp.ne.s32.totalorder %s24, %s26
      %p33 = scmp.eq.s32.totalorder %s21, 1
      %p34 = por %p32, %p33
      %p35 = scmp.ne.s32.totalorder %s26, %s27
      %p36 = scmp.eq.s32.totalorder %s21, 0
      %p37 = por %p35, %p36
      %p38 = scmp.ne.s32.totalorder %s26, %s27
      %p39 = scmp.eq.s32.totalorder %s22, 1
      %p40 = por %p38, %p39
      %p42 = scmp.ne.s32.totalorder %s27, %s41
      %p43 = scmp.eq.s32.totalorder %s22, 0
      %p44 = por %p42, %p43
      %s45 = ssub.s32 %s16, %s23
      %p46 = scmp.eq.s32.totalorder %s45, 0
      %s48 = sadd.s32 %s47, 1
      %s49 = scalar_select %p46, %s47, %s48
      %p52 = pneg %p46
      %p53 = scmp.eq.s32.totalorder %s16, 1
      %p54 = por %p52, %p53
      %p55 = scmp.ne.s32.totalorder %s47, %s50
      %p56 = scmp.eq.s32.totalorder %s16, 0
      %p57 = por %p55, %p56
      %p58 = scmp.ne.s32.totalorder %s47, %s50
      %p59 = scmp.eq.s32.totalorder %s21, 1
      %p60 = por %p58, %p59
      %p61 = scmp.ne.s32.totalorder %s50, %s51
      %p62 = scmp.eq.s32.totalorder %s21, 0
      %p63 = por %p61, %p62
      %p64 = scmp.ne.s32.totalorder %s50, %s51
      %p65 = scmp.eq.s32.totalorder %s22, 1
      %p66 = por %p64, %p65
      %p68 = scmp.ne.s32.totalorder %s51, %s67
      %p69 = scmp.eq.s32.totalorder %s22, 0
      %p70 = por %p68, %p69
      %s71 = ssub.s32 %s16, %s23
      %p72 = scmp.eq.s32.totalorder %s71, 0
      %s74 = sadd.s32 %s73, 1
      %s75 = scalar_select %p72, %s73, %s74
      %p78 = pneg %p72
      %p79 = scmp.eq.s32.totalorder %s16, 1
      %p80 = por %p78, %p79
      %p81 = scmp.ne.s32.totalorder %s73, %s76
      %p82 = scmp.eq.s32.totalorder %s16, 0
      %p83 = por %p81, %p82
      %p84 = scmp.ne.s32.totalorder %s73, %s76
      %p85 = scmp.eq.s32.totalorder %s21, 1
      %p86 = por %p84, %p85
      %p87 = scmp.ne.s32.totalorder %s76, %s77
      %p88 = scmp.eq.s32.totalorder %s21, 0
      %p89 = por %p87, %p88
      %p90 = scmp.ne.s32.totalorder %s76, %s77
      %p91 = scmp.eq.s32.totalorder %s22, 1
      %p92 = por %p90, %p91
      %p94 = scmp.ne.s32.totalorder %s77, %s93
      %p95 = scmp.eq.s32.totalorder %s22, 0
      %p96 = por %p94, %p95
      %s97 = ssub.s32 %s16, %s23
      %p98 = scmp.eq.s32.totalorder %s97, 0
      %s100 = sadd.s32 %s99, 1
      %s101 = scalar_select %p98, %s99, %s100
      %p104 = pneg %p98
      %p105 = scmp.eq.s32.totalorder %s16, 1
      %p106 = por %p104, %p105
      %p107 = scmp.ne.s32.totalorder %s99, %s102
      %p108 = scmp.eq.s32.totalorder %s16, 0
      %p109 = por %p107, %p108
      %p110 = scmp.ne.s32.totalorder %s99, %s102
      %p111 = scmp.eq.s32.totalorder %s21, 1
      %p112 = por %p110, %p111
      %p113 = scmp.ne.s32.totalorder %s102, %s103
      %p114 = scmp.eq.s32.totalorder %s21, 0
      %p115 = por %p113, %p114
      %p116 = scmp.ne.s32.totalorder %s102, %s103
      %p117 = scmp.eq.s32.totalorder %s22, 1
      %p118 = por %p116, %p117
      %p120 = scmp.ne.s32.totalorder %s103, %s119
      %p121 = scmp.eq.s32.totalorder %s22, 0
      %p122 = por %p120, %p121
      %s123 = ssub.s32 %s16, %s23
      %p124 = scmp.eq.s32.totalorder %s123, 0
      %s126 = sadd.s32 %s125, 1
      %s127 = scalar_select %p124, %s125, %s126
      %p130 = pneg %p124
      %p131 = scmp.eq.s32.totalorder %s16, 1
      %p132 = por %p130, %p131
      %p133 = scmp.ne.s32.totalorder %s125, %s128
      %p134 = scmp.eq.s32.totalorder %s16, 0
      %p135 = por %p133, %p134
      %p136 = scmp.ne.s32.totalorder %s125, %s128
      %p137 = scmp.eq.s32.totalorder %s21, 1
      %p138 = por %p136, %p137
      %p139 = scmp.ne.s32.totalorder %s128, %s129
      %p140 = scmp.eq.s32.totalorder %s21, 0
      %p141 = por %p139, %p140
      %p142 = scmp.ne.s32.totalorder %s128, %s129
      %p143 = scmp.eq.s32.totalorder %s22, 1
      %p144 = por %p142, %p143
      %p146 = scmp.ne.s32.totalorder %s129, %s145
      %p147 = scmp.eq.s32.totalorder %s22, 0
      %p148 = por %p146, %p147
      %p149 = scmp.le.s32.totalorder 1, %s16
      %p150 = scmp.lt.s32.totalorder %s16, 3
      %p151 = pnand %p149, %p150
      %p152 = pneg %p151
      // Predicated region
      $region9: #{simsiam_forward.4} parent=5 // pred_check
        _
      $region10: #{simsiam_forward.4} parent=5 // pred_check_branch
        %154 = sbr.rel (%p151) target = $region12
      $region11: #{simsiam_forward.4} parent=5 // pred_region
        %s155 = ssub.s32 %s16, 1
        // Predicated region
        $region13: #{simsiam_forward.4} parent=11 // pred_check
          %p156 = pneg %p37
        $region14: #{simsiam_forward.4} parent=11 // pred_check_branch
          %158 = sbr.rel (%p156) target = $region16
        $region15: #{simsiam_forward.4} parent=11 // pred_region
          _
        $region16: #{simsiam_forward.4} parent=11 // pred_fallthru
          _
      $region12: #{simsiam_forward.4} parent=5 // pred_fallthru
        _
      %p159 = scmp.lt.s32.totalorder %s16, 2
      // Predicated region
      $region17: #{simsiam_forward.4} parent=5 // pred_check
        %p160 = pneg %p159
      $region18: #{simsiam_forward.4} parent=5 // pred_check_branch
        %162 = sbr.rel (%p160) target = $region20
      $region19: #{simsiam_forward.4} parent=5 // pred_region
        // Predicated region
        $region21: #{simsiam_forward.4} parent=19 // pred_check
          %p163 = pneg %p57
        $region22: #{simsiam_forward.4} parent=19 // pred_check_branch
          %165 = sbr.rel (%p163) target = $region24
        $region23: #{simsiam_forward.4} parent=19 // pred_region
          %s166 = sand.u32 %s47, 1
          %s167 = scalar_lea.sflag [#allocation3], %s166
          %s168 = sand.u32 %s47, 1
          %s169 = smul.addr %s168, 128
          %s170 = scalar_lea.vmem [#allocation2], %s169
          %s172 = ssub.s32 2048, 2048
          %173 = vsyncadd %s167, %s172
          %s174 = smul.addr %s16, 64
          %s175 = scalar_lea.hbm %s1, %s174
          %s176 = sshll.u32 %s170, 4
          %s177 = int_to_ptr.vmem [resolvable:$true] %s176
          %182 = dma.hbm_to_vmem [thread:$0]  %s175, 2048, %s177, %s167, 128, 64, 4
        $region24: #{simsiam_forward.4} parent=19 // pred_fallthru
          _
        // Predicated region
        $region25: #{simsiam_forward.4} parent=19 // pred_check
          %p183 = pneg %p83
        $region26: #{simsiam_forward.4} parent=19 // pred_check_branch
          %185 = sbr.rel (%p183) target = $region28
        $region27: #{simsiam_forward.4} parent=19 // pred_region
          %s186 = sand.u32 %s16, 1
          %s187 = scalar_lea.sflag [#allocation5], %s186
          %s188 = sand.u32 %s73, 1
          %s189 = scalar_lea.vmem [#allocation4], %s188
          %s191 = ssub.s32 16, 16
          %192 = vsyncadd %s187, %s191
          %s193 = smul.addr %s16, 16
          %s194 = scalar_lea.hbm %s2, %s193
          %s196 = sshll.u32 %s189, 4
          %s197 = int_to_ptr.vmem [resolvable:$true] %s196
          %199 = dma.hbm_to_vmem [thread:$0]  %s194, 16, %s197, %s187
        $region28: #{simsiam_forward.4} parent=19 // pred_fallthru
          _
        // Predicated region
        $region29: #{simsiam_forward.4} parent=19 // pred_check
          %p200 = pneg %p109
        $region30: #{simsiam_forward.4} parent=19 // pred_check_branch
          %202 = sbr.rel (%p200) target = $region32
        $region31: #{simsiam_forward.4} parent=19 // pred_region
          %s203 = sand.u32 %s16, 1
          %s204 = scalar_lea.sflag [#allocation5], %s203
          %s205 = sand.u32 %s99, 1
          %s206 = scalar_lea.vmem [#allocation6], %s205
          %s208 = ssub.s32 16, 16
          %209 = vsyncadd %s204, %s208
          %s210 = smul.addr %s16, 16
          %s211 = scalar_lea.hbm %s3, %s210
          %s213 = sshll.u32 %s206, 4
          %s214 = int_to_ptr.vmem [resolvable:$true] %s213
          %216 = dma.hbm_to_vmem [thread:$0]  %s211, 16, %s214, %s204
        $region32: #{simsiam_forward.4} parent=19 // pred_fallthru
          _
      $region20: #{simsiam_forward.4} parent=5 // pred_fallthru
        _
      %p217 = scmp.le.s32.totalorder 1, %s16
      %p218 = scmp.lt.s32.totalorder %s16, 3
      %p219 = pnand %p217, %p218
      %p220 = pneg %p219
      // Predicated region
      $region33: #{simsiam_forward.4} parent=5 // pred_check
        _
      $region34: #{simsiam_forward.4} parent=5 // pred_check_branch
        %222 = sbr.rel (%p219) target = $region36
      $region35: #{simsiam_forward.4} parent=5 // pred_region
        %s223 = ssub.s32 %s16, 1
        %s224 = sand.u32 %s50, 1
        %s225 = scalar_lea.sflag [#allocation3], %s224
        %s226 = sand.u32 %s50, 1
        %s227 = smul.addr %s226, 128
        %s228 = scalar_lea.vmem [#allocation2], %s227
        // Predicated region
        $region37: #{simsiam_forward.4} parent=35 // pred_check
          %p229 = pneg %p63
        $region38: #{simsiam_forward.4} parent=35 // pred_check_branch
          %231 = sbr.rel (%p229) target = $region40
        $region39: #{simsiam_forward.4} parent=35 // pred_region
          %232 = dma.done %s225, 2048
        $region40: #{simsiam_forward.4} parent=35 // pred_fallthru
          _
        %s233 = sand.u32 %s21, 1
        %s234 = scalar_lea.sflag [#allocation5], %s233
        %s235 = sand.u32 %s76, 1
        %s236 = scalar_lea.vmem [#allocation4], %s235
        // Predicated region
        $region41: #{simsiam_forward.4} parent=35 // pred_check
          %p237 = pneg %p89
        $region42: #{simsiam_forward.4} parent=35 // pred_check_branch
          %239 = sbr.rel (%p237) target = $region44
        $region43: #{simsiam_forward.4} parent=35 // pred_region
          %240 = dma.done %s234, 16
        $region44: #{simsiam_forward.4} parent=35 // pred_fallthru
          _
        %s241 = sand.u32 %s21, 1
        %s242 = scalar_lea.sflag [#allocation5], %s241
        %s243 = sand.u32 %s102, 1
        %s244 = scalar_lea.vmem [#allocation6], %s243
        // Predicated region
        $region45: #{simsiam_forward.4} parent=35 // pred_check
          %p245 = pneg %p115
        $region46: #{simsiam_forward.4} parent=35 // pred_check_branch
          %247 = sbr.rel (%p245) target = $region48
        $region47: #{simsiam_forward.4} parent=35 // pred_region
          %248 = dma.done %s242, 16
        $region48: #{simsiam_forward.4} parent=35 // pred_fallthru
          _
        %p249 = pneg %p37
        %p250 = pneg %p34
        %s251 = sand.u32 %s50, 1
        %s252 = scalar_lea.sflag [#allocation3], %s251
        %s253 = sand.u32 %s50, 1
        %s254 = smul.addr %s253, 128
        %s255 = scalar_lea.vmem [#allocation2], %s254
        %p256 = pneg %p63
        %p257 = pneg %p60
        %s258 = sand.u32 %s21, 1
        %s259 = scalar_lea.sflag [#allocation5], %s258
        %s260 = sand.u32 %s76, 1
        %s261 = scalar_lea.vmem [#allocation4], %s260
        %p262 = pneg %p89
        %p263 = pneg %p86
        %s264 = sand.u32 %s21, 1
        %s265 = scalar_lea.sflag [#allocation5], %s264
        %s266 = sand.u32 %s102, 1
        %s267 = scalar_lea.vmem [#allocation6], %s266
        %p268 = pneg %p115
        %p269 = pneg %p112
        %p270 = pneg %p141
        %p271 = pneg %p138
        %s272 = sand.u32 %s128, 1
        %s273 = sand.u32 %s128, 1
        %s274 = smul.addr %s273, 16
        %s275 = scalar_lea.vmem [#allocation7], %s274
        %v277 = vld [vmem:[%s0] sm:$0xff]
        %v278 = vld [vmem:[%s0 + $0x8] sm:$0xff]
        %v279 = vld [vmem:[%s0 + $0x10] sm:$0xff]
        %v280 = vld [vmem:[%s0 + $0x18] sm:$0xff]
        %v281 = vld [vmem:[%s228] sm:$0xf]
        %v282 = vld [vmem:[%s228 + $0x4] sm:$0xf]
        %v283 = vld [vmem:[%s228 + $0x8] sm:$0xf]
        %v284 = vld [vmem:[%s228 + $0xc] sm:$0xf]
        %v285 = vld [vmem:[%s228 + $0x10] sm:$0xf]
        %v286 = vld [vmem:[%s228 + $0x14] sm:$0xf]
        %v287 = vld [vmem:[%s228 + $0x18] sm:$0xf]
        %v288 = vld [vmem:[%s228 + $0x1c] sm:$0xf]
        %v289 = vld [vmem:[%s228 + $0x20] sm:$0xf]
        %v290 = vld [vmem:[%s228 + $0x24] sm:$0xf]
        %v291 = vld [vmem:[%s228 + $0x28] sm:$0xf]
        %v292 = vld [vmem:[%s228 + $0x2c] sm:$0xf]
        %v293 = vld [vmem:[%s228 + $0x30] sm:$0xf]
        %v294 = vld [vmem:[%s228 + $0x34] sm:$0xf]
        %v295 = vld [vmem:[%s228 + $0x38] sm:$0xf]
        %v296 = vld [vmem:[%s228 + $0x3c] sm:$0xf]
        %v297 = vld [vmem:[%s228 + $0x40] sm:$0xf]
        %v298 = vld [vmem:[%s228 + $0x44] sm:$0xf]
        %v299 = vld [vmem:[%s228 + $0x48] sm:$0xf]
        %v300 = vld [vmem:[%s228 + $0x4c] sm:$0xf]
        %v301 = vld [vmem:[%s228 + $0x50] sm:$0xf]
        %v302 = vld [vmem:[%s228 + $0x54] sm:$0xf]
        %v303 = vld [vmem:[%s228 + $0x58] sm:$0xf]
        %v304 = vld [vmem:[%s228 + $0x5c] sm:$0xf]
        %v305 = vld [vmem:[%s228 + $0x60] sm:$0xf]
        %v306 = vld [vmem:[%s228 + $0x64] sm:$0xf]
        %v307 = vld [vmem:[%s228 + $0x68] sm:$0xf]
        %v308 = vld [vmem:[%s228 + $0x6c] sm:$0xf]
        %v309 = vld [vmem:[%s228 + $0x70] sm:$0xf]
        %v310 = vld [vmem:[%s228 + $0x74] sm:$0xf]
        %v311 = vld [vmem:[%s228 + $0x78] sm:$0xf]
        %v312 = vld [vmem:[%s228 + $0x7c] sm:$0xf]
        %v317 = vunpack.c.l.b16 %v277
        %v318 = vunpack.c.h.b16 %v277
        %v319 = vunpack.c.l.b16 %v278
        %v320 = vunpack.c.h.b16 %v278
        %v321 = vunpack.c.l.b16 %v279
        %v322 = vunpack.c.h.b16 %v279
        %v323 = vunpack.c.l.b16 %v280
        %v324 = vunpack.c.h.b16 %v280
        %v325 = vpack.c.b16 %v319, %v317
        %v326 = vpack.c.b16 %v320, %v318
        %v327 = vpack.c.b16 %v323, %v321
        %v328 = vpack.c.b16 %v324, %v322
        %v365 = vunpack.c.l.b16 %v281
        %v366 = vunpack.c.l.b16 %v282
        %v367 = vunpack.c.l.b16 %v283
        %v368 = vunpack.c.l.b16 %v284
        %v369 = vunpack.c.l.b16 %v285
        %v370 = vunpack.c.l.b16 %v286
        %v371 = vunpack.c.l.b16 %v287
        %v372 = vunpack.c.l.b16 %v288
        %v373 = vunpack.c.l.b16 %v289
        %v374 = vunpack.c.l.b16 %v290
        %v375 = vunpack.c.l.b16 %v291
        %v376 = vunpack.c.l.b16 %v292
        %v377 = vunpack.c.l.b16 %v293
        %v378 = vunpack.c.l.b16 %v294
        %v379 = vunpack.c.l.b16 %v295
        %v380 = vunpack.c.l.b16 %v296
        %v381 = vunpack.c.l.b16 %v297
        %v382 = vunpack.c.l.b16 %v298
        %v383 = vunpack.c.l.b16 %v299
        %v384 = vunpack.c.l.b16 %v300
        %v385 = vunpack.c.l.b16 %v301
        %v386 = vunpack.c.l.b16 %v302
        %v387 = vunpack.c.l.b16 %v303
        %v388 = vunpack.c.l.b16 %v304
        %v389 = vunpack.c.l.b16 %v305
        %v390 = vunpack.c.l.b16 %v306
        %v391 = vunpack.c.l.b16 %v307
        %v392 = vunpack.c.l.b16 %v308
        %v393 = vunpack.c.l.b16 %v309
        %v394 = vunpack.c.l.b16 %v310
        %v395 = vunpack.c.l.b16 %v311
        %v396 = vunpack.c.l.b16 %v312
        %v397 = vpack.c.b16 %v366, %v365
        %v398 = vpack.c.b16 %v368, %v367
        %v399 = vpack.c.b16 %v370, %v369
        %v400 = vpack.c.b16 %v372, %v371
        %v401 = vpack.c.b16 %v374, %v373
        %v402 = vpack.c.b16 %v376, %v375
        %v403 = vpack.c.b16 %v378, %v377
        %v404 = vpack.c.b16 %v380, %v379
        %v405 = vpack.c.b16 %v382, %v381
        %v406 = vpack.c.b16 %v384, %v383
        %v407 = vpack.c.b16 %v386, %v385
        %v408 = vpack.c.b16 %v388, %v387
        %v409 = vpack.c.b16 %v390, %v389
        %v410 = vpack.c.b16 %v392, %v391
        %v411 = vpack.c.b16 %v394, %v393
        %v412 = vpack.c.b16 %v396, %v395
        %429 = vmatprep.subr.bf16.mxu0 0
        %430 = vmatpush1.bf16.msra.mxu0 %v404
        %431 = vmatprep.subr.bf16.mxu0 0
        %432 = vmatpush1.bf16.msra.mxu0 %v403
        %433 = vmatprep.subr.bf16.mxu0 0
        %434 = vmatpush1.bf16.msra.mxu0 %v402
        %435 = vmatprep.subr.bf16.mxu0 0
        %436 = vmatpush1.bf16.msra.mxu0 %v401
        %437 = vmatprep.subr.bf16.mxu0 0
        %438 = vmatpush1.bf16.msra.mxu0 %v400
        %439 = vmatprep.subr.bf16.mxu0 0
        %440 = vmatpush1.bf16.msra.mxu0 %v399
        %441 = vmatprep.subr.bf16.mxu0 0
        %442 = vmatpush1.bf16.msra.mxu0 %v398
        %443 = vmatprep.subr.bf16.mxu0 0
        %444 = vmatpush1.bf16.msra.mxu0 %v397
        %445 = vmatprep.subr.bf16.mxu0 0
        %446 = vmatpush2.bf16.msra.mxu0 %v412
        %447 = vmatprep.subr.bf16.mxu0 0
        %448 = vmatpush2.bf16.msra.mxu0 %v411
        %449 = vmatprep.subr.bf16.mxu0 0
        %450 = vmatpush2.bf16.msra.mxu0 %v410
        %451 = vmatprep.subr.bf16.mxu0 0
        %452 = vmatpush2.bf16.msra.mxu0 %v409
        %453 = vmatprep.subr.bf16.mxu0 0
        %454 = vmatpush2.bf16.msra.mxu0 %v408
        %455 = vmatprep.subr.bf16.mxu0 0
        %456 = vmatpush2.bf16.msra.mxu0 %v407
        %457 = vmatprep.subr.bf16.mxu0 0
        %458 = vmatpush2.bf16.msra.mxu0 %v406
        %459 = vmatprep.subr.bf16.mxu0 0
        %460 = vmatpush2.bf16.msra.mxu0 %v405
        %461 = vmatprep.mubr.bf16.mxu0 %v326
        %462 = vmatmul.mubr.bf16.gmra.mxu0 %v325
        %v463 = vpop.f32.mrf.mxu0
        %v464 = vadd.f32 0.0, %v463
        %v465 = vpop.f32.mrf.mxu0
        %v466 = vpop.f32.mrf.mxu0
        %v467 = vadd.f32 0.0, %v466
        %v468 = vpop.f32.mrf.mxu0
        %469 = vmatprep.mubr.bf16.mxu0 %v328
        %470 = vmatmul.mubr.bf16.gmra.mxu0 %v327
        %v471 = vpop.f32.mrf.mxu0
        %v472 = vadd.f32 0.0, %v471
        %v473 = vpop.f32.mrf.mxu0
        %v474 = vpop.f32.mrf.mxu0
        %v475 = vadd.f32 0.0, %v474
        %v476 = vpop.f32.mrf.mxu0
        %477 = vdwg.mxu0
        %v478 = vadd.f32 %v464, %v467
        %v479 = vrot.slane %v478, 4
        %v480 = vadd.f32 %v478, %v479
        %v481 = vrot.slane %v480, 2
        %v482 = vadd.f32 %v480, %v481
        %v483 = vrot.slane %v482, 1
        %v484 = vadd.f32 %v482, %v483
        %v485 = vrcp.pop 16.0
        %v486 = vmul.f32 %v484, %v485
        %v487 = vsub.f32 %v464, %v486
        %v488 = vsub.f32 %v467, %v486
        %v489 = vmul.f32 %v487, %v487
        %v490 = vmul.f32 %v488, %v488
        %v491 = vadd.f32 %v489, %v490
        %v492 = vrot.slane %v491, 4
        %v493 = vadd.f32 %v491, %v492
        %v494 = vrot.slane %v493, 2
        %v495 = vadd.f32 %v493, %v494
        %v496 = vrot.slane %v495, 1
        %v497 = vadd.f32 %v495, %v496
        %v498 = vmul.f32 %v497, %v485
        %v499 = vadd.f32 %v498, 1e-05
        %v500 = vrsqrt.pop %v499
        %v501 = vld [vmem:[%s236] sm:$0x1]
        %v502 = vmul.f32 %v500, %v501
        %v503 = vlaneseq
        %v504 = vshrl.u32 %v503, 7
        %v505 = vsub.s32 0, %v504
        %v506 = vrot.slane %v502, %v505
        %v507 = vmul.f32 %v487, %v506
        %v508 = vmul.f32 %v488, %v506
        %v509 = vld [vmem:[%s244] sm:$0x1]
        %v511 = vlaneseq
        %v512 = vshrl.u32 %v511, 7
        %v513 = vsub.s32 0, %v512
        %v514 = vrot.slane %v509, %v513
        %v516 = vadd.f32 %v507, %v514
        %v517 = vadd.f32 %v508, %v514
        %v518 = vmax.f32 %v516, 0.0
        %v519 = vmax.f32 %v517, 0.0
        %v520 = vadd.f32 %v472, %v475
        %v521 = vrot.slane %v520, 4
        %v522 = vadd.f32 %v520, %v521
        %v523 = vrot.slane %v522, 2
        %v524 = vadd.f32 %v522, %v523
        %v525 = vrot.slane %v524, 1
        %v526 = vadd.f32 %v524, %v525
        %v527 = vmul.f32 %v526, %v485
        %v528 = vsub.f32 %v472, %v527
        %v529 = vsub.f32 %v475, %v527
        %v530 = vmul.f32 %v528, %v528
        %v531 = vmul.f32 %v529, %v529
        %v532 = vadd.f32 %v530, %v531
        %v533 = vrot.slane %v532, 4
        %v534 = vadd.f32 %v532, %v533
        %v535 = vrot.slane %v534, 2
        %v536 = vadd.f32 %v534, %v535
        %v537 = vrot.slane %v536, 1
        %v538 = vadd.f32 %v536, %v537
        %v539 = vmul.f32 %v538, %v485
        %v540 = vadd.f32 %v539, 1e-05
        %v541 = vrsqrt.pop %v540
        %v542 = vmul.f32 %v541, %v501
        %v543 = vlaneseq
        %v544 = vshrl.u32 %v543, 7
        %v545 = vsub.s32 0, %v544
        %v546 = vrot.slane %v542, %v545
        %v547 = vmul.f32 %v528, %v546
        %v548 = vmul.f32 %v529, %v546
        %v549 = vadd.f32 %v547, %v514
        %v550 = vadd.f32 %v548, %v514
        %v551 = vmax.f32 %v549, 0.0
        %v552 = vmax.f32 %v550, 0.0
        %v553 = vpack.c.bf16 %v519, %v518
        %v554 = vpack.c.bf16 %v552, %v551
        %v557 = vunpack.c.l.b16 %v553
        %v558 = vunpack.c.h.b16 %v553
        %v559 = vunpack.c.l.b16 %v554
        %v560 = vunpack.c.h.b16 %v554
        %v561 = vpack.c.b16 %v557, %v557
        %v562 = vpack.c.b16 %v558, %v558
        %v563 = vpack.c.b16 %v559, %v559
        %v564 = vpack.c.b16 %v560, %v560
        %569 = vst [vmem:[%s275] sm:$0xf] %v561
        %570 = vst [vmem:[%s275 + $0x4] sm:$0xf] %v562
        %571 = vst [vmem:[%s275 + $0x8] sm:$0xf] %v563
        %572 = vst [vmem:[%s275 + $0xc] sm:$0xf] %v564
        %s573 = sand.u32 %s128, 1
        %s574 = sand.u32 %s128, 1
        %s575 = smul.addr %s574, 16
        %s576 = scalar_lea.vmem [#allocation7], %s575
        // Predicated region
        $region49: #{simsiam_forward.4} parent=35 // pred_check
          %p577 = pneg %p138
        $region50: #{simsiam_forward.4} parent=35 // pred_check_branch
          %579 = sbr.rel (%p577) target = $region52
        $region51: #{simsiam_forward.4} parent=35 // pred_region
          %s580 = smul.addr %s21, 4
          %s581 = scalar_lea.vmem %s4, %s580
          // Predicated region
          $region53: #{simsiam_forward.4} parent=51 // pred_check
            _
          $region54: #{simsiam_forward.4} parent=51 // pred_check_branch
            %583 = sbr.rel (0) target = $region56
          $region55: #{simsiam_forward.4} parent=51 // pred_region
            // Predicated region
            $region57: #{simsiam_forward.4} parent=55 // pred_check
              _
            $region58: #{simsiam_forward.4} parent=55 // pred_check_branch
              %585 = sbr.rel target = $region60
            $region59: #{simsiam_forward.4} parent=55 // pred_region
              // Predicated region
              $region72: #{simsiam_forward.4} parent=59 // pred_check
                _
              $region73: #{simsiam_forward.4} parent=59 // pred_check_branch
                %607 = sbr.rel (0) target = $region75
              $region74: #{simsiam_forward.4} parent=59 // pred_region
                loop: start=0, step=1, limit=1
                $region76: #{simsiam_forward.4} parent=74 // loop_pre_header
                  _
                $region77: #{simsiam_forward.4} parent=74 // loop_header
                  %s609 = sphi 0, %s613
                  %p610 = scmp.ge.s32.totalorder %s609, 1
                  %s614 = sphi %s576, %s576
                  %s615 = sphi %s581, %s581
                $region78: #{simsiam_forward.4} parent=74 // loop_header_branch
                  %612 = sbr.rel (%p610) target = $region82
                $region79: #{simsiam_forward.4} parent=74 // loop_body
                  _
                $region80: #{simsiam_forward.4} parent=74 // loop_footer
                  %s613 = sadd.s32 1, %s609
                $region81: #{simsiam_forward.4} parent=74 // loop_footer_branch
                  %608 = sbr.rel target = $region77
                $region82: #{simsiam_forward.4} parent=74 // loop_exit
                  _
                %s617 = ssub.s32 16, 1
                loop: start=0, step=1, limit=1
                $region83: #{simsiam_forward.4} parent=74 // loop_pre_header
                  _
                $region84: #{simsiam_forward.4} parent=74 // loop_header
                  %s619 = sphi 0, %s623
                  %p620 = scmp.ge.s32.totalorder %s619, 1
                  %s624 = sphi %s576, %s576
                  %s625 = sphi %s581, %s581
                $region85: #{simsiam_forward.4} parent=74 // loop_header_branch
                  %622 = sbr.rel (%p620) target = $region89
                $region86: #{simsiam_forward.4} parent=74 // loop_body
                  %v626 = vld [vmem:[%s624] sm:%s617]
                  %627 = vst [vmem:[%s625] sm:%s617] %v626
                  %v628 = vld [vmem:[%s624 + $0x4] sm:%s617]
                  %629 = vst [vmem:[%s625 + $0x8] sm:%s617] %v628
                  %v630 = vld [vmem:[%s624 + $0x8] sm:%s617]
                  %631 = vst [vmem:[%s625 + $0x10] sm:%s617] %v630
                  %v632 = vld [vmem:[%s624 + $0xc] sm:%s617]
                  %633 = vst [vmem:[%s625 + $0x18] sm:%s617] %v632
                $region87: #{simsiam_forward.4} parent=74 // loop_footer
                  %s623 = sadd.s32 1, %s619
                $region88: #{simsiam_forward.4} parent=74 // loop_footer_branch
                  %618 = sbr.rel target = $region84
                $region89: #{simsiam_forward.4} parent=74 // loop_exit
                  _
              $region75: #{simsiam_forward.4} parent=59 // pred_fallthru
                _
            $region60: #{simsiam_forward.4} parent=55 // pred_fallthru
              _
            // Predicated region
            $region61: #{simsiam_forward.4} parent=55 // pred_check
              _
            $region62: #{simsiam_forward.4} parent=55 // pred_check_branch
              %587 = sbr.rel (0) target = $region64
            $region63: #{simsiam_forward.4} parent=55 // pred_region
              %s589 = ssub.s32 16, 1
              loop: start=0, step=1, limit=1
              $region65: #{simsiam_forward.4} parent=63 // loop_pre_header
                _
              $region66: #{simsiam_forward.4} parent=63 // loop_header
                %s591 = sphi 0, %s595
                %p592 = scmp.ge.s32.totalorder %s591, 1
                %s596 = sphi %s576, %s576
                %s597 = sphi %s581, %s581
              $region67: #{simsiam_forward.4} parent=63 // loop_header_branch
                %594 = sbr.rel (%p592) target = $region71
              $region68: #{simsiam_forward.4} parent=63 // loop_body
                %v598 = vld [vmem:[%s596] sm:%s589]
                %599 = vst [vmem:[%s597] sm:%s589] %v598
                %v600 = vld [vmem:[%s596 + $0x4] sm:%s589]
                %601 = vst [vmem:[%s597 + $0x8] sm:%s589] %v600
                %v602 = vld [vmem:[%s596 + $0x8] sm:%s589]
                %603 = vst [vmem:[%s597 + $0x10] sm:%s589] %v602
                %v604 = vld [vmem:[%s596 + $0xc] sm:%s589]
                %605 = vst [vmem:[%s597 + $0x18] sm:%s589] %v604
              $region69: #{simsiam_forward.4} parent=63 // loop_footer
                %s595 = sadd.s32 1, %s591
              $region70: #{simsiam_forward.4} parent=63 // loop_footer_branch
                %590 = sbr.rel target = $region66
              $region71: #{simsiam_forward.4} parent=63 // loop_exit
                _
            $region64: #{simsiam_forward.4} parent=55 // pred_fallthru
              _
          $region56: #{simsiam_forward.4} parent=51 // pred_fallthru
            _
          %634 = vnop
        $region52: #{simsiam_forward.4} parent=35 // pred_fallthru
          _
      $region36: #{simsiam_forward.4} parent=5 // pred_fallthru
        _
      %p635 = scmp.le.s32.totalorder 2, %s16
      // Predicated region
      $region90: #{simsiam_forward.4} parent=5 // pred_check
        %p636 = pneg %p635
      $region91: #{simsiam_forward.4} parent=5 // pred_check_branch
        %638 = sbr.rel (%p636) target = $region93
      $region92: #{simsiam_forward.4} parent=5 // pred_region
        %s639 = ssub.s32 %s16, 2
        // Predicated region
        $region94: #{simsiam_forward.4} parent=92 // pred_check
          %p640 = pneg %p144
        $region95: #{simsiam_forward.4} parent=92 // pred_check_branch
          %642 = sbr.rel (%p640) target = $region97
        $region96: #{simsiam_forward.4} parent=92 // pred_region
          %s643 = sand.u32 %s129, 1
          %s644 = sand.u32 %s129, 1
          %s645 = smul.addr %s644, 16
          %s646 = scalar_lea.vmem [#allocation7], %s645
        $region97: #{simsiam_forward.4} parent=92 // pred_fallthru
          _
      $region93: #{simsiam_forward.4} parent=5 // pred_fallthru
        _
    $region6: #{simsiam_forward.4} parent=1 // loop_footer
      %s20 = sadd.s32 1, %s16
    $region7: #{simsiam_forward.4} parent=1 // loop_footer_branch
      %15 = sbr.rel target = $region3
    $region8: #{simsiam_forward.4} parent=1 // loop_exit
      _
    %647 = vsyncpa [#allocation3], 1
    %s648 = scalar_lea.sflag [#allocation3], 1
    %649 = vsyncpa %s648, 1
    %650 = vsyncpa [#allocation5], 1
    %s651 = scalar_lea.sflag [#allocation5], 1
    %652 = vsyncpa %s651, 1

// kernel: simsiam_forward.5
$region0: #{simsiam_forward.5}
  #allocation0 [shape = 'u32[]', space=smem, size = 0x4, offset = 0x4, fixed_abs, tag = 'smem constant byte address 0x4 - core index']
  #allocation1 [shape = 'u32[144,128]{1,0:T(1,128)}', space=vmem, size = 0x12000, scoped, tag = 'internal scratch']
  %s0 = inlined_call_operand.vmem [shape: bf16[32,256], index: 0, kind: input, shape index: {}]
  %s1 = inlined_call_operand.vmem [shape: bf16[256,256], index: 1, kind: input, shape index: {}]
  %s2 = inlined_call_operand.vmem [shape: f32[1,256], index: 2, kind: input, shape index: {}]
  %s3 = inlined_call_operand.vmem [shape: f32[1,256], index: 3, kind: input, shape index: {}]
  %s4 = inlined_call_operand.vmem [shape: bf16[32,256], index: 4, kind: output, shape index: {}]
  %s5 = sld [smem:[#allocation0]]
  $region127: #{simsiam_forward.5} parent=0
    _
  %s7 = ssub.s32 1, %s5
  %s8 = scalar_select 0, %s7, %s5
  $region1: #{simsiam_forward.5} parent=0
    #allocation2 [shape = 'u8[131072]{0}', space=vmem, size = 0x20000, scoped, tag = 'input window, operand 1']
    #allocation3 [shape = 'u8[16384]{0}', space=vmem, size = 0x4000, scoped, tag = 'output window, operand 0']
    loop: start=0, step=1, limit=4
    $region2: #{simsiam_forward.5} parent=1 // loop_pre_header
      _
    $region3: #{simsiam_forward.5} parent=1 // loop_header
      %s10 = sphi 0, %s14
      %p11 = scmp.ge.s32.totalorder %s10, 4
      %s18 = sphi 0, %s18
      %s20 = sphi 0, %s18
      %s21 = sphi 0, %s20
      %s35 = sphi 0, %s21
      %s41 = sphi 0, %s43
      %s44 = sphi 0, %s41
      %s45 = sphi 0, %s44
      %s61 = sphi 0, %s45
      %s67 = sphi 0, %s69
      %s70 = sphi 0, %s67
      %s71 = sphi 0, %s70
      %s87 = sphi 0, %s71
      %s93 = sphi 0, %s95
      %s96 = sphi 0, %s93
      %s97 = sphi 0, %s96
      %s113 = sphi 0, %s97
      %s119 = sphi 0, %s121
      %s122 = sphi 0, %s119
      %s123 = sphi 0, %s122
      %s139 = sphi 0, %s123
    $region4: #{simsiam_forward.5} parent=1 // loop_header_branch
      %13 = sbr.rel (%p11) target = $region8
    $region5: #{simsiam_forward.5} parent=1 // loop_body
      %s15 = ssub.s32 %s10, 1
      %s16 = ssub.s32 %s10, 2
      %s17 = sadd.s32 %s10, 1
      %s19 = sadd.s32 %s18, 1
      %p22 = scmp.eq.s32.totalorder %s10, 1
      %p23 = scmp.ne.s32.totalorder %s18, %s20
      %p24 = scmp.eq.s32.totalorder %s10, 0
      %p25 = por %p23, %p24
      %p26 = scmp.ne.s32.totalorder %s18, %s20
      %p27 = scmp.eq.s32.totalorder %s15, 1
      %p28 = por %p26, %p27
      %p29 = scmp.ne.s32.totalorder %s20, %s21
      %p30 = scmp.eq.s32.totalorder %s15, 0
      %p31 = por %p29, %p30
      %p32 = scmp.ne.s32.totalorder %s20, %s21
      %p33 = scmp.eq.s32.totalorder %s16, 1
      %p34 = por %p32, %p33
      %p36 = scmp.ne.s32.totalorder %s21, %s35
      %p37 = scmp.eq.s32.totalorder %s16, 0
      %p38 = por %p36, %p37
      %s39 = ssub.s32 %s10, %s17
      %p40 = scmp.eq.s32.totalorder %s39, 0
      %s42 = sadd.s32 %s41, 1
      %s43 = scalar_select %p40, %s41, %s42
      %p46 = pneg %p40
      %p47 = scmp.eq.s32.totalorder %s10, 1
      %p48 = por %p46, %p47
      %p49 = scmp.ne.s32.totalorder %s41, %s44
      %p50 = scmp.eq.s32.totalorder %s10, 0
      %p51 = por %p49, %p50
      %p52 = scmp.ne.s32.totalorder %s41, %s44
      %p53 = scmp.eq.s32.totalorder %s15, 1
      %p54 = por %p52, %p53
      %p55 = scmp.ne.s32.totalorder %s44, %s45
      %p56 = scmp.eq.s32.totalorder %s15, 0
      %p57 = por %p55, %p56
      %p58 = scmp.ne.s32.totalorder %s44, %s45
      %p59 = scmp.eq.s32.totalorder %s16, 1
      %p60 = por %p58, %p59
      %p62 = scmp.ne.s32.totalorder %s45, %s61
      %p63 = scmp.eq.s32.totalorder %s16, 0
      %p64 = por %p62, %p63
      %s65 = ssub.s32 %s10, %s17
      %p66 = scmp.eq.s32.totalorder %s65, 0
      %s68 = sadd.s32 %s67, 1
      %s69 = scalar_select %p66, %s67, %s68
      %p72 = pneg %p66
      %p73 = scmp.eq.s32.totalorder %s10, 1
      %p74 = por %p72, %p73
      %p75 = scmp.ne.s32.totalorder %s67, %s70
      %p76 = scmp.eq.s32.totalorder %s10, 0
      %p77 = por %p75, %p76
      %p78 = scmp.ne.s32.totalorder %s67, %s70
      %p79 = scmp.eq.s32.totalorder %s15, 1
      %p80 = por %p78, %p79
      %p81 = scmp.ne.s32.totalorder %s70, %s71
      %p82 = scmp.eq.s32.totalorder %s15, 0
      %p83 = por %p81, %p82
      %p84 = scmp.ne.s32.totalorder %s70, %s71
      %p85 = scmp.eq.s32.totalorder %s16, 1
      %p86 = por %p84, %p85
      %p88 = scmp.ne.s32.totalorder %s71, %s87
      %p89 = scmp.eq.s32.totalorder %s16, 0
      %p90 = por %p88, %p89
      %s91 = ssub.s32 %s10, %s17
      %p92 = scmp.eq.s32.totalorder %s91, 0
      %s94 = sadd.s32 %s93, 1
      %s95 = scalar_select %p92, %s93, %s94
      %p98 = pneg %p92
      %p99 = scmp.eq.s32.totalorder %s10, 1
      %p100 = por %p98, %p99
      %p101 = scmp.ne.s32.totalorder %s93, %s96
      %p102 = scmp.eq.s32.totalorder %s10, 0
      %p103 = por %p101, %p102
      %p104 = scmp.ne.s32.totalorder %s93, %s96
      %p105 = scmp.eq.s32.totalorder %s15, 1
      %p106 = por %p104, %p105
      %p107 = scmp.ne.s32.totalorder %s96, %s97
      %p108 = scmp.eq.s32.totalorder %s15, 0
      %p109 = por %p107, %p108
      %p110 = scmp.ne.s32.totalorder %s96, %s97
      %p111 = scmp.eq.s32.totalorder %s16, 1
      %p112 = por %p110, %p111
      %p114 = scmp.ne.s32.totalorder %s97, %s113
      %p115 = scmp.eq.s32.totalorder %s16, 0
      %p116 = por %p114, %p115
      %s117 = ssub.s32 %s10, %s17
      %p118 = scmp.eq.s32.totalorder %s117, 0
      %s120 = sadd.s32 %s119, 1
      %s121 = scalar_select %p118, %s119, %s120
      %p124 = pneg %p118
      %p125 = scmp.eq.s32.totalorder %s10, 1
      %p126 = por %p124, %p125
      %p127 = scmp.ne.s32.totalorder %s119, %s122
      %p128 = scmp.eq.s32.totalorder %s10, 0
      %p129 = por %p127, %p128
      %p130 = scmp.ne.s32.totalorder %s119, %s122
      %p131 = scmp.eq.s32.totalorder %s15, 1
      %p132 = por %p130, %p131
      %p133 = scmp.ne.s32.totalorder %s122, %s123
      %p134 = scmp.eq.s32.totalorder %s15, 0
      %p135 = por %p133, %p134
      %p136 = scmp.ne.s32.totalorder %s122, %s123
      %p137 = scmp.eq.s32.totalorder %s16, 1
      %p138 = por %p136, %p137
      %p140 = scmp.ne.s32.totalorder %s123, %s139
      %p141 = scmp.eq.s32.totalorder %s16, 0
      %p142 = por %p140, %p141
      %p143 = scmp.le.s32.totalorder 1, %s10
      %p144 = scmp.lt.s32.totalorder %s10, 3
      %p145 = pnand %p143, %p144
      %p146 = pneg %p145
      // Predicated region
      $region9: #{simsiam_forward.5} parent=5 // pred_check
        _
      $region10: #{simsiam_forward.5} parent=5 // pred_check_branch
        %148 = sbr.rel (%p145) target = $region12
      $region11: #{simsiam_forward.5} parent=5 // pred_region
        %s149 = ssub.s32 %s10, 1
        // Predicated region
        $region13: #{simsiam_forward.5} parent=11 // pred_check
          %p150 = pneg %p31
        $region14: #{simsiam_forward.5} parent=11 // pred_check_branch
          %152 = sbr.rel (%p150) target = $region16
        $region15: #{simsiam_forward.5} parent=11 // pred_region
          _
        $region16: #{simsiam_forward.5} parent=11 // pred_fallthru
          _
      $region12: #{simsiam_forward.5} parent=5 // pred_fallthru
        _
      %p153 = scmp.lt.s32.totalorder %s10, 2
      // Predicated region
      $region17: #{simsiam_forward.5} parent=5 // pred_check
        %p154 = pneg %p153
      $region18: #{simsiam_forward.5} parent=5 // pred_check_branch
        %156 = sbr.rel (%p154) target = $region20
      $region19: #{simsiam_forward.5} parent=5 // pred_region
        // Predicated region
        $region21: #{simsiam_forward.5} parent=19 // pred_check
          %p157 = pneg %p51
        $region22: #{simsiam_forward.5} parent=19 // pred_check_branch
          %159 = sbr.rel (%p157) target = $region24
        $region23: #{simsiam_forward.5} parent=19 // pred_region
          %s160 = sand.u32 %s41, 1
          %s161 = sand.u32 %s41, 1
          %s162 = smul.addr %s161, 128
          %s163 = scalar_lea.vmem [#allocation2], %s162
          %s164 = smul.addr %s10, 4
          %s165 = scalar_lea.vmem %s1, %s164
          // Predicated region
          $region25: #{simsiam_forward.5} parent=23 // pred_check
            _
          $region26: #{simsiam_forward.5} parent=23 // pred_check_branch
            %167 = sbr.rel (0) target = $region28
          $region27: #{simsiam_forward.5} parent=23 // pred_region
            // Predicated region
            $region29: #{simsiam_forward.5} parent=27 // pred_check
              _
            $region30: #{simsiam_forward.5} parent=27 // pred_check_branch
              %169 = sbr.rel target = $region32
            $region31: #{simsiam_forward.5} parent=27 // pred_region
              // Predicated region
              $region44: #{simsiam_forward.5} parent=31 // pred_check
                _
              $region45: #{simsiam_forward.5} parent=31 // pred_check_branch
                %247 = sbr.rel (0) target = $region47
              $region46: #{simsiam_forward.5} parent=31 // pred_region
                loop: start=0, step=1, limit=1
                $region48: #{simsiam_forward.5} parent=46 // loop_pre_header
                  _
                $region49: #{simsiam_forward.5} parent=46 // loop_header
                  %s249 = sphi 0, %s253
                  %p250 = scmp.ge.s32.totalorder %s249, 1
                  %s254 = sphi %s165, %s165
                  %s255 = sphi %s163, %s163
                $region50: #{simsiam_forward.5} parent=46 // loop_header_branch
                  %252 = sbr.rel (%p250) target = $region54
                $region51: #{simsiam_forward.5} parent=46 // loop_body
                  _
                $region52: #{simsiam_forward.5} parent=46 // loop_footer
                  %s253 = sadd.s32 1, %s249
                $region53: #{simsiam_forward.5} parent=46 // loop_footer_branch
                  %248 = sbr.rel target = $region49
                $region54: #{simsiam_forward.5} parent=46 // loop_exit
                  _
                %s257 = ssub.s32 16, 1
                loop: start=0, step=1, limit=1
                $region55: #{simsiam_forward.5} parent=46 // loop_pre_header
                  _
                $region56: #{simsiam_forward.5} parent=46 // loop_header
                  %s259 = sphi 0, %s263
                  %p260 = scmp.ge.s32.totalorder %s259, 1
                  %s264 = sphi %s165, %s165
                  %s265 = sphi %s163, %s163
                $region57: #{simsiam_forward.5} parent=46 // loop_header_branch
                  %262 = sbr.rel (%p260) target = $region61
                $region58: #{simsiam_forward.5} parent=46 // loop_body
                  %v266 = vld [vmem:[%s264] sm:%s257]
                  %267 = vst [vmem:[%s265] sm:%s257] %v266
                  %v268 = vld [vmem:[%s264 + $0x8] sm:%s257]
                  %269 = vst [vmem:[%s265 + $0x4] sm:%s257] %v268
                  %v270 = vld [vmem:[%s264 + $0x10] sm:%s257]
                  %271 = vst [vmem:[%s265 + $0x8] sm:%s257] %v270
                  %v272 = vld [vmem:[%s264 + $0x18] sm:%s257]
                  %273 = vst [vmem:[%s265 + $0xc] sm:%s257] %v272
                  %v274 = vld [vmem:[%s264 + $0x20] sm:%s257]
                  %275 = vst [vmem:[%s265 + $0x10] sm:%s257] %v274
                  %v276 = vld [vmem:[%s264 + $0x28] sm:%s257]
                  %277 = vst [vmem:[%s265 + $0x14] sm:%s257] %v276
                  %v278 = vld [vmem:[%s264 + $0x30] sm:%s257]
                  %279 = vst [vmem:[%s265 + $0x18] sm:%s257] %v278
                  %v280 = vld [vmem:[%s264 + $0x38] sm:%s257]
                  %281 = vst [vmem:[%s265 + $0x1c] sm:%s257] %v280
                  %v282 = vld [vmem:[%s264 + $0x40] sm:%s257]
                  %283 = vst [vmem:[%s265 + $0x20] sm:%s257] %v282
                  %v284 = vld [vmem:[%s264 + $0x48] sm:%s257]
                  %285 = vst [vmem:[%s265 + $0x24] sm:%s257] %v284
                  %v286 = vld [vmem:[%s264 + $0x50] sm:%s257]
                  %287 = vst [vmem:[%s265 + $0x28] sm:%s257] %v286
                  %v288 = vld [vmem:[%s264 + $0x58] sm:%s257]
                  %289 = vst [vmem:[%s265 + $0x2c] sm:%s257] %v288
                  %v290 = vld [vmem:[%s264 + $0x60] sm:%s257]
                  %291 = vst [vmem:[%s265 + $0x30] sm:%s257] %v290
                  %v292 = vld [vmem:[%s264 + $0x68] sm:%s257]
                  %293 = vst [vmem:[%s265 + $0x34] sm:%s257] %v292
                  %v294 = vld [vmem:[%s264 + $0x70] sm:%s257]
                  %295 = vst [vmem:[%s265 + $0x38] sm:%s257] %v294
                  %v296 = vld [vmem:[%s264 + $0x78] sm:%s257]
                  %297 = vst [vmem:[%s265 + $0x3c] sm:%s257] %v296
                  %v298 = vld [vmem:[%s264 + $0x80] sm:%s257]
                  %299 = vst [vmem:[%s265 + $0x40] sm:%s257] %v298
                  %v300 = vld [vmem:[%s264 + $0x88] sm:%s257]
                  %301 = vst [vmem:[%s265 + $0x44] sm:%s257] %v300
                  %v302 = vld [vmem:[%s264 + $0x90] sm:%s257]
                  %303 = vst [vmem:[%s265 + $0x48] sm:%s257] %v302
                  %v304 = vld [vmem:[%s264 + $0x98] sm:%s257]
                  %305 = vst [vmem:[%s265 + $0x4c] sm:%s257] %v304
                  %v306 = vld [vmem:[%s264 + $0xa0] sm:%s257]
                  %307 = vst [vmem:[%s265 + $0x50] sm:%s257] %v306
                  %v308 = vld [vmem:[%s264 + $0xa8] sm:%s257]
                  %309 = vst [vmem:[%s265 + $0x54] sm:%s257] %v308
                  %v310 = vld [vmem:[%s264 + $0xb0] sm:%s257]
                  %311 = vst [vmem:[%s265 + $0x58] sm:%s257] %v310
                  %v312 = vld [vmem:[%s264 + $0xb8] sm:%s257]
                  %313 = vst [vmem:[%s265 + $0x5c] sm:%s257] %v312
                  %v314 = vld [vmem:[%s264 + $0xc0] sm:%s257]
                  %315 = vst [vmem:[%s265 + $0x60] sm:%s257] %v314
                  %v316 = vld [vmem:[%s264 + $0xc8] sm:%s257]
                  %317 = vst [vmem:[%s265 + $0x64] sm:%s257] %v316
                  %v318 = vld [vmem:[%s264 + $0xd0] sm:%s257]
                  %319 = vst [vmem:[%s265 + $0x68] sm:%s257] %v318
                  %v320 = vld [vmem:[%s264 + $0xd8] sm:%s257]
                  %321 = vst [vmem:[%s265 + $0x6c] sm:%s257] %v320
                  %v322 = vld [vmem:[%s264 + $0xe0] sm:%s257]
                  %323 = vst [vmem:[%s265 + $0x70] sm:%s257] %v322
                  %v324 = vld [vmem:[%s264 + $0xe8] sm:%s257]
                  %325 = vst [vmem:[%s265 + $0x74] sm:%s257] %v324
                  %v326 = vld [vmem:[%s264 + $0xf0] sm:%s257]
                  %327 = vst [vmem:[%s265 + $0x78] sm:%s257] %v326
                  %v328 = vld [vmem:[%s264 + $0xf8] sm:%s257]
                  %329 = vst [vmem:[%s265 + $0x7c] sm:%s257] %v328
                $region59: #{simsiam_forward.5} parent=46 // loop_footer
                  %s263 = sadd.s32 1, %s259
                $region60: #{simsiam_forward.5} parent=46 // loop_footer_branch
                  %258 = sbr.rel target = $region56
                $region61: #{simsiam_forward.5} parent=46 // loop_exit
                  _
              $region47: #{simsiam_forward.5} parent=31 // pred_fallthru
                _
            $region32: #{simsiam_forward.5} parent=27 // pred_fallthru
              _
            // Predicated region
            $region33: #{simsiam_forward.5} parent=27 // pred_check
              _
            $region34: #{simsiam_forward.5} parent=27 // pred_check_branch
              %171 = sbr.rel (0) target = $region36
            $region35: #{simsiam_forward.5} parent=27 // pred_region
              %s173 = ssub.s32 16, 1
              loop: start=0, step=1, limit=1
              $region37: #{simsiam_forward.5} parent=35 // loop_pre_header
                _
              $region38: #{simsiam_forward.5} parent=35 // loop_header
                %s175 = sphi 0, %s179
                %p176 = scmp.ge.s32.totalorder %s175, 1
                %s180 = sphi %s165, %s165
                %s181 = sphi %s163, %s163
              $region39: #{simsiam_forward.5} parent=35 // loop_header_branch
                %178 = sbr.rel (%p176) target = $region43
              $region40: #{simsiam_forward.5} parent=35 // loop_body
                %v182 = vld [vmem:[%s180] sm:%s173]
                %183 = vst [vmem:[%s181] sm:%s173] %v182
                %v184 = vld [vmem:[%s180 + $0x8] sm:%s173]
                %185 = vst [vmem:[%s181 + $0x4] sm:%s173] %v184
                %v186 = vld [vmem:[%s180 + $0x10] sm:%s173]
                %187 = vst [vmem:[%s181 + $0x8] sm:%s173] %v186
                %v188 = vld [vmem:[%s180 + $0x18] sm:%s173]
                %189 = vst [vmem:[%s181 + $0xc] sm:%s173] %v188
                %v190 = vld [vmem:[%s180 + $0x20] sm:%s173]
                %191 = vst [vmem:[%s181 + $0x10] sm:%s173] %v190
                %v192 = vld [vmem:[%s180 + $0x28] sm:%s173]
                %193 = vst [vmem:[%s181 + $0x14] sm:%s173] %v192
                %v194 = vld [vmem:[%s180 + $0x30] sm:%s173]
                %195 = vst [vmem:[%s181 + $0x18] sm:%s173] %v194
                %v196 = vld [vmem:[%s180 + $0x38] sm:%s173]
                %197 = vst [vmem:[%s181 + $0x1c] sm:%s173] %v196
                %v198 = vld [vmem:[%s180 + $0x40] sm:%s173]
                %199 = vst [vmem:[%s181 + $0x20] sm:%s173] %v198
                %v200 = vld [vmem:[%s180 + $0x48] sm:%s173]
                %201 = vst [vmem:[%s181 + $0x24] sm:%s173] %v200
                %v202 = vld [vmem:[%s180 + $0x50] sm:%s173]
                %203 = vst [vmem:[%s181 + $0x28] sm:%s173] %v202
                %v204 = vld [vmem:[%s180 + $0x58] sm:%s173]
                %205 = vst [vmem:[%s181 + $0x2c] sm:%s173] %v204
                %v206 = vld [vmem:[%s180 + $0x60] sm:%s173]
                %207 = vst [vmem:[%s181 + $0x30] sm:%s173] %v206
                %v208 = vld [vmem:[%s180 + $0x68] sm:%s173]
                %209 = vst [vmem:[%s181 + $0x34] sm:%s173] %v208
                %v210 = vld [vmem:[%s180 + $0x70] sm:%s173]
                %211 = vst [vmem:[%s181 + $0x38] sm:%s173] %v210
                %v212 = vld [vmem:[%s180 + $0x78] sm:%s173]
                %213 = vst [vmem:[%s181 + $0x3c] sm:%s173] %v212
                %v214 = vld [vmem:[%s180 + $0x80] sm:%s173]
                %215 = vst [vmem:[%s181 + $0x40] sm:%s173] %v214
                %v216 = vld [vmem:[%s180 + $0x88] sm:%s173]
                %217 = vst [vmem:[%s181 + $0x44] sm:%s173] %v216
                %v218 = vld [vmem:[%s180 + $0x90] sm:%s173]
                %219 = vst [vmem:[%s181 + $0x48] sm:%s173] %v218
                %v220 = vld [vmem:[%s180 + $0x98] sm:%s173]
                %221 = vst [vmem:[%s181 + $0x4c] sm:%s173] %v220
                %v222 = vld [vmem:[%s180 + $0xa0] sm:%s173]
                %223 = vst [vmem:[%s181 + $0x50] sm:%s173] %v222
                %v224 = vld [vmem:[%s180 + $0xa8] sm:%s173]
                %225 = vst [vmem:[%s181 + $0x54] sm:%s173] %v224
                %v226 = vld [vmem:[%s180 + $0xb0] sm:%s173]
                %227 = vst [vmem:[%s181 + $0x58] sm:%s173] %v226
                %v228 = vld [vmem:[%s180 + $0xb8] sm:%s173]
                %229 = vst [vmem:[%s181 + $0x5c] sm:%s173] %v228
                %v230 = vld [vmem:[%s180 + $0xc0] sm:%s173]
                %231 = vst [vmem:[%s181 + $0x60] sm:%s173] %v230
                %v232 = vld [vmem:[%s180 + $0xc8] sm:%s173]
                %233 = vst [vmem:[%s181 + $0x64] sm:%s173] %v232
                %v234 = vld [vmem:[%s180 + $0xd0] sm:%s173]
                %235 = vst [vmem:[%s181 + $0x68] sm:%s173] %v234
                %v236 = vld [vmem:[%s180 + $0xd8] sm:%s173]
                %237 = vst [vmem:[%s181 + $0x6c] sm:%s173] %v236
                %v238 = vld [vmem:[%s180 + $0xe0] sm:%s173]
                %239 = vst [vmem:[%s181 + $0x70] sm:%s173] %v238
                %v240 = vld [vmem:[%s180 + $0xe8] sm:%s173]
                %241 = vst [vmem:[%s181 + $0x74] sm:%s173] %v240
                %v242 = vld [vmem:[%s180 + $0xf0] sm:%s173]
                %243 = vst [vmem:[%s181 + $0x78] sm:%s173] %v242
                %v244 = vld [vmem:[%s180 + $0xf8] sm:%s173]
                %245 = vst [vmem:[%s181 + $0x7c] sm:%s173] %v244
              $region41: #{simsiam_forward.5} parent=35 // loop_footer
                %s179 = sadd.s32 1, %s175
              $region42: #{simsiam_forward.5} parent=35 // loop_footer_branch
                %174 = sbr.rel target = $region38
              $region43: #{simsiam_forward.5} parent=35 // loop_exit
                _
            $region36: #{simsiam_forward.5} parent=27 // pred_fallthru
              _
          $region28: #{simsiam_forward.5} parent=23 // pred_fallthru
            _
          %330 = vnop
        $region24: #{simsiam_forward.5} parent=19 // pred_fallthru
          _
        // Predicated region
        $region62: #{simsiam_forward.5} parent=19 // pred_check
          %p331 = pneg %p77
        $region63: #{simsiam_forward.5} parent=19 // pred_check_branch
          %333 = sbr.rel (%p331) target = $region65
        $region64: #{simsiam_forward.5} parent=19 // pred_region
          %p334 = scmp.lt.s32.totalorder %s10, 1
          %s335 = scalar_select %p334, %s10, 1
          %s336 = scalar_lea.vmem %s2, %s335
        $region65: #{simsiam_forward.5} parent=19 // pred_fallthru
          _
        // Predicated region
        $region66: #{simsiam_forward.5} parent=19 // pred_check
          %p337 = pneg %p103
        $region67: #{simsiam_forward.5} parent=19 // pred_check_branch
          %339 = sbr.rel (%p337) target = $region69
        $region68: #{simsiam_forward.5} parent=19 // pred_region
          %p340 = scmp.lt.s32.totalorder %s10, 1
          %s341 = scalar_select %p340, %s10, 1
          %s342 = scalar_lea.vmem %s3, %s341
        $region69: #{simsiam_forward.5} parent=19 // pred_fallthru
          _
      $region20: #{simsiam_forward.5} parent=5 // pred_fallthru
        _
      %p343 = scmp.le.s32.totalorder 1, %s10
      %p344 = scmp.lt.s32.totalorder %s10, 3
      %p345 = pnand %p343, %p344
      %p346 = pneg %p345
      // Predicated region
      $region70: #{simsiam_forward.5} parent=5 // pred_check
        _
      $region71: #{simsiam_forward.5} parent=5 // pred_check_branch
        %348 = sbr.rel (%p345) target = $region73
      $region72: #{simsiam_forward.5} parent=5 // pred_region
        %s349 = ssub.s32 %s10, 1
        %s350 = sand.u32 %s44, 1
        %s351 = sand.u32 %s44, 1
        %s352 = smul.addr %s351, 128
        %s353 = scalar_lea.vmem [#allocation2], %s352
        // Predicated region
        $region74: #{simsiam_forward.5} parent=72 // pred_check
          %p354 = pneg %p57
        $region75: #{simsiam_forward.5} parent=72 // pred_check_branch
          %356 = sbr.rel (%p354) target = $region77
        $region76: #{simsiam_forward.5} parent=72 // pred_region
          _
        $region77: #{simsiam_forward.5} parent=72 // pred_fallthru
          _
        %p357 = pneg %p31
        %p358 = pneg %p28
        %s359 = sand.u32 %s44, 1
        %s360 = sand.u32 %s44, 1
        %s361 = smul.addr %s360, 128
        %s362 = scalar_lea.vmem [#allocation2], %s361
        %p363 = pneg %p57
        %p364 = pneg %p54
        %p365 = scmp.lt.s32.totalorder %s15, 1
        %s366 = scalar_select %p365, %s15, 1
        %s367 = scalar_lea.vmem %s2, %s366
        %p368 = pneg %p83
        %p369 = pneg %p80
        %p370 = scmp.lt.s32.totalorder %s15, 1
        %s371 = scalar_select %p370, %s15, 1
        %s372 = scalar_lea.vmem %s3, %s371
        %p373 = pneg %p109
        %p374 = pneg %p106
        %p375 = pneg %p135
        %p376 = pneg %p132
        %s377 = sand.u32 %s122, 1
        %s378 = sand.u32 %s122, 1
        %s379 = smul.addr %s378, 16
        %s380 = scalar_lea.vmem [#allocation3], %s379
        %p381 = scmp.lt.s32.totalorder %s15, 1
        %s382 = scalar_select %p381, %s15, 1
        %s383 = scalar_lea.vmem %s2, %s382
        %p384 = scmp.lt.s32.totalorder %s15, 1
        %s385 = scalar_select %p384, %s15, 1
        %s386 = scalar_lea.vmem %s3, %s385
        %v388 = vld [vmem:[%s0] sm:$0xff]
        %v389 = vld [vmem:[%s0 + $0x8] sm:$0xff]
        %v390 = vld [vmem:[%s0 + $0x10] sm:$0xff]
        %v391 = vld [vmem:[%s0 + $0x18] sm:$0xff]
        %v392 = vld [vmem:[%s353] sm:$0xf]
        %v393 = vld [vmem:[%s353 + $0x4] sm:$0xf]
        %v394 = vld [vmem:[%s353 + $0x8] sm:$0xf]
        %v395 = vld [vmem:[%s353 + $0xc] sm:$0xf]
        %v396 = vld [vmem:[%s353 + $0x10] sm:$0xf]
        %v397 = vld [vmem:[%s353 + $0x14] sm:$0xf]
        %v398 = vld [vmem:[%s353 + $0x18] sm:$0xf]
        %v399 = vld [vmem:[%s353 + $0x1c] sm:$0xf]
        %v400 = vld [vmem:[%s353 + $0x20] sm:$0xf]
        %v401 = vld [vmem:[%s353 + $0x24] sm:$0xf]
        %v402 = vld [vmem:[%s353 + $0x28] sm:$0xf]
        %v403 = vld [vmem:[%s353 + $0x2c] sm:$0xf]
        %v404 = vld [vmem:[%s353 + $0x30] sm:$0xf]
        %v405 = vld [vmem:[%s353 + $0x34] sm:$0xf]
        %v406 = vld [vmem:[%s353 + $0x38] sm:$0xf]
        %v407 = vld [vmem:[%s353 + $0x3c] sm:$0xf]
        %v408 = vld [vmem:[%s353 + $0x40] sm:$0xf]
        %v409 = vld [vmem:[%s353 + $0x44] sm:$0xf]
        %v410 = vld [vmem:[%s353 + $0x48] sm:$0xf]
        %v411 = vld [vmem:[%s353 + $0x4c] sm:$0xf]
        %v412 = vld [vmem:[%s353 + $0x50] sm:$0xf]
        %v413 = vld [vmem:[%s353 + $0x54] sm:$0xf]
        %v414 = vld [vmem:[%s353 + $0x58] sm:$0xf]
        %v415 = vld [vmem:[%s353 + $0x5c] sm:$0xf]
        %v416 = vld [vmem:[%s353 + $0x60] sm:$0xf]
        %v417 = vld [vmem:[%s353 + $0x64] sm:$0xf]
        %v418 = vld [vmem:[%s353 + $0x68] sm:$0xf]
        %v419 = vld [vmem:[%s353 + $0x6c] sm:$0xf]
        %v420 = vld [vmem:[%s353 + $0x70] sm:$0xf]
        %v421 = vld [vmem:[%s353 + $0x74] sm:$0xf]
        %v422 = vld [vmem:[%s353 + $0x78] sm:$0xf]
        %v423 = vld [vmem:[%s353 + $0x7c] sm:$0xf]
        %v428 = vunpack.c.l.b16 %v388
        %v429 = vunpack.c.h.b16 %v388
        %v430 = vunpack.c.l.b16 %v389
        %v431 = vunpack.c.h.b16 %v389
        %v432 = vunpack.c.l.b16 %v390
        %v433 = vunpack.c.h.b16 %v390
        %v434 = vunpack.c.l.b16 %v391
        %v435 = vunpack.c.h.b16 %v391
        %v436 = vpack.c.b16 %v430, %v428
        %v437 = vpack.c.b16 %v431, %v429
        %v438 = vpack.c.b16 %v434, %v432
        %v439 = vpack.c.b16 %v435, %v433
        %v476 = vunpack.c.l.b16 %v392
        %v477 = vunpack.c.l.b16 %v393
        %v478 = vunpack.c.l.b16 %v394
        %v479 = vunpack.c.l.b16 %v395
        %v480 = vunpack.c.l.b16 %v396
        %v481 = vunpack.c.l.b16 %v397
        %v482 = vunpack.c.l.b16 %v398
        %v483 = vunpack.c.l.b16 %v399
        %v484 = vunpack.c.l.b16 %v400
        %v485 = vunpack.c.l.b16 %v401
        %v486 = vunpack.c.l.b16 %v402
        %v487 = vunpack.c.l.b16 %v403
        %v488 = vunpack.c.l.b16 %v404
        %v489 = vunpack.c.l.b16 %v405
        %v490 = vunpack.c.l.b16 %v406
        %v491 = vunpack.c.l.b16 %v407
        %v492 = vunpack.c.l.b16 %v408
        %v493 = vunpack.c.l.b16 %v409
        %v494 = vunpack.c.l.b16 %v410
        %v495 = vunpack.c.l.b16 %v411
        %v496 = vunpack.c.l.b16 %v412
        %v497 = vunpack.c.l.b16 %v413
        %v498 = vunpack.c.l.b16 %v414
        %v499 = vunpack.c.l.b16 %v415
        %v500 = vunpack.c.l.b16 %v416
        %v501 = vunpack.c.l.b16 %v417
        %v502 = vunpack.c.l.b16 %v418
        %v503 = vunpack.c.l.b16 %v419
        %v504 = vunpack.c.l.b16 %v420
        %v505 = vunpack.c.l.b16 %v421
        %v506 = vunpack.c.l.b16 %v422
        %v507 = vunpack.c.l.b16 %v423
        %v508 = vpack.c.b16 %v477, %v476
        %v509 = vpack.c.b16 %v479, %v478
        %v510 = vpack.c.b16 %v481, %v480
        %v511 = vpack.c.b16 %v483, %v482
        %v512 = vpack.c.b16 %v485, %v484
        %v513 = vpack.c.b16 %v487, %v486
        %v514 = vpack.c.b16 %v489, %v488
        %v515 = vpack.c.b16 %v491, %v490
        %v516 = vpack.c.b16 %v493, %v492
        %v517 = vpack.c.b16 %v495, %v494
        %v518 = vpack.c.b16 %v497, %v496
        %v519 = vpack.c.b16 %v499, %v498
        %v520 = vpack.c.b16 %v501, %v500
        %v521 = vpack.c.b16 %v503, %v502
        %v522 = vpack.c.b16 %v505, %v504
        %v523 = vpack.c.b16 %v507, %v506
        %540 = vmatprep.subr.bf16.mxu0 0
        %541 = vmatpush1.bf16.msra.mxu0 %v515
        %542 = vmatprep.subr.bf16.mxu0 0
        %543 = vmatpush1.bf16.msra.mxu0 %v514
        %544 = vmatprep.subr.bf16.mxu0 0
        %545 = vmatpush1.bf16.msra.mxu0 %v513
        %546 = vmatprep.subr.bf16.mxu0 0
        %547 = vmatpush1.bf16.msra.mxu0 %v512
        %548 = vmatprep.subr.bf16.mxu0 0
        %549 = vmatpush1.bf16.msra.mxu0 %v511
        %550 = vmatprep.subr.bf16.mxu0 0
        %551 = vmatpush1.bf16.msra.mxu0 %v510
        %552 = vmatprep.subr.bf16.mxu0 0
        %553 = vmatpush1.bf16.msra.mxu0 %v509
        %554 = vmatprep.subr.bf16.mxu0 0
        %555 = vmatpush1.bf16.msra.mxu0 %v508
        %556 = vmatprep.subr.bf16.mxu0 0
        %557 = vmatpush2.bf16.msra.mxu0 %v523
        %558 = vmatprep.subr.bf16.mxu0 0
        %559 = vmatpush2.bf16.msra.mxu0 %v522
        %560 = vmatprep.subr.bf16.mxu0 0
        %561 = vmatpush2.bf16.msra.mxu0 %v521
        %562 = vmatprep.subr.bf16.mxu0 0
        %563 = vmatpush2.bf16.msra.mxu0 %v520
        %564 = vmatprep.subr.bf16.mxu0 0
        %565 = vmatpush2.bf16.msra.mxu0 %v519
        %566 = vmatprep.subr.bf16.mxu0 0
        %567 = vmatpush2.bf16.msra.mxu0 %v518
        %568 = vmatprep.subr.bf16.mxu0 0
        %569 = vmatpush2.bf16.msra.mxu0 %v517
        %570 = vmatprep.subr.bf16.mxu0 0
        %571 = vmatpush2.bf16.msra.mxu0 %v516
        %572 = vmatprep.mubr.bf16.mxu0 %v437
        %573 = vmatmul.mubr.bf16.gmra.mxu0 %v436
        %v574 = vpop.f32.mrf.mxu0
        %v575 = vadd.f32 0.0, %v574
        %v576 = vpop.f32.mrf.mxu0
        %v577 = vpop.f32.mrf.mxu0
        %v578 = vadd.f32 0.0, %v577
        %v579 = vpop.f32.mrf.mxu0
        %580 = vmatprep.mubr.bf16.mxu0 %v439
        %581 = vmatmul.mubr.bf16.gmra.mxu0 %v438
        %v582 = vpop.f32.mrf.mxu0
        %v583 = vadd.f32 0.0, %v582
        %v584 = vpop.f32.mrf.mxu0
        %v585 = vpop.f32.mrf.mxu0
        %v586 = vadd.f32 0.0, %v585
        %v587 = vpop.f32.mrf.mxu0
        %588 = vdwg.mxu0
        %v589 = vadd.f32 %v575, %v578
        %v590 = vrot.slane %v589, 4
        %v591 = vadd.f32 %v589, %v590
        %v592 = vrot.slane %v591, 2
        %v593 = vadd.f32 %v591, %v592
        %v594 = vrot.slane %v593, 1
        %v595 = vadd.f32 %v593, %v594
        %v596 = vrcp.pop 16.0
        %v597 = vmul.f32 %v595, %v596
        %v598 = vsub.f32 %v575, %v597
        %v599 = vsub.f32 %v578, %v597
        %v600 = vmul.f32 %v598, %v598
        %v601 = vmul.f32 %v599, %v599
        %v602 = vadd.f32 %v600, %v601
        %v603 = vrot.slane %v602, 4
        %v604 = vadd.f32 %v602, %v603
        %v605 = vrot.slane %v604, 2
        %v606 = vadd.f32 %v604, %v605
        %v607 = vrot.slane %v606, 1
        %v608 = vadd.f32 %v606, %v607
        %v609 = vmul.f32 %v608, %v596
        %v610 = vadd.f32 %v609, 1e-05
        %v611 = vrsqrt.pop %v610
        %v612 = vld [vmem:[%s383] sm:$0x1]
        %v613 = vmul.f32 %v611, %v612
        %v614 = vlaneseq
        %v615 = vshrl.u32 %v614, 7
        %v616 = vsub.s32 0, %v615
        %v617 = vrot.slane %v613, %v616
        %v618 = vmul.f32 %v598, %v617
        %v619 = vmul.f32 %v599, %v617
        %v620 = vld [vmem:[%s386] sm:$0x1]
        %v622 = vlaneseq
        %v623 = vshrl.u32 %v622, 7
        %v624 = vsub.s32 0, %v623
        %v625 = vrot.slane %v620, %v624
        %v627 = vadd.f32 %v618, %v625
        %v628 = vadd.f32 %v619, %v625
        %v629 = vmax.f32 %v627, 0.0
        %v630 = vmax.f32 %v628, 0.0
        %v631 = vadd.f32 %v583, %v586
        %v632 = vrot.slane %v631, 4
        %v633 = vadd.f32 %v631, %v632
        %v634 = vrot.slane %v633, 2
        %v635 = vadd.f32 %v633, %v634
        %v636 = vrot.slane %v635, 1
        %v637 = vadd.f32 %v635, %v636
        %v638 = vmul.f32 %v637, %v596
        %v639 = vsub.f32 %v583, %v638
        %v640 = vsub.f32 %v586, %v638
        %v641 = vmul.f32 %v639, %v639
        %v642 = vmul.f32 %v640, %v640
        %v643 = vadd.f32 %v641, %v642
        %v644 = vrot.slane %v643, 4
        %v645 = vadd.f32 %v643, %v644
        %v646 = vrot.slane %v645, 2
        %v647 = vadd.f32 %v645, %v646
        %v648 = vrot.slane %v647, 1
        %v649 = vadd.f32 %v647, %v648
        %v650 = vmul.f32 %v649, %v596
        %v651 = vadd.f32 %v650, 1e-05
        %v652 = vrsqrt.pop %v651
        %v653 = vmul.f32 %v652, %v612
        %v654 = vlaneseq
        %v655 = vshrl.u32 %v654, 7
        %v656 = vsub.s32 0, %v655
        %v657 = vrot.slane %v653, %v656
        %v658 = vmul.f32 %v639, %v657
        %v659 = vmul.f32 %v640, %v657
        %v660 = vadd.f32 %v658, %v625
        %v661 = vadd.f32 %v659, %v625
        %v662 = vmax.f32 %v660, 0.0
        %v663 = vmax.f32 %v661, 0.0
        %v664 = vpack.c.bf16 %v630, %v629
        %v665 = vpack.c.bf16 %v663, %v662
        %v668 = vunpack.c.l.b16 %v664
        %v669 = vunpack.c.h.b16 %v664
        %v670 = vunpack.c.l.b16 %v665
        %v671 = vunpack.c.h.b16 %v665
        %v672 = vpack.c.b16 %v668, %v668
        %v673 = vpack.c.b16 %v669, %v669
        %v674 = vpack.c.b16 %v670, %v670
        %v675 = vpack.c.b16 %v671, %v671
        %680 = vst [vmem:[%s380] sm:$0xf] %v672
        %681 = vst [vmem:[%s380 + $0x4] sm:$0xf] %v673
        %682 = vst [vmem:[%s380 + $0x8] sm:$0xf] %v674
        %683 = vst [vmem:[%s380 + $0xc] sm:$0xf] %v675
        %s684 = sand.u32 %s122, 1
        %s685 = sand.u32 %s122, 1
        %s686 = smul.addr %s685, 16
        %s687 = scalar_lea.vmem [#allocation3], %s686
        // Predicated region
        $region78: #{simsiam_forward.5} parent=72 // pred_check
          %p688 = pneg %p132
        $region79: #{simsiam_forward.5} parent=72 // pred_check_branch
          %690 = sbr.rel (%p688) target = $region81
        $region80: #{simsiam_forward.5} parent=72 // pred_region
          %s691 = smul.addr %s15, 4
          %s692 = scalar_lea.vmem %s4, %s691
          // Predicated region
          $region82: #{simsiam_forward.5} parent=80 // pred_check
            _
          $region83: #{simsiam_forward.5} parent=80 // pred_check_branch
            %694 = sbr.rel (0) target = $region85
          $region84: #{simsiam_forward.5} parent=80 // pred_region
            // Predicated region
            $region86: #{simsiam_forward.5} parent=84 // pred_check
              _
            $region87: #{simsiam_forward.5} parent=84 // pred_check_branch
              %696 = sbr.rel target = $region89
            $region88: #{simsiam_forward.5} parent=84 // pred_region
              // Predicated region
              $region101: #{simsiam_forward.5} parent=88 // pred_check
                _
              $region102: #{simsiam_forward.5} parent=88 // pred_check_branch
                %718 = sbr.rel (0) target = $region104
              $region103: #{simsiam_forward.5} parent=88 // pred_region
                loop: start=0, step=1, limit=1
                $region105: #{simsiam_forward.5} parent=103 // loop_pre_header
                  _
                $region106: #{simsiam_forward.5} parent=103 // loop_header
                  %s720 = sphi 0, %s724
                  %p721 = scmp.ge.s32.totalorder %s720, 1
                  %s725 = sphi %s687, %s687
                  %s726 = sphi %s692, %s692
                $region107: #{simsiam_forward.5} parent=103 // loop_header_branch
                  %723 = sbr.rel (%p721) target = $region111
                $region108: #{simsiam_forward.5} parent=103 // loop_body
                  _
                $region109: #{simsiam_forward.5} parent=103 // loop_footer
                  %s724 = sadd.s32 1, %s720
                $region110: #{simsiam_forward.5} parent=103 // loop_footer_branch
                  %719 = sbr.rel target = $region106
                $region111: #{simsiam_forward.5} parent=103 // loop_exit
                  _
                %s728 = ssub.s32 16, 1
                loop: start=0, step=1, limit=1
                $region112: #{simsiam_forward.5} parent=103 // loop_pre_header
                  _
                $region113: #{simsiam_forward.5} parent=103 // loop_header
                  %s730 = sphi 0, %s734
                  %p731 = scmp.ge.s32.totalorder %s730, 1
                  %s735 = sphi %s687, %s687
                  %s736 = sphi %s692, %s692
                $region114: #{simsiam_forward.5} parent=103 // loop_header_branch
                  %733 = sbr.rel (%p731) target = $region118
                $region115: #{simsiam_forward.5} parent=103 // loop_body
                  %v737 = vld [vmem:[%s735] sm:%s728]
                  %738 = vst [vmem:[%s736] sm:%s728] %v737
                  %v739 = vld [vmem:[%s735 + $0x4] sm:%s728]
                  %740 = vst [vmem:[%s736 + $0x8] sm:%s728] %v739
                  %v741 = vld [vmem:[%s735 + $0x8] sm:%s728]
                  %742 = vst [vmem:[%s736 + $0x10] sm:%s728] %v741
                  %v743 = vld [vmem:[%s735 + $0xc] sm:%s728]
                  %744 = vst [vmem:[%s736 + $0x18] sm:%s728] %v743
                $region116: #{simsiam_forward.5} parent=103 // loop_footer
                  %s734 = sadd.s32 1, %s730
                $region117: #{simsiam_forward.5} parent=103 // loop_footer_branch
                  %729 = sbr.rel target = $region113
                $region118: #{simsiam_forward.5} parent=103 // loop_exit
                  _
              $region104: #{simsiam_forward.5} parent=88 // pred_fallthru
                _
            $region89: #{simsiam_forward.5} parent=84 // pred_fallthru
              _
            // Predicated region
            $region90: #{simsiam_forward.5} parent=84 // pred_check
              _
            $region91: #{simsiam_forward.5} parent=84 // pred_check_branch
              %698 = sbr.rel (0) target = $region93
            $region92: #{simsiam_forward.5} parent=84 // pred_region
              %s700 = ssub.s32 16, 1
              loop: start=0, step=1, limit=1
              $region94: #{simsiam_forward.5} parent=92 // loop_pre_header
                _
              $region95: #{simsiam_forward.5} parent=92 // loop_header
                %s702 = sphi 0, %s706
                %p703 = scmp.ge.s32.totalorder %s702, 1
                %s707 = sphi %s687, %s687
                %s708 = sphi %s692, %s692
              $region96: #{simsiam_forward.5} parent=92 // loop_header_branch
                %705 = sbr.rel (%p703) target = $region100
              $region97: #{simsiam_forward.5} parent=92 // loop_body
                %v709 = vld [vmem:[%s707] sm:%s700]
                %710 = vst [vmem:[%s708] sm:%s700] %v709
                %v711 = vld [vmem:[%s707 + $0x4] sm:%s700]
                %712 = vst [vmem:[%s708 + $0x8] sm:%s700] %v711
                %v713 = vld [vmem:[%s707 + $0x8] sm:%s700]
                %714 = vst [vmem:[%s708 + $0x10] sm:%s700] %v713
                %v715 = vld [vmem:[%s707 + $0xc] sm:%s700]
                %716 = vst [vmem:[%s708 + $0x18] sm:%s700] %v715
              $region98: #{simsiam_forward.5} parent=92 // loop_footer
                %s706 = sadd.s32 1, %s702
              $region99: #{simsiam_forward.5} parent=92 // loop_footer_branch
                %701 = sbr.rel target = $region95
              $region100: #{simsiam_forward.5} parent=92 // loop_exit
                _
            $region93: #{simsiam_forward.5} parent=84 // pred_fallthru
              _
          $region85: #{simsiam_forward.5} parent=80 // pred_fallthru
            _
          %745 = vnop
        $region81: #{simsiam_forward.5} parent=72 // pred_fallthru
          _
      $region73: #{simsiam_forward.5} parent=5 // pred_fallthru
        _
      %p746 = scmp.le.s32.totalorder 2, %s10
      // Predicated region
      $region119: #{simsiam_forward.5} parent=5 // pred_check
        %p747 = pneg %p746
      $region120: #{simsiam_forward.5} parent=5 // pred_check_branch
        %749 = sbr.rel (%p747) target = $region122
      $region121: #{simsiam_forward.5} parent=5 // pred_region
        %s750 = ssub.s32 %s10, 2
        // Predicated region
        $region123: #{simsiam_forward.5} parent=121 // pred_check
          %p751 = pneg %p138
        $region124: #{simsiam_forward.5} parent=121 // pred_check_branch
          %753 = sbr.rel (%p751) target = $region126
        $region125: #{simsiam_forward.5} parent=121 // pred_region
          %s754 = sand.u32 %s123, 1
          %s755 = sand.u32 %s123, 1
          %s756 = smul.addr %s755, 16
          %s757 = scalar_lea.vmem [#allocation3], %s756
        $region126: #{simsiam_forward.5} parent=121 // pred_fallthru
          _
      $region122: #{simsiam_forward.5} parent=5 // pred_fallthru
        _
    $region6: #{simsiam_forward.5} parent=1 // loop_footer
      %s14 = sadd.s32 1, %s10
    $region7: #{simsiam_forward.5} parent=1 // loop_footer_branch
      %9 = sbr.rel target = $region3
    $region8: #{simsiam_forward.5} parent=1 // loop_exit
      _

</llo_original>
